<compile_context>
chip_gen: v7x
topology: tpu7x:2x2x1
jax: 0.10.0
libtpu: 0.0.40
codegen_flags: <defaults>
</compile_context>

<pallas_src>
import functools

import jax
import jax.numpy as jnp
from jax import lax
from jax.experimental import pallas as pl
from jax.experimental.pallas import tpu as pltpu

# ---------------- scaled-down "bert" config ----------------
VOCAB = 100
TYPE_VOCAB = 2
MAX_POS = 16
HIDDEN = 32          # model.config.hidden_size (scaled down from 768)
NUM_HEADS = 2
HEAD_DIM = HIDDEN // NUM_HEADS
FFN = 64
NUM_LAYERS = 2
CLS_HIDDEN = 32      # classifier hidden_dim (scaled down from 256)
NUM_CLASSES = 2
LOGIT_PAD = 128      # lane-dense output slab; real logits live in [:, :NUM_CLASSES]
LN_EPS = 1e-12


# ---------------- in-kernel helpers (trace-time inlined) ----------------
def _layernorm(h, g_ref, b_ref):
    """f32 LayerNorm over the lane (hidden) axis. g/b refs are [1, H]."""
    mu = jnp.mean(h, axis=-1, keepdims=True)
    d = h - mu
    var = jnp.mean(d * d, axis=-1, keepdims=True)
    return d * lax.rsqrt(var + LN_EPS) * g_ref[...] + b_ref[...]


def _mm(x, w_ref):
    """bf16-operand MXU matmul with f32 accumulation; w_ref holds bf16 weights."""
    return jnp.dot(x.astype(jnp.bfloat16), w_ref[...],
                   preferred_element_type=jnp.float32)


def _gelu(y):
    # TODO(synk): HF BERT uses exact erf-GELU; tanh approximation used here.
    return 0.5 * y * (1.0 + jnp.tanh(0.7978845608028654 * (y + 0.044715 * y * y * y)))


# ---------------- the single fused kernel ----------------
def _fused_kernel(nlayers, *refs):
    """One grid step = one sequence: full BERT-like encoder + classifier head."""
    emb_ref, mask_ref = refs[0], refs[1]
    eg_ref, eb_ref = refs[2], refs[3]
    lrefs = refs[4:4 + 12 * nlayers]
    cw1_ref, cb1_ref, cw2_ref, cb2_ref = refs[4 + 12 * nlayers:-1]
    out_ref = refs[-1]

    S, H = emb_ref.shape
    D = HEAD_DIM
    scale = 1.0 / float(D) ** 0.5

    mask = mask_ref[0]                                   # [1, S] f32 additive mask
    x = _layernorm(emb_ref[...], eg_ref, eb_ref)         # [S, H] f32

    for l in range(nlayers):
        (wqkv, bqkv, wo, bo, g1, be1,
         w1, bb1, w2, bb2, g2, be2) = lrefs[12 * l:12 * (l + 1)]

        # fused QKV projection: one [S,H] x [H,3H] MXU pass
        qkv = _mm(x, wqkv) + bqkv[...]                   # [S, 3H] f32
        q = qkv[:, :H] * scale                           # fold 1/sqrt(D) into q
        k = qkv[:, H:2 * H]
        v = qkv[:, 2 * H:3 * H]
        wo_v = wo[...]                                   # [H, H] bf16

        # per-head attention, fully in-register (heads = lane slices of qkv)
        attn = None
        for h in range(NUM_HEADS):
            c = h * D
            qh = q[:, c:c + D].astype(jnp.bfloat16)      # [S, D]
            kh = k[:, c:c + D].astype(jnp.bfloat16)
            vh = v[:, c:c + D].astype(jnp.bfloat16)
            # scores = qh @ kh^T (contract over D; no materialized transpose)
            s = lax.dot_general(qh, kh, (((1,), (1,)), ((), ())),
                                preferred_element_type=jnp.float32) + mask
            s = s - jnp.max(s, axis=-1, keepdims=True)
            p = jnp.exp(s)
            p = p * pl.reciprocal(jnp.sum(p, axis=-1, keepdims=True), approx=True)
            ch = jnp.dot(p.astype(jnp.bfloat16), vh,
                         preferred_element_type=jnp.float32)               # [S, D]
            oh = jnp.dot(ch.astype(jnp.bfloat16), wo_v[c:c + D, :],
                         preferred_element_type=jnp.float32)               # [S, H]
            attn = oh if attn is None else attn + oh

        x = _layernorm(attn + bo[...] + x, g1, be1)      # Add & LN (post-attention)

        hdn = _gelu(_mm(x, w1) + bb1[...])               # [S, FFN]
        ff = _mm(hdn, w2) + bb2[...]                     # [S, H]
        x = _layernorm(ff + x, g2, be2)                  # Add & LN (post-FFN)

    # CLS pooling (token 0); dropout = identity (eval mode)
    cls = x[0:1, :]                                      # [1, H]
    h1 = jnp.maximum(_mm(cls, cw1_ref) + cb1_ref[...], 0.0)   # [1, CLS_HIDDEN]
    logits = _mm(h1, cw2_ref) + cb2_ref[...]             # [1, LOGIT_PAD]
    out_ref[0] = logits.astype(out_ref.dtype)


# ---------------- deterministic parameter init ----------------
def init_params(key):
    keys = iter(jax.random.split(key, 64))

    def norm(shape, scale=0.02):
        return scale * jax.random.normal(next(keys), shape, dtype=jnp.float32)

    def bf16(x):
        return x.astype(jnp.bfloat16)

    p = {
        "word_emb": norm((VOCAB, HIDDEN)),
        "pos_emb": norm((MAX_POS, HIDDEN)),
        "type_emb": norm((TYPE_VOCAB, HIDDEN)),
        "emb_ln_g": jnp.ones((1, HIDDEN), jnp.float32),
        "emb_ln_b": jnp.zeros((1, HIDDEN), jnp.float32),
        "layers": [],
        # classifier head: Linear(HIDDEN, CLS_HIDDEN) -> ReLU -> Linear(CLS_HIDDEN, NUM_CLASSES)
        "cls_w1": bf16(norm((HIDDEN, CLS_HIDDEN))),
        "cls_b1": jnp.zeros((1, CLS_HIDDEN), jnp.float32),
        "cls_w2p": bf16(jnp.zeros((CLS_HIDDEN, LOGIT_PAD), jnp.float32)
                        .at[:, :NUM_CLASSES].set(norm((CLS_HIDDEN, NUM_CLASSES)))),
        "cls_b2p": jnp.zeros((1, LOGIT_PAD), jnp.float32),
    }
    for _ in range(NUM_LAYERS):
        p["layers"].append({
            "wqkv": bf16(norm((HIDDEN, 3 * HIDDEN))),
            "bqkv": jnp.zeros((1, 3 * HIDDEN), jnp.float32),
            "wo": bf16(norm((HIDDEN, HIDDEN))),
            "bo": jnp.zeros((1, HIDDEN), jnp.float32),
            "ln1_g": jnp.ones((1, HIDDEN), jnp.float32),
            "ln1_b": jnp.zeros((1, HIDDEN), jnp.float32),
            "w1": bf16(norm((HIDDEN, FFN))),
            "b1": jnp.zeros((1, FFN), jnp.float32),
            "w2": bf16(norm((FFN, HIDDEN))),
            "b2": jnp.zeros((1, HIDDEN), jnp.float32),
            "ln2_g": jnp.ones((1, HIDDEN), jnp.float32),
            "ln2_b": jnp.zeros((1, HIDDEN), jnp.float32),
        })
    return p


_LAYER_KEYS = ("wqkv", "bqkv", "wo", "bo", "ln1_g", "ln1_b",
               "w1", "b1", "w2", "b2", "ln2_g", "ln2_b")


# ---------------- forward pass (TextPredictor.forward) ----------------
def text_predictor_forward(params, input_ids, attention_mask, token_type_ids):
    B, S = input_ids.shape

    # embeddings (gathers left to XLA; everything downstream is one Pallas call)
    we = jnp.take(params["word_emb"], input_ids, axis=0)          # [B,S,H]
    pe = params["pos_emb"][:S][None, :, :]                        # [1,S,H]
    te = jnp.take(params["type_emb"], token_type_ids, axis=0)     # [B,S,H]
    emb = (we + pe + te).reshape(B * S, HIDDEN)                   # [B*S,H]

    # additive attention mask (kept f32): 0 where attended, -1e9 where padded
    mask_add = ((1.0 - attention_mask.astype(jnp.float32)) * -1e9)[:, None, :]  # [B,1,S]

    weight_args = [params["emb_ln_g"], params["emb_ln_b"]]
    for lp in params["layers"]:
        weight_args += [lp[k] for k in _LAYER_KEYS]
    weight_args += [params["cls_w1"], params["cls_b1"],
                    params["cls_w2p"], params["cls_b2p"]]

    def const_spec(shape):
        nd = len(shape)
        return pl.BlockSpec(shape, lambda b, nd=nd: (0,) * nd)    # weights stay resident

    in_specs = ([pl.BlockSpec((S, HIDDEN), lambda b: (b, 0)),     # this sequence's rows
                 pl.BlockSpec((1, 1, S), lambda b: (b, 0, 0))]    # this sequence's mask
                + [const_spec(a.shape) for a in weight_args])

    out = pl.pallas_call(
        functools.partial(_fused_kernel, NUM_LAYERS),
        grid=(B,),
        in_specs=in_specs,
        out_specs=pl.BlockSpec((1, 1, LOGIT_PAD), lambda b: (b, 0, 0)),
        out_shape=jax.ShapeDtypeStruct((B, 1, LOGIT_PAD), jnp.float32),
        # TODO(synk): at production BERT shapes (H=768, S=512) add a second grid
        # axis tiling B*S and set pltpu.CompilerParams(vmem_limit_bytes=...) so
        # double-buffered blocks fit v7x's 64 MiB VMEM.
        compiler_params=pltpu.CompilerParams(dimension_semantics=("parallel",)),
    )(emb, mask_add, *weight_args)

    return out[:, 0, :NUM_CLASSES]                                # [B, NUM_CLASSES]


if __name__ == "__main__":
    B, S = 2, 8
    root = jax.random.PRNGKey(0)
    k_param, k_ids = jax.random.split(root)

    params = init_params(k_param)
    input_ids = jax.random.randint(k_ids, (B, S), 0, VOCAB, dtype=jnp.int32)
    attention_mask = jnp.ones((B, S), dtype=jnp.int32).at[1, S - 2:].set(0)
    token_type_ids = jnp.zeros((B, S), dtype=jnp.int32)

    fwd = jax.jit(text_predictor_forward)
    logits = fwd(params, input_ids, attention_mask, token_type_ids)
    jax.block_until_ready(logits)

    assert logits.shape == (B, NUM_CLASSES) and logits.dtype == jnp.float32
    assert bool(jnp.all(jnp.isfinite(logits)))
    print("KERNEL_OK")
</pallas_src>

<mosaic_0001>
module attributes {stable_mosaic.version = 11 : i64} {
  func.func @_fused_kernel(%arg0: i32, %arg1: memref<8x32xf32, #tpu.memory_space<vmem>>, %arg2: memref<1x1x8xf32, #tpu.memory_space<vmem>>, %arg3: memref<1x32xf32, #tpu.memory_space<vmem>>, %arg4: memref<1x32xf32, #tpu.memory_space<vmem>>, %arg5: memref<32x96xbf16, #tpu.memory_space<vmem>>, %arg6: memref<1x96xf32, #tpu.memory_space<vmem>>, %arg7: memref<32x32xbf16, #tpu.memory_space<vmem>>, %arg8: memref<1x32xf32, #tpu.memory_space<vmem>>, %arg9: memref<1x32xf32, #tpu.memory_space<vmem>>, %arg10: memref<1x32xf32, #tpu.memory_space<vmem>>, %arg11: memref<32x64xbf16, #tpu.memory_space<vmem>>, %arg12: memref<1x64xf32, #tpu.memory_space<vmem>>, %arg13: memref<64x32xbf16, #tpu.memory_space<vmem>>, %arg14: memref<1x32xf32, #tpu.memory_space<vmem>>, %arg15: memref<1x32xf32, #tpu.memory_space<vmem>>, %arg16: memref<1x32xf32, #tpu.memory_space<vmem>>, %arg17: memref<32x96xbf16, #tpu.memory_space<vmem>>, %arg18: memref<1x96xf32, #tpu.memory_space<vmem>>, %arg19: memref<32x32xbf16, #tpu.memory_space<vmem>>, %arg20: memref<1x32xf32, #tpu.memory_space<vmem>>, %arg21: memref<1x32xf32, #tpu.memory_space<vmem>>, %arg22: memref<1x32xf32, #tpu.memory_space<vmem>>, %arg23: memref<32x64xbf16, #tpu.memory_space<vmem>>, %arg24: memref<1x64xf32, #tpu.memory_space<vmem>>, %arg25: memref<64x32xbf16, #tpu.memory_space<vmem>>, %arg26: memref<1x32xf32, #tpu.memory_space<vmem>>, %arg27: memref<1x32xf32, #tpu.memory_space<vmem>>, %arg28: memref<1x32xf32, #tpu.memory_space<vmem>>, %arg29: memref<32x32xbf16, #tpu.memory_space<vmem>>, %arg30: memref<1x32xf32, #tpu.memory_space<vmem>>, %arg31: memref<32x128xbf16, #tpu.memory_space<vmem>>, %arg32: memref<1x128xf32, #tpu.memory_space<vmem>>, %arg33: memref<1x1x128xf32, #tpu.memory_space<vmem>>) attributes {dimension_semantics = [#tpu.dimension_semantics<parallel>], iteration_bounds = array<i64: 2>, scalar_prefetch = 0 : i64, scratch_operands = 0 : i64, tpu.core_type = #tpu.core_type<tc>, window_params = [{transform_indices = @transform_0, window_bounds = array<i64: 8, 32>}, {transform_indices = @transform_1, window_bounds = array<i64: 1, 1, 8>}, {pipeline_mode = #tpu.pipeline_mode<synchronous>, transform_indices = @transform_2, window_bounds = array<i64: 1, 32>}, {pipeline_mode = #tpu.pipeline_mode<synchronous>, transform_indices = @transform_3, window_bounds = array<i64: 1, 32>}, {pipeline_mode = #tpu.pipeline_mode<synchronous>, transform_indices = @transform_4, window_bounds = array<i64: 32, 96>}, {pipeline_mode = #tpu.pipeline_mode<synchronous>, transform_indices = @transform_5, window_bounds = array<i64: 1, 96>}, {pipeline_mode = #tpu.pipeline_mode<synchronous>, transform_indices = @transform_6, window_bounds = array<i64: 32, 32>}, {pipeline_mode = #tpu.pipeline_mode<synchronous>, transform_indices = @transform_7, window_bounds = array<i64: 1, 32>}, {pipeline_mode = #tpu.pipeline_mode<synchronous>, transform_indices = @transform_8, window_bounds = array<i64: 1, 32>}, {pipeline_mode = #tpu.pipeline_mode<synchronous>, transform_indices = @transform_9, window_bounds = array<i64: 1, 32>}, {pipeline_mode = #tpu.pipeline_mode<synchronous>, transform_indices = @transform_10, window_bounds = array<i64: 32, 64>}, {pipeline_mode = #tpu.pipeline_mode<synchronous>, transform_indices = @transform_11, window_bounds = array<i64: 1, 64>}, {pipeline_mode = #tpu.pipeline_mode<synchronous>, transform_indices = @transform_12, window_bounds = array<i64: 64, 32>}, {pipeline_mode = #tpu.pipeline_mode<synchronous>, transform_indices = @transform_13, window_bounds = array<i64: 1, 32>}, {pipeline_mode = #tpu.pipeline_mode<synchronous>, transform_indices = @transform_14, window_bounds = array<i64: 1, 32>}, {pipeline_mode = #tpu.pipeline_mode<synchronous>, transform_indices = @transform_15, window_bounds = array<i64: 1, 32>}, {pipeline_mode = #tpu.pipeline_mode<synchronous>, transform_indices = @transform_16, window_bounds = array<i64: 32, 96>}, {pipeline_mode = #tpu.pipeline_mode<synchronous>, transform_indices = @transform_17, window_bounds = array<i64: 1, 96>}, {pipeline_mode = #tpu.pipeline_mode<synchronous>, transform_indices = @transform_18, window_bounds = array<i64: 32, 32>}, {pipeline_mode = #tpu.pipeline_mode<synchronous>, transform_indices = @transform_19, window_bounds = array<i64: 1, 32>}, {pipeline_mode = #tpu.pipeline_mode<synchronous>, transform_indices = @transform_20, window_bounds = array<i64: 1, 32>}, {pipeline_mode = #tpu.pipeline_mode<synchronous>, transform_indices = @transform_21, window_bounds = array<i64: 1, 32>}, {pipeline_mode = #tpu.pipeline_mode<synchronous>, transform_indices = @transform_22, window_bounds = array<i64: 32, 64>}, {pipeline_mode = #tpu.pipeline_mode<synchronous>, transform_indices = @transform_23, window_bounds = array<i64: 1, 64>}, {pipeline_mode = #tpu.pipeline_mode<synchronous>, transform_indices = @transform_24, window_bounds = array<i64: 64, 32>}, {pipeline_mode = #tpu.pipeline_mode<synchronous>, transform_indices = @transform_25, window_bounds = array<i64: 1, 32>}, {pipeline_mode = #tpu.pipeline_mode<synchronous>, transform_indices = @transform_26, window_bounds = array<i64: 1, 32>}, {pipeline_mode = #tpu.pipeline_mode<synchronous>, transform_indices = @transform_27, window_bounds = array<i64: 1, 32>}, {pipeline_mode = #tpu.pipeline_mode<synchronous>, transform_indices = @transform_28, window_bounds = array<i64: 32, 32>}, {pipeline_mode = #tpu.pipeline_mode<synchronous>, transform_indices = @transform_29, window_bounds = array<i64: 1, 32>}, {pipeline_mode = #tpu.pipeline_mode<synchronous>, transform_indices = @transform_30, window_bounds = array<i64: 32, 128>}, {pipeline_mode = #tpu.pipeline_mode<synchronous>, transform_indices = @transform_31, window_bounds = array<i64: 1, 128>}, {transform_indices = @transform_32, window_bounds = array<i64: 1, 1, 128>}]} {
    %c0 = arith.constant 0 : index
    %c0_0 = arith.constant 0 : index
    %c0_1 = arith.constant 0 : index
    %0 = vector.load %arg2[%c0, %c0_0, %c0_1] : memref<1x1x8xf32, #tpu.memory_space<vmem>>, vector<1x1x8xf32>
    %1 = vector.shape_cast %0 : vector<1x1x8xf32> to vector<1x8xf32>
    %c0_2 = arith.constant 0 : index
    %c0_3 = arith.constant 0 : index
    %2 = vector.load %arg1[%c0_2, %c0_3] : memref<8x32xf32, #tpu.memory_space<vmem>>, vector<8x32xf32>
    %cst = arith.constant dense<0.000000e+00> : vector<8xf32>
    %3 = vector.multi_reduction <add>, %2, %cst [1] : vector<8x32xf32> to vector<8xf32>
    %4 = vector.shape_cast %3 : vector<8xf32> to vector<8x1xf32>
    %cst_4 = arith.constant 3.200000e+01 : f32
    %5 = vector.broadcast %cst_4 : f32 to vector<8x1xf32>
    %6 = arith.divf %4, %5 : vector<8x1xf32>
    %7 = vector.broadcast %6 : vector<8x1xf32> to vector<8x32xf32>
    %8 = arith.subf %2, %7 : vector<8x32xf32>
    %9 = arith.mulf %8, %8 : vector<8x32xf32>
    %cst_5 = arith.constant dense<0.000000e+00> : vector<8xf32>
    %10 = vector.multi_reduction <add>, %9, %cst_5 [1] : vector<8x32xf32> to vector<8xf32>
    %11 = vector.shape_cast %10 : vector<8xf32> to vector<8x1xf32>
    %cst_6 = arith.constant 3.200000e+01 : f32
    %12 = vector.broadcast %cst_6 : f32 to vector<8x1xf32>
    %13 = arith.divf %11, %12 : vector<8x1xf32>
    %cst_7 = arith.constant 9.99999996E-13 : f32
    %14 = vector.broadcast %cst_7 : f32 to vector<8x1xf32>
    %15 = arith.addf %13, %14 : vector<8x1xf32>
    %16 = math.rsqrt %15 : vector<8x1xf32>
    %17 = vector.broadcast %16 : vector<8x1xf32> to vector<8x32xf32>
    %18 = arith.mulf %8, %17 : vector<8x32xf32>
    %c0_8 = arith.constant 0 : index
    %c0_9 = arith.constant 0 : index
    %19 = vector.load %arg3[%c0_8, %c0_9] : memref<1x32xf32, #tpu.memory_space<vmem>>, vector<1x32xf32>
    %20 = vector.broadcast %19 : vector<1x32xf32> to vector<8x32xf32>
    %21 = arith.mulf %18, %20 : vector<8x32xf32>
    %c0_10 = arith.constant 0 : index
    %c0_11 = arith.constant 0 : index
    %22 = vector.load %arg4[%c0_10, %c0_11] : memref<1x32xf32, #tpu.memory_space<vmem>>, vector<1x32xf32>
    %23 = vector.broadcast %22 : vector<1x32xf32> to vector<8x32xf32>
    %24 = arith.addf %21, %23 : vector<8x32xf32>
    %25 = arith.truncf %24 : vector<8x32xf32> to vector<8x32xbf16>
    %c0_12 = arith.constant 0 : index
    %c0_13 = arith.constant 0 : index
    %26 = vector.load %arg5[%c0_12, %c0_13] : memref<32x96xbf16, #tpu.memory_space<vmem>>, vector<32x96xbf16>
    %cst_14 = arith.constant dense<0.000000e+00> : vector<8x96xf32>
    %27 = tpu.matmul %25, %26, %cst_14 {dimension_numbers = #tpu.dot_dimension_numbers<[1], [0], [0], [1], [0, 0, 1, 1], [], []>} : vector<8x32xbf16>, vector<32x96xbf16>, vector<8x96xf32> -> vector<8x96xf32>
    %c0_15 = arith.constant 0 : index
    %c0_16 = arith.constant 0 : index
    %28 = vector.load %arg6[%c0_15, %c0_16] : memref<1x96xf32, #tpu.memory_space<vmem>>, vector<1x96xf32>
    %29 = vector.broadcast %28 : vector<1x96xf32> to vector<8x96xf32>
    %30 = arith.addf %27, %29 : vector<8x96xf32>
    %31 = vector.extract_strided_slice %30 {offsets = [0, 0], sizes = [8, 32], strides = [1, 1]} : vector<8x96xf32> to vector<8x32xf32>
    %cst_17 = arith.constant 2.500000e-01 : f32
    %32 = vector.broadcast %cst_17 : f32 to vector<8x32xf32>
    %33 = arith.mulf %31, %32 : vector<8x32xf32>
    %34 = vector.extract_strided_slice %30 {offsets = [0, 32], sizes = [8, 32], strides = [1, 1]} : vector<8x96xf32> to vector<8x32xf32>
    %35 = vector.extract_strided_slice %30 {offsets = [0, 64], sizes = [8, 32], strides = [1, 1]} : vector<8x96xf32> to vector<8x32xf32>
    %c0_18 = arith.constant 0 : index
    %c0_19 = arith.constant 0 : index
    %36 = vector.load %arg7[%c0_18, %c0_19] : memref<32x32xbf16, #tpu.memory_space<vmem>>, vector<32x32xbf16>
    %37 = vector.extract_strided_slice %33 {offsets = [0, 0], sizes = [8, 16], strides = [1, 1]} : vector<8x32xf32> to vector<8x16xf32>
    %38 = arith.truncf %37 : vector<8x16xf32> to vector<8x16xbf16>
    %39 = vector.extract_strided_slice %34 {offsets = [0, 0], sizes = [8, 16], strides = [1, 1]} : vector<8x32xf32> to vector<8x16xf32>
    %40 = arith.truncf %39 : vector<8x16xf32> to vector<8x16xbf16>
    %41 = vector.extract_strided_slice %35 {offsets = [0, 0], sizes = [8, 16], strides = [1, 1]} : vector<8x32xf32> to vector<8x16xf32>
    %42 = arith.truncf %41 : vector<8x16xf32> to vector<8x16xbf16>
    %cst_20 = arith.constant dense<0.000000e+00> : vector<8x8xf32>
    %43 = tpu.matmul %38, %40, %cst_20 {dimension_numbers = #tpu.dot_dimension_numbers<[1], [1], [0], [0], [0, 0, 1, 0], [], []>} : vector<8x16xbf16>, vector<8x16xbf16>, vector<8x8xf32> -> vector<8x8xf32>
    %44 = vector.broadcast %1 : vector<1x8xf32> to vector<8x8xf32>
    %45 = arith.addf %43, %44 : vector<8x8xf32>
    %cst_21 = arith.constant dense<0xFF800000> : vector<8xf32>
    %46 = vector.multi_reduction <maximumf>, %45, %cst_21 [1] : vector<8x8xf32> to vector<8xf32>
    %47 = vector.shape_cast %46 : vector<8xf32> to vector<8x1xf32>
    %48 = vector.broadcast %47 : vector<8x1xf32> to vector<8x8xf32>
    %49 = arith.subf %45, %48 : vector<8x8xf32>
    %50 = math.exp %49 : vector<8x8xf32>
    %cst_22 = arith.constant dense<0.000000e+00> : vector<8xf32>
    %51 = vector.multi_reduction <add>, %50, %cst_22 [1] : vector<8x8xf32> to vector<8xf32>
    %52 = vector.shape_cast %51 : vector<8xf32> to vector<8x1xf32>
    %53 = tpu.reciprocal %52 {approx = true} : vector<8x1xf32> -> vector<8x1xf32>
    %54 = vector.broadcast %53 : vector<8x1xf32> to vector<8x8xf32>
    %55 = arith.mulf %50, %54 : vector<8x8xf32>
    %56 = arith.truncf %55 : vector<8x8xf32> to vector<8x8xbf16>
    %cst_23 = arith.constant dense<0.000000e+00> : vector<8x16xf32>
    %57 = tpu.matmul %56, %42, %cst_23 {dimension_numbers = #tpu.dot_dimension_numbers<[1], [0], [0], [1], [0, 0, 1, 1], [], []>} : vector<8x8xbf16>, vector<8x16xbf16>, vector<8x16xf32> -> vector<8x16xf32>
    %58 = arith.truncf %57 : vector<8x16xf32> to vector<8x16xbf16>
    %59 = vector.extract_strided_slice %36 {offsets = [0, 0], sizes = [16, 32], strides = [1, 1]} : vector<32x32xbf16> to vector<16x32xbf16>
    %cst_24 = arith.constant dense<0.000000e+00> : vector<8x32xf32>
    %60 = tpu.matmul %58, %59, %cst_24 {dimension_numbers = #tpu.dot_dimension_numbers<[1], [0], [0], [1], [0, 0, 1, 1], [], []>} : vector<8x16xbf16>, vector<16x32xbf16>, vector<8x32xf32> -> vector<8x32xf32>
    %61 = vector.extract_strided_slice %33 {offsets = [0, 16], sizes = [8, 16], strides = [1, 1]} : vector<8x32xf32> to vector<8x16xf32>
    %62 = arith.truncf %61 : vector<8x16xf32> to vector<8x16xbf16>
    %63 = vector.extract_strided_slice %34 {offsets = [0, 16], sizes = [8, 16], strides = [1, 1]} : vector<8x32xf32> to vector<8x16xf32>
    %64 = arith.truncf %63 : vector<8x16xf32> to vector<8x16xbf16>
    %65 = vector.extract_strided_slice %35 {offsets = [0, 16], sizes = [8, 16], strides = [1, 1]} : vector<8x32xf32> to vector<8x16xf32>
    %66 = arith.truncf %65 : vector<8x16xf32> to vector<8x16xbf16>
    %cst_25 = arith.constant dense<0.000000e+00> : vector<8x8xf32>
    %67 = tpu.matmul %62, %64, %cst_25 {dimension_numbers = #tpu.dot_dimension_numbers<[1], [1], [0], [0], [0, 0, 1, 0], [], []>} : vector<8x16xbf16>, vector<8x16xbf16>, vector<8x8xf32> -> vector<8x8xf32>
    %68 = vector.broadcast %1 : vector<1x8xf32> to vector<8x8xf32>
    %69 = arith.addf %67, %68 : vector<8x8xf32>
    %cst_26 = arith.constant dense<0xFF800000> : vector<8xf32>
    %70 = vector.multi_reduction <maximumf>, %69, %cst_26 [1] : vector<8x8xf32> to vector<8xf32>
    %71 = vector.shape_cast %70 : vector<8xf32> to vector<8x1xf32>
    %72 = vector.broadcast %71 : vector<8x1xf32> to vector<8x8xf32>
    %73 = arith.subf %69, %72 : vector<8x8xf32>
    %74 = math.exp %73 : vector<8x8xf32>
    %cst_27 = arith.constant dense<0.000000e+00> : vector<8xf32>
    %75 = vector.multi_reduction <add>, %74, %cst_27 [1] : vector<8x8xf32> to vector<8xf32>
    %76 = vector.shape_cast %75 : vector<8xf32> to vector<8x1xf32>
    %77 = tpu.reciprocal %76 {approx = true} : vector<8x1xf32> -> vector<8x1xf32>
    %78 = vector.broadcast %77 : vector<8x1xf32> to vector<8x8xf32>
    %79 = arith.mulf %74, %78 : vector<8x8xf32>
    %80 = arith.truncf %79 : vector<8x8xf32> to vector<8x8xbf16>
    %cst_28 = arith.constant dense<0.000000e+00> : vector<8x16xf32>
    %81 = tpu.matmul %80, %66, %cst_28 {dimension_numbers = #tpu.dot_dimension_numbers<[1], [0], [0], [1], [0, 0, 1, 1], [], []>} : vector<8x8xbf16>, vector<8x16xbf16>, vector<8x16xf32> -> vector<8x16xf32>
    %82 = arith.truncf %81 : vector<8x16xf32> to vector<8x16xbf16>
    %83 = vector.extract_strided_slice %36 {offsets = [16, 0], sizes = [16, 32], strides = [1, 1]} : vector<32x32xbf16> to vector<16x32xbf16>
    %cst_29 = arith.constant dense<0.000000e+00> : vector<8x32xf32>
    %84 = tpu.matmul %82, %83, %cst_29 {dimension_numbers = #tpu.dot_dimension_numbers<[1], [0], [0], [1], [0, 0, 1, 1], [], []>} : vector<8x16xbf16>, vector<16x32xbf16>, vector<8x32xf32> -> vector<8x32xf32>
    %85 = arith.addf %60, %84 : vector<8x32xf32>
    %c0_30 = arith.constant 0 : index
    %c0_31 = arith.constant 0 : index
    %86 = vector.load %arg8[%c0_30, %c0_31] : memref<1x32xf32, #tpu.memory_space<vmem>>, vector<1x32xf32>
    %87 = vector.broadcast %86 : vector<1x32xf32> to vector<8x32xf32>
    %88 = arith.addf %85, %87 : vector<8x32xf32>
    %89 = arith.addf %88, %24 : vector<8x32xf32>
    %cst_32 = arith.constant dense<0.000000e+00> : vector<8xf32>
    %90 = vector.multi_reduction <add>, %89, %cst_32 [1] : vector<8x32xf32> to vector<8xf32>
    %91 = vector.shape_cast %90 : vector<8xf32> to vector<8x1xf32>
    %cst_33 = arith.constant 3.200000e+01 : f32
    %92 = vector.broadcast %cst_33 : f32 to vector<8x1xf32>
    %93 = arith.divf %91, %92 : vector<8x1xf32>
    %94 = vector.broadcast %93 : vector<8x1xf32> to vector<8x32xf32>
    %95 = arith.subf %89, %94 : vector<8x32xf32>
    %96 = arith.mulf %95, %95 : vector<8x32xf32>
    %cst_34 = arith.constant dense<0.000000e+00> : vector<8xf32>
    %97 = vector.multi_reduction <add>, %96, %cst_34 [1] : vector<8x32xf32> to vector<8xf32>
    %98 = vector.shape_cast %97 : vector<8xf32> to vector<8x1xf32>
    %cst_35 = arith.constant 3.200000e+01 : f32
    %99 = vector.broadcast %cst_35 : f32 to vector<8x1xf32>
    %100 = arith.divf %98, %99 : vector<8x1xf32>
    %cst_36 = arith.constant 9.99999996E-13 : f32
    %101 = vector.broadcast %cst_36 : f32 to vector<8x1xf32>
    %102 = arith.addf %100, %101 : vector<8x1xf32>
    %103 = math.rsqrt %102 : vector<8x1xf32>
    %104 = vector.broadcast %103 : vector<8x1xf32> to vector<8x32xf32>
    %105 = arith.mulf %95, %104 : vector<8x32xf32>
    %c0_37 = arith.constant 0 : index
    %c0_38 = arith.constant 0 : index
    %106 = vector.load %arg9[%c0_37, %c0_38] : memref<1x32xf32, #tpu.memory_space<vmem>>, vector<1x32xf32>
    %107 = vector.broadcast %106 : vector<1x32xf32> to vector<8x32xf32>
    %108 = arith.mulf %105, %107 : vector<8x32xf32>
    %c0_39 = arith.constant 0 : index
    %c0_40 = arith.constant 0 : index
    %109 = vector.load %arg10[%c0_39, %c0_40] : memref<1x32xf32, #tpu.memory_space<vmem>>, vector<1x32xf32>
    %110 = vector.broadcast %109 : vector<1x32xf32> to vector<8x32xf32>
    %111 = arith.addf %108, %110 : vector<8x32xf32>
    %112 = arith.truncf %111 : vector<8x32xf32> to vector<8x32xbf16>
    %c0_41 = arith.constant 0 : index
    %c0_42 = arith.constant 0 : index
    %113 = vector.load %arg11[%c0_41, %c0_42] : memref<32x64xbf16, #tpu.memory_space<vmem>>, vector<32x64xbf16>
    %cst_43 = arith.constant dense<0.000000e+00> : vector<8x64xf32>
    %114 = tpu.matmul %112, %113, %cst_43 {dimension_numbers = #tpu.dot_dimension_numbers<[1], [0], [0], [1], [0, 0, 1, 1], [], []>} : vector<8x32xbf16>, vector<32x64xbf16>, vector<8x64xf32> -> vector<8x64xf32>
    %c0_44 = arith.constant 0 : index
    %c0_45 = arith.constant 0 : index
    %115 = vector.load %arg12[%c0_44, %c0_45] : memref<1x64xf32, #tpu.memory_space<vmem>>, vector<1x64xf32>
    %116 = vector.broadcast %115 : vector<1x64xf32> to vector<8x64xf32>
    %117 = arith.addf %114, %116 : vector<8x64xf32>
    %cst_46 = arith.constant 5.000000e-01 : f32
    %118 = vector.broadcast %cst_46 : f32 to vector<8x64xf32>
    %119 = arith.mulf %118, %117 : vector<8x64xf32>
    %cst_47 = arith.constant 4.471500e-02 : f32
    %120 = vector.broadcast %cst_47 : f32 to vector<8x64xf32>
    %121 = arith.mulf %120, %117 : vector<8x64xf32>
    %122 = arith.mulf %121, %117 : vector<8x64xf32>
    %123 = arith.mulf %122, %117 : vector<8x64xf32>
    %124 = arith.addf %117, %123 : vector<8x64xf32>
    %cst_48 = arith.constant 0.797884583 : f32
    %125 = vector.broadcast %cst_48 : f32 to vector<8x64xf32>
    %126 = arith.mulf %125, %124 : vector<8x64xf32>
    %127 = math.tanh %126 : vector<8x64xf32>
    %cst_49 = arith.constant 1.000000e+00 : f32
    %128 = vector.broadcast %cst_49 : f32 to vector<8x64xf32>
    %129 = arith.addf %128, %127 : vector<8x64xf32>
    %130 = arith.mulf %119, %129 : vector<8x64xf32>
    %131 = arith.truncf %130 : vector<8x64xf32> to vector<8x64xbf16>
    %c0_50 = arith.constant 0 : index
    %c0_51 = arith.constant 0 : index
    %132 = vector.load %arg13[%c0_50, %c0_51] : memref<64x32xbf16, #tpu.memory_space<vmem>>, vector<64x32xbf16>
    %cst_52 = arith.constant dense<0.000000e+00> : vector<8x32xf32>
    %133 = tpu.matmul %131, %132, %cst_52 {dimension_numbers = #tpu.dot_dimension_numbers<[1], [0], [0], [1], [0, 0, 1, 1], [], []>} : vector<8x64xbf16>, vector<64x32xbf16>, vector<8x32xf32> -> vector<8x32xf32>
    %c0_53 = arith.constant 0 : index
    %c0_54 = arith.constant 0 : index
    %134 = vector.load %arg14[%c0_53, %c0_54] : memref<1x32xf32, #tpu.memory_space<vmem>>, vector<1x32xf32>
    %135 = vector.broadcast %134 : vector<1x32xf32> to vector<8x32xf32>
    %136 = arith.addf %133, %135 : vector<8x32xf32>
    %137 = arith.addf %136, %111 : vector<8x32xf32>
    %cst_55 = arith.constant dense<0.000000e+00> : vector<8xf32>
    %138 = vector.multi_reduction <add>, %137, %cst_55 [1] : vector<8x32xf32> to vector<8xf32>
    %139 = vector.shape_cast %138 : vector<8xf32> to vector<8x1xf32>
    %cst_56 = arith.constant 3.200000e+01 : f32
    %140 = vector.broadcast %cst_56 : f32 to vector<8x1xf32>
    %141 = arith.divf %139, %140 : vector<8x1xf32>
    %142 = vector.broadcast %141 : vector<8x1xf32> to vector<8x32xf32>
    %143 = arith.subf %137, %142 : vector<8x32xf32>
    %144 = arith.mulf %143, %143 : vector<8x32xf32>
    %cst_57 = arith.constant dense<0.000000e+00> : vector<8xf32>
    %145 = vector.multi_reduction <add>, %144, %cst_57 [1] : vector<8x32xf32> to vector<8xf32>
    %146 = vector.shape_cast %145 : vector<8xf32> to vector<8x1xf32>
    %cst_58 = arith.constant 3.200000e+01 : f32
    %147 = vector.broadcast %cst_58 : f32 to vector<8x1xf32>
    %148 = arith.divf %146, %147 : vector<8x1xf32>
    %cst_59 = arith.constant 9.99999996E-13 : f32
    %149 = vector.broadcast %cst_59 : f32 to vector<8x1xf32>
    %150 = arith.addf %148, %149 : vector<8x1xf32>
    %151 = math.rsqrt %150 : vector<8x1xf32>
    %152 = vector.broadcast %151 : vector<8x1xf32> to vector<8x32xf32>
    %153 = arith.mulf %143, %152 : vector<8x32xf32>
    %c0_60 = arith.constant 0 : index
    %c0_61 = arith.constant 0 : index
    %154 = vector.load %arg15[%c0_60, %c0_61] : memref<1x32xf32, #tpu.memory_space<vmem>>, vector<1x32xf32>
    %155 = vector.broadcast %154 : vector<1x32xf32> to vector<8x32xf32>
    %156 = arith.mulf %153, %155 : vector<8x32xf32>
    %c0_62 = arith.constant 0 : index
    %c0_63 = arith.constant 0 : index
    %157 = vector.load %arg16[%c0_62, %c0_63] : memref<1x32xf32, #tpu.memory_space<vmem>>, vector<1x32xf32>
    %158 = vector.broadcast %157 : vector<1x32xf32> to vector<8x32xf32>
    %159 = arith.addf %156, %158 : vector<8x32xf32>
    %160 = arith.truncf %159 : vector<8x32xf32> to vector<8x32xbf16>
    %c0_64 = arith.constant 0 : index
    %c0_65 = arith.constant 0 : index
    %161 = vector.load %arg17[%c0_64, %c0_65] : memref<32x96xbf16, #tpu.memory_space<vmem>>, vector<32x96xbf16>
    %cst_66 = arith.constant dense<0.000000e+00> : vector<8x96xf32>
    %162 = tpu.matmul %160, %161, %cst_66 {dimension_numbers = #tpu.dot_dimension_numbers<[1], [0], [0], [1], [0, 0, 1, 1], [], []>} : vector<8x32xbf16>, vector<32x96xbf16>, vector<8x96xf32> -> vector<8x96xf32>
    %c0_67 = arith.constant 0 : index
    %c0_68 = arith.constant 0 : index
    %163 = vector.load %arg18[%c0_67, %c0_68] : memref<1x96xf32, #tpu.memory_space<vmem>>, vector<1x96xf32>
    %164 = vector.broadcast %163 : vector<1x96xf32> to vector<8x96xf32>
    %165 = arith.addf %162, %164 : vector<8x96xf32>
    %166 = vector.extract_strided_slice %165 {offsets = [0, 0], sizes = [8, 32], strides = [1, 1]} : vector<8x96xf32> to vector<8x32xf32>
    %cst_69 = arith.constant 2.500000e-01 : f32
    %167 = vector.broadcast %cst_69 : f32 to vector<8x32xf32>
    %168 = arith.mulf %166, %167 : vector<8x32xf32>
    %169 = vector.extract_strided_slice %165 {offsets = [0, 32], sizes = [8, 32], strides = [1, 1]} : vector<8x96xf32> to vector<8x32xf32>
    %170 = vector.extract_strided_slice %165 {offsets = [0, 64], sizes = [8, 32], strides = [1, 1]} : vector<8x96xf32> to vector<8x32xf32>
    %c0_70 = arith.constant 0 : index
    %c0_71 = arith.constant 0 : index
    %171 = vector.load %arg19[%c0_70, %c0_71] : memref<32x32xbf16, #tpu.memory_space<vmem>>, vector<32x32xbf16>
    %172 = vector.extract_strided_slice %168 {offsets = [0, 0], sizes = [8, 16], strides = [1, 1]} : vector<8x32xf32> to vector<8x16xf32>
    %173 = arith.truncf %172 : vector<8x16xf32> to vector<8x16xbf16>
    %174 = vector.extract_strided_slice %169 {offsets = [0, 0], sizes = [8, 16], strides = [1, 1]} : vector<8x32xf32> to vector<8x16xf32>
    %175 = arith.truncf %174 : vector<8x16xf32> to vector<8x16xbf16>
    %176 = vector.extract_strided_slice %170 {offsets = [0, 0], sizes = [8, 16], strides = [1, 1]} : vector<8x32xf32> to vector<8x16xf32>
    %177 = arith.truncf %176 : vector<8x16xf32> to vector<8x16xbf16>
    %cst_72 = arith.constant dense<0.000000e+00> : vector<8x8xf32>
    %178 = tpu.matmul %173, %175, %cst_72 {dimension_numbers = #tpu.dot_dimension_numbers<[1], [1], [0], [0], [0, 0, 1, 0], [], []>} : vector<8x16xbf16>, vector<8x16xbf16>, vector<8x8xf32> -> vector<8x8xf32>
    %179 = vector.broadcast %1 : vector<1x8xf32> to vector<8x8xf32>
    %180 = arith.addf %178, %179 : vector<8x8xf32>
    %cst_73 = arith.constant dense<0xFF800000> : vector<8xf32>
    %181 = vector.multi_reduction <maximumf>, %180, %cst_73 [1] : vector<8x8xf32> to vector<8xf32>
    %182 = vector.shape_cast %181 : vector<8xf32> to vector<8x1xf32>
    %183 = vector.broadcast %182 : vector<8x1xf32> to vector<8x8xf32>
    %184 = arith.subf %180, %183 : vector<8x8xf32>
    %185 = math.exp %184 : vector<8x8xf32>
    %cst_74 = arith.constant dense<0.000000e+00> : vector<8xf32>
    %186 = vector.multi_reduction <add>, %185, %cst_74 [1] : vector<8x8xf32> to vector<8xf32>
    %187 = vector.shape_cast %186 : vector<8xf32> to vector<8x1xf32>
    %188 = tpu.reciprocal %187 {approx = true} : vector<8x1xf32> -> vector<8x1xf32>
    %189 = vector.broadcast %188 : vector<8x1xf32> to vector<8x8xf32>
    %190 = arith.mulf %185, %189 : vector<8x8xf32>
    %191 = arith.truncf %190 : vector<8x8xf32> to vector<8x8xbf16>
    %cst_75 = arith.constant dense<0.000000e+00> : vector<8x16xf32>
    %192 = tpu.matmul %191, %177, %cst_75 {dimension_numbers = #tpu.dot_dimension_numbers<[1], [0], [0], [1], [0, 0, 1, 1], [], []>} : vector<8x8xbf16>, vector<8x16xbf16>, vector<8x16xf32> -> vector<8x16xf32>
    %193 = arith.truncf %192 : vector<8x16xf32> to vector<8x16xbf16>
    %194 = vector.extract_strided_slice %171 {offsets = [0, 0], sizes = [16, 32], strides = [1, 1]} : vector<32x32xbf16> to vector<16x32xbf16>
    %cst_76 = arith.constant dense<0.000000e+00> : vector<8x32xf32>
    %195 = tpu.matmul %193, %194, %cst_76 {dimension_numbers = #tpu.dot_dimension_numbers<[1], [0], [0], [1], [0, 0, 1, 1], [], []>} : vector<8x16xbf16>, vector<16x32xbf16>, vector<8x32xf32> -> vector<8x32xf32>
    %196 = vector.extract_strided_slice %168 {offsets = [0, 16], sizes = [8, 16], strides = [1, 1]} : vector<8x32xf32> to vector<8x16xf32>
    %197 = arith.truncf %196 : vector<8x16xf32> to vector<8x16xbf16>
    %198 = vector.extract_strided_slice %169 {offsets = [0, 16], sizes = [8, 16], strides = [1, 1]} : vector<8x32xf32> to vector<8x16xf32>
    %199 = arith.truncf %198 : vector<8x16xf32> to vector<8x16xbf16>
    %200 = vector.extract_strided_slice %170 {offsets = [0, 16], sizes = [8, 16], strides = [1, 1]} : vector<8x32xf32> to vector<8x16xf32>
    %201 = arith.truncf %200 : vector<8x16xf32> to vector<8x16xbf16>
    %cst_77 = arith.constant dense<0.000000e+00> : vector<8x8xf32>
    %202 = tpu.matmul %197, %199, %cst_77 {dimension_numbers = #tpu.dot_dimension_numbers<[1], [1], [0], [0], [0, 0, 1, 0], [], []>} : vector<8x16xbf16>, vector<8x16xbf16>, vector<8x8xf32> -> vector<8x8xf32>
    %203 = vector.broadcast %1 : vector<1x8xf32> to vector<8x8xf32>
    %204 = arith.addf %202, %203 : vector<8x8xf32>
    %cst_78 = arith.constant dense<0xFF800000> : vector<8xf32>
    %205 = vector.multi_reduction <maximumf>, %204, %cst_78 [1] : vector<8x8xf32> to vector<8xf32>
    %206 = vector.shape_cast %205 : vector<8xf32> to vector<8x1xf32>
    %207 = vector.broadcast %206 : vector<8x1xf32> to vector<8x8xf32>
    %208 = arith.subf %204, %207 : vector<8x8xf32>
    %209 = math.exp %208 : vector<8x8xf32>
    %cst_79 = arith.constant dense<0.000000e+00> : vector<8xf32>
    %210 = vector.multi_reduction <add>, %209, %cst_79 [1] : vector<8x8xf32> to vector<8xf32>
    %211 = vector.shape_cast %210 : vector<8xf32> to vector<8x1xf32>
    %212 = tpu.reciprocal %211 {approx = true} : vector<8x1xf32> -> vector<8x1xf32>
    %213 = vector.broadcast %212 : vector<8x1xf32> to vector<8x8xf32>
    %214 = arith.mulf %209, %213 : vector<8x8xf32>
    %215 = arith.truncf %214 : vector<8x8xf32> to vector<8x8xbf16>
    %cst_80 = arith.constant dense<0.000000e+00> : vector<8x16xf32>
    %216 = tpu.matmul %215, %201, %cst_80 {dimension_numbers = #tpu.dot_dimension_numbers<[1], [0], [0], [1], [0, 0, 1, 1], [], []>} : vector<8x8xbf16>, vector<8x16xbf16>, vector<8x16xf32> -> vector<8x16xf32>
    %217 = arith.truncf %216 : vector<8x16xf32> to vector<8x16xbf16>
    %218 = vector.extract_strided_slice %171 {offsets = [16, 0], sizes = [16, 32], strides = [1, 1]} : vector<32x32xbf16> to vector<16x32xbf16>
    %cst_81 = arith.constant dense<0.000000e+00> : vector<8x32xf32>
    %219 = tpu.matmul %217, %218, %cst_81 {dimension_numbers = #tpu.dot_dimension_numbers<[1], [0], [0], [1], [0, 0, 1, 1], [], []>} : vector<8x16xbf16>, vector<16x32xbf16>, vector<8x32xf32> -> vector<8x32xf32>
    %220 = arith.addf %195, %219 : vector<8x32xf32>
    %c0_82 = arith.constant 0 : index
    %c0_83 = arith.constant 0 : index
    %221 = vector.load %arg20[%c0_82, %c0_83] : memref<1x32xf32, #tpu.memory_space<vmem>>, vector<1x32xf32>
    %222 = vector.broadcast %221 : vector<1x32xf32> to vector<8x32xf32>
    %223 = arith.addf %220, %222 : vector<8x32xf32>
    %224 = arith.addf %223, %159 : vector<8x32xf32>
    %cst_84 = arith.constant dense<0.000000e+00> : vector<8xf32>
    %225 = vector.multi_reduction <add>, %224, %cst_84 [1] : vector<8x32xf32> to vector<8xf32>
    %226 = vector.shape_cast %225 : vector<8xf32> to vector<8x1xf32>
    %cst_85 = arith.constant 3.200000e+01 : f32
    %227 = vector.broadcast %cst_85 : f32 to vector<8x1xf32>
    %228 = arith.divf %226, %227 : vector<8x1xf32>
    %229 = vector.broadcast %228 : vector<8x1xf32> to vector<8x32xf32>
    %230 = arith.subf %224, %229 : vector<8x32xf32>
    %231 = arith.mulf %230, %230 : vector<8x32xf32>
    %cst_86 = arith.constant dense<0.000000e+00> : vector<8xf32>
    %232 = vector.multi_reduction <add>, %231, %cst_86 [1] : vector<8x32xf32> to vector<8xf32>
    %233 = vector.shape_cast %232 : vector<8xf32> to vector<8x1xf32>
    %cst_87 = arith.constant 3.200000e+01 : f32
    %234 = vector.broadcast %cst_87 : f32 to vector<8x1xf32>
    %235 = arith.divf %233, %234 : vector<8x1xf32>
    %cst_88 = arith.constant 9.99999996E-13 : f32
    %236 = vector.broadcast %cst_88 : f32 to vector<8x1xf32>
    %237 = arith.addf %235, %236 : vector<8x1xf32>
    %238 = math.rsqrt %237 : vector<8x1xf32>
    %239 = vector.broadcast %238 : vector<8x1xf32> to vector<8x32xf32>
    %240 = arith.mulf %230, %239 : vector<8x32xf32>
    %c0_89 = arith.constant 0 : index
    %c0_90 = arith.constant 0 : index
    %241 = vector.load %arg21[%c0_89, %c0_90] : memref<1x32xf32, #tpu.memory_space<vmem>>, vector<1x32xf32>
    %242 = vector.broadcast %241 : vector<1x32xf32> to vector<8x32xf32>
    %243 = arith.mulf %240, %242 : vector<8x32xf32>
    %c0_91 = arith.constant 0 : index
    %c0_92 = arith.constant 0 : index
    %244 = vector.load %arg22[%c0_91, %c0_92] : memref<1x32xf32, #tpu.memory_space<vmem>>, vector<1x32xf32>
    %245 = vector.broadcast %244 : vector<1x32xf32> to vector<8x32xf32>
    %246 = arith.addf %243, %245 : vector<8x32xf32>
    %247 = arith.truncf %246 : vector<8x32xf32> to vector<8x32xbf16>
    %c0_93 = arith.constant 0 : index
    %c0_94 = arith.constant 0 : index
    %248 = vector.load %arg23[%c0_93, %c0_94] : memref<32x64xbf16, #tpu.memory_space<vmem>>, vector<32x64xbf16>
    %cst_95 = arith.constant dense<0.000000e+00> : vector<8x64xf32>
    %249 = tpu.matmul %247, %248, %cst_95 {dimension_numbers = #tpu.dot_dimension_numbers<[1], [0], [0], [1], [0, 0, 1, 1], [], []>} : vector<8x32xbf16>, vector<32x64xbf16>, vector<8x64xf32> -> vector<8x64xf32>
    %c0_96 = arith.constant 0 : index
    %c0_97 = arith.constant 0 : index
    %250 = vector.load %arg24[%c0_96, %c0_97] : memref<1x64xf32, #tpu.memory_space<vmem>>, vector<1x64xf32>
    %251 = vector.broadcast %250 : vector<1x64xf32> to vector<8x64xf32>
    %252 = arith.addf %249, %251 : vector<8x64xf32>
    %cst_98 = arith.constant 5.000000e-01 : f32
    %253 = vector.broadcast %cst_98 : f32 to vector<8x64xf32>
    %254 = arith.mulf %253, %252 : vector<8x64xf32>
    %cst_99 = arith.constant 4.471500e-02 : f32
    %255 = vector.broadcast %cst_99 : f32 to vector<8x64xf32>
    %256 = arith.mulf %255, %252 : vector<8x64xf32>
    %257 = arith.mulf %256, %252 : vector<8x64xf32>
    %258 = arith.mulf %257, %252 : vector<8x64xf32>
    %259 = arith.addf %252, %258 : vector<8x64xf32>
    %cst_100 = arith.constant 0.797884583 : f32
    %260 = vector.broadcast %cst_100 : f32 to vector<8x64xf32>
    %261 = arith.mulf %260, %259 : vector<8x64xf32>
    %262 = math.tanh %261 : vector<8x64xf32>
    %cst_101 = arith.constant 1.000000e+00 : f32
    %263 = vector.broadcast %cst_101 : f32 to vector<8x64xf32>
    %264 = arith.addf %263, %262 : vector<8x64xf32>
    %265 = arith.mulf %254, %264 : vector<8x64xf32>
    %266 = arith.truncf %265 : vector<8x64xf32> to vector<8x64xbf16>
    %c0_102 = arith.constant 0 : index
    %c0_103 = arith.constant 0 : index
    %267 = vector.load %arg25[%c0_102, %c0_103] : memref<64x32xbf16, #tpu.memory_space<vmem>>, vector<64x32xbf16>
    %cst_104 = arith.constant dense<0.000000e+00> : vector<8x32xf32>
    %268 = tpu.matmul %266, %267, %cst_104 {dimension_numbers = #tpu.dot_dimension_numbers<[1], [0], [0], [1], [0, 0, 1, 1], [], []>} : vector<8x64xbf16>, vector<64x32xbf16>, vector<8x32xf32> -> vector<8x32xf32>
    %c0_105 = arith.constant 0 : index
    %c0_106 = arith.constant 0 : index
    %269 = vector.load %arg26[%c0_105, %c0_106] : memref<1x32xf32, #tpu.memory_space<vmem>>, vector<1x32xf32>
    %270 = vector.broadcast %269 : vector<1x32xf32> to vector<8x32xf32>
    %271 = arith.addf %268, %270 : vector<8x32xf32>
    %272 = arith.addf %271, %246 : vector<8x32xf32>
    %cst_107 = arith.constant dense<0.000000e+00> : vector<8xf32>
    %273 = vector.multi_reduction <add>, %272, %cst_107 [1] : vector<8x32xf32> to vector<8xf32>
    %274 = vector.shape_cast %273 : vector<8xf32> to vector<8x1xf32>
    %cst_108 = arith.constant 3.200000e+01 : f32
    %275 = vector.broadcast %cst_108 : f32 to vector<8x1xf32>
    %276 = arith.divf %274, %275 : vector<8x1xf32>
    %277 = vector.broadcast %276 : vector<8x1xf32> to vector<8x32xf32>
    %278 = arith.subf %272, %277 : vector<8x32xf32>
    %279 = arith.mulf %278, %278 : vector<8x32xf32>
    %cst_109 = arith.constant dense<0.000000e+00> : vector<8xf32>
    %280 = vector.multi_reduction <add>, %279, %cst_109 [1] : vector<8x32xf32> to vector<8xf32>
    %281 = vector.shape_cast %280 : vector<8xf32> to vector<8x1xf32>
    %cst_110 = arith.constant 3.200000e+01 : f32
    %282 = vector.broadcast %cst_110 : f32 to vector<8x1xf32>
    %283 = arith.divf %281, %282 : vector<8x1xf32>
    %cst_111 = arith.constant 9.99999996E-13 : f32
    %284 = vector.broadcast %cst_111 : f32 to vector<8x1xf32>
    %285 = arith.addf %283, %284 : vector<8x1xf32>
    %286 = math.rsqrt %285 : vector<8x1xf32>
    %287 = vector.broadcast %286 : vector<8x1xf32> to vector<8x32xf32>
    %288 = arith.mulf %278, %287 : vector<8x32xf32>
    %c0_112 = arith.constant 0 : index
    %c0_113 = arith.constant 0 : index
    %289 = vector.load %arg27[%c0_112, %c0_113] : memref<1x32xf32, #tpu.memory_space<vmem>>, vector<1x32xf32>
    %290 = vector.broadcast %289 : vector<1x32xf32> to vector<8x32xf32>
    %291 = arith.mulf %288, %290 : vector<8x32xf32>
    %c0_114 = arith.constant 0 : index
    %c0_115 = arith.constant 0 : index
    %292 = vector.load %arg28[%c0_114, %c0_115] : memref<1x32xf32, #tpu.memory_space<vmem>>, vector<1x32xf32>
    %293 = vector.broadcast %292 : vector<1x32xf32> to vector<8x32xf32>
    %294 = arith.addf %291, %293 : vector<8x32xf32>
    %295 = vector.extract_strided_slice %294 {offsets = [0, 0], sizes = [1, 32], strides = [1, 1]} : vector<8x32xf32> to vector<1x32xf32>
    %296 = arith.truncf %295 : vector<1x32xf32> to vector<1x32xbf16>
    %c0_116 = arith.constant 0 : index
    %c0_117 = arith.constant 0 : index
    %297 = vector.load %arg29[%c0_116, %c0_117] : memref<32x32xbf16, #tpu.memory_space<vmem>>, vector<32x32xbf16>
    %cst_118 = arith.constant dense<0.000000e+00> : vector<1x32xf32>
    %298 = tpu.matmul %296, %297, %cst_118 {dimension_numbers = #tpu.dot_dimension_numbers<[1], [0], [0], [1], [0, 0, 1, 1], [], []>} : vector<1x32xbf16>, vector<32x32xbf16>, vector<1x32xf32> -> vector<1x32xf32>
    %c0_119 = arith.constant 0 : index
    %c0_120 = arith.constant 0 : index
    %299 = vector.load %arg30[%c0_119, %c0_120] : memref<1x32xf32, #tpu.memory_space<vmem>>, vector<1x32xf32>
    %300 = arith.addf %298, %299 : vector<1x32xf32>
    %cst_121 = arith.constant 0.000000e+00 : f32
    %301 = vector.broadcast %cst_121 : f32 to vector<1x32xf32>
    %302 = arith.maximumf %300, %301 : vector<1x32xf32>
    %303 = arith.truncf %302 : vector<1x32xf32> to vector<1x32xbf16>
    %c0_122 = arith.constant 0 : index
    %c0_123 = arith.constant 0 : index
    %304 = vector.load %arg31[%c0_122, %c0_123] : memref<32x128xbf16, #tpu.memory_space<vmem>>, vector<32x128xbf16>
    %cst_124 = arith.constant dense<0.000000e+00> : vector<1x128xf32>
    %305 = tpu.matmul %303, %304, %cst_124 {dimension_numbers = #tpu.dot_dimension_numbers<[1], [0], [0], [1], [0, 0, 1, 1], [], []>} : vector<1x32xbf16>, vector<32x128xbf16>, vector<1x128xf32> -> vector<1x128xf32>
    %c0_125 = arith.constant 0 : index
    %c0_126 = arith.constant 0 : index
    %306 = vector.load %arg32[%c0_125, %c0_126] : memref<1x128xf32, #tpu.memory_space<vmem>>, vector<1x128xf32>
    %307 = arith.addf %305, %306 : vector<1x128xf32>
    %c0_127 = arith.constant 0 : index
    %c0_128 = arith.constant 0 : index
    %c0_129 = arith.constant 0 : index
    %308 = vector.load %arg33[%c0_127, %c0_128, %c0_129] : memref<1x1x128xf32, #tpu.memory_space<vmem>>, vector<1x1x128xf32>
    %309 = vector.shape_cast %308 : vector<1x1x128xf32> to vector<1x128xf32>
    %310 = vector.shape_cast %307 : vector<1x128xf32> to vector<1x1x128xf32>
    tpu.vector_store %arg33[%c0_127, %c0_128, %c0_129], %310 {strides = array<i32>} : memref<1x1x128xf32, #tpu.memory_space<vmem>>, vector<1x1x128xf32>,
    return
  }
  func.func @transform_0(%arg0: i32) -> (i32, i32) {
    %c0_i32 = arith.constant 0 : i32
    %c0_i32_0 = arith.constant 0 : i32
    return %arg0, %c0_i32 : i32, i32
  }
  func.func @transform_1(%arg0: i32) -> (i32, i32, i32) {
    %c0_i32 = arith.constant 0 : i32
    %c0_i32_0 = arith.constant 0 : i32
    %c0_i32_1 = arith.constant 0 : i32
    return %arg0, %c0_i32, %c0_i32_0 : i32, i32, i32
  }
  func.func @transform_2(%arg0: i32) -> (i32, i32) {
    %c0_i32 = arith.constant 0 : i32
    %c0_i32_0 = arith.constant 0 : i32
    %c0_i32_1 = arith.constant 0 : i32
    return %c0_i32, %c0_i32_0 : i32, i32
  }
  func.func @transform_3(%arg0: i32) -> (i32, i32) {
    %c0_i32 = arith.constant 0 : i32
    %c0_i32_0 = arith.constant 0 : i32
    %c0_i32_1 = arith.constant 0 : i32
    return %c0_i32, %c0_i32_0 : i32, i32
  }
  func.func @transform_4(%arg0: i32) -> (i32, i32) {
    %c0_i32 = arith.constant 0 : i32
    %c0_i32_0 = arith.constant 0 : i32
    %c0_i32_1 = arith.constant 0 : i32
    return %c0_i32, %c0_i32_0 : i32, i32
  }
  func.func @transform_5(%arg0: i32) -> (i32, i32) {
    %c0_i32 = arith.constant 0 : i32
    %c0_i32_0 = arith.constant 0 : i32
    %c0_i32_1 = arith.constant 0 : i32
    return %c0_i32, %c0_i32_0 : i32, i32
  }
  func.func @transform_6(%arg0: i32) -> (i32, i32) {
    %c0_i32 = arith.constant 0 : i32
    %c0_i32_0 = arith.constant 0 : i32
    %c0_i32_1 = arith.constant 0 : i32
    return %c0_i32, %c0_i32_0 : i32, i32
  }
  func.func @transform_7(%arg0: i32) -> (i32, i32) {
    %c0_i32 = arith.constant 0 : i32
    %c0_i32_0 = arith.constant 0 : i32
    %c0_i32_1 = arith.constant 0 : i32
    return %c0_i32, %c0_i32_0 : i32, i32
  }
  func.func @transform_8(%arg0: i32) -> (i32, i32) {
    %c0_i32 = arith.constant 0 : i32
    %c0_i32_0 = arith.constant 0 : i32
    %c0_i32_1 = arith.constant 0 : i32
    return %c0_i32, %c0_i32_0 : i32, i32
  }
  func.func @transform_9(%arg0: i32) -> (i32, i32) {
    %c0_i32 = arith.constant 0 : i32
    %c0_i32_0 = arith.constant 0 : i32
    %c0_i32_1 = arith.constant 0 : i32
    return %c0_i32, %c0_i32_0 : i32, i32
  }
  func.func @transform_10(%arg0: i32) -> (i32, i32) {
    %c0_i32 = arith.constant 0 : i32
    %c0_i32_0 = arith.constant 0 : i32
    %c0_i32_1 = arith.constant 0 : i32
    return %c0_i32, %c0_i32_0 : i32, i32
  }
  func.func @transform_11(%arg0: i32) -> (i32, i32) {
    %c0_i32 = arith.constant 0 : i32
    %c0_i32_0 = arith.constant 0 : i32
    %c0_i32_1 = arith.constant 0 : i32
    return %c0_i32, %c0_i32_0 : i32, i32
  }
  func.func @transform_12(%arg0: i32) -> (i32, i32) {
    %c0_i32 = arith.constant 0 : i32
    %c0_i32_0 = arith.constant 0 : i32
    %c0_i32_1 = arith.constant 0 : i32
    return %c0_i32, %c0_i32_0 : i32, i32
  }
  func.func @transform_13(%arg0: i32) -> (i32, i32) {
    %c0_i32 = arith.constant 0 : i32
    %c0_i32_0 = arith.constant 0 : i32
    %c0_i32_1 = arith.constant 0 : i32
    return %c0_i32, %c0_i32_0 : i32, i32
  }
  func.func @transform_14(%arg0: i32) -> (i32, i32) {
    %c0_i32 = arith.constant 0 : i32
    %c0_i32_0 = arith.constant 0 : i32
    %c0_i32_1 = arith.constant 0 : i32
    return %c0_i32, %c0_i32_0 : i32, i32
  }
  func.func @transform_15(%arg0: i32) -> (i32, i32) {
    %c0_i32 = arith.constant 0 : i32
    %c0_i32_0 = arith.constant 0 : i32
    %c0_i32_1 = arith.constant 0 : i32
    return %c0_i32, %c0_i32_0 : i32, i32
  }
  func.func @transform_16(%arg0: i32) -> (i32, i32) {
    %c0_i32 = arith.constant 0 : i32
    %c0_i32_0 = arith.constant 0 : i32
    %c0_i32_1 = arith.constant 0 : i32
    return %c0_i32, %c0_i32_0 : i32, i32
  }
  func.func @transform_17(%arg0: i32) -> (i32, i32) {
    %c0_i32 = arith.constant 0 : i32
    %c0_i32_0 = arith.constant 0 : i32
    %c0_i32_1 = arith.constant 0 : i32
    return %c0_i32, %c0_i32_0 : i32, i32
  }
  func.func @transform_18(%arg0: i32) -> (i32, i32) {
    %c0_i32 = arith.constant 0 : i32
    %c0_i32_0 = arith.constant 0 : i32
    %c0_i32_1 = arith.constant 0 : i32
    return %c0_i32, %c0_i32_0 : i32, i32
  }
  func.func @transform_19(%arg0: i32) -> (i32, i32) {
    %c0_i32 = arith.constant 0 : i32
    %c0_i32_0 = arith.constant 0 : i32
    %c0_i32_1 = arith.constant 0 : i32
    return %c0_i32, %c0_i32_0 : i32, i32
  }
  func.func @transform_20(%arg0: i32) -> (i32, i32) {
    %c0_i32 = arith.constant 0 : i32
    %c0_i32_0 = arith.constant 0 : i32
    %c0_i32_1 = arith.constant 0 : i32
    return %c0_i32, %c0_i32_0 : i32, i32
  }
  func.func @transform_21(%arg0: i32) -> (i32, i32) {
    %c0_i32 = arith.constant 0 : i32
    %c0_i32_0 = arith.constant 0 : i32
    %c0_i32_1 = arith.constant 0 : i32
    return %c0_i32, %c0_i32_0 : i32, i32
  }
  func.func @transform_22(%arg0: i32) -> (i32, i32) {
    %c0_i32 = arith.constant 0 : i32
    %c0_i32_0 = arith.constant 0 : i32
    %c0_i32_1 = arith.constant 0 : i32
    return %c0_i32, %c0_i32_0 : i32, i32
  }
  func.func @transform_23(%arg0: i32) -> (i32, i32) {
    %c0_i32 = arith.constant 0 : i32
    %c0_i32_0 = arith.constant 0 : i32
    %c0_i32_1 = arith.constant 0 : i32
    return %c0_i32, %c0_i32_0 : i32, i32
  }
  func.func @transform_24(%arg0: i32) -> (i32, i32) {
    %c0_i32 = arith.constant 0 : i32
    %c0_i32_0 = arith.constant 0 : i32
    %c0_i32_1 = arith.constant 0 : i32
    return %c0_i32, %c0_i32_0 : i32, i32
  }
  func.func @transform_25(%arg0: i32) -> (i32, i32) {
    %c0_i32 = arith.constant 0 : i32
    %c0_i32_0 = arith.constant 0 : i32
    %c0_i32_1 = arith.constant 0 : i32
    return %c0_i32, %c0_i32_0 : i32, i32
  }
  func.func @transform_26(%arg0: i32) -> (i32, i32) {
    %c0_i32 = arith.constant 0 : i32
    %c0_i32_0 = arith.constant 0 : i32
    %c0_i32_1 = arith.constant 0 : i32
    return %c0_i32, %c0_i32_0 : i32, i32
  }
  func.func @transform_27(%arg0: i32) -> (i32, i32) {
    %c0_i32 = arith.constant 0 : i32
    %c0_i32_0 = arith.constant 0 : i32
    %c0_i32_1 = arith.constant 0 : i32
    return %c0_i32, %c0_i32_0 : i32, i32
  }
  func.func @transform_28(%arg0: i32) -> (i32, i32) {
    %c0_i32 = arith.constant 0 : i32
    %c0_i32_0 = arith.constant 0 : i32
    %c0_i32_1 = arith.constant 0 : i32
    return %c0_i32, %c0_i32_0 : i32, i32
  }
  func.func @transform_29(%arg0: i32) -> (i32, i32) {
    %c0_i32 = arith.constant 0 : i32
    %c0_i32_0 = arith.constant 0 : i32
    %c0_i32_1 = arith.constant 0 : i32
    return %c0_i32, %c0_i32_0 : i32, i32
  }
  func.func @transform_30(%arg0: i32) -> (i32, i32) {
    %c0_i32 = arith.constant 0 : i32
    %c0_i32_0 = arith.constant 0 : i32
    %c0_i32_1 = arith.constant 0 : i32
    return %c0_i32, %c0_i32_0 : i32, i32
  }
  func.func @transform_31(%arg0: i32) -> (i32, i32) {
    %c0_i32 = arith.constant 0 : i32
    %c0_i32_0 = arith.constant 0 : i32
    %c0_i32_1 = arith.constant 0 : i32
    return %c0_i32, %c0_i32_0 : i32, i32
  }
  func.func @transform_32(%arg0: i32) -> (i32, i32, i32) {
    %c0_i32 = arith.constant 0 : i32
    %c0_i32_0 = arith.constant 0 : i32
    %c0_i32_1 = arith.constant 0 : i32
    return %arg0, %c0_i32, %c0_i32_0 : i32, i32, i32
  }
}

</mosaic_0001>

<llo_original>
// kernel: text_predictor_forward.1
$region0: #{text_predictor_forward.1}
  #allocation0 [shape = 'u32[]', space=smem, size = 0x4, offset = 0x4, fixed_abs, tag = 'smem constant byte address 0x4 - core index']
  #allocation1 [shape = 'u32[144,128]{1,0:T(1,128)}', space=vmem, size = 0x12000, scoped, tag = 'internal scratch']
  %s0 = inlined_call_operand.smem [shape: u32[33], index: -1, kind: input, shape index: {}]
  %s1 = sld [smem:[%s0]]
  %s2 = scalar_lea.smem %s0, 1
  %s3 = sld [smem:[%s2]]
  %s4 = scalar_lea.smem %s0, 2
  %s5 = sld [smem:[%s4]]
  %s6 = scalar_lea.smem %s0, 3
  %s7 = sld [smem:[%s6]]
  %s8 = scalar_lea.smem %s0, 4
  %s9 = sld [smem:[%s8]]
  %s10 = scalar_lea.smem %s0, 5
  %s11 = sld [smem:[%s10]]
  %s12 = scalar_lea.smem %s0, 6
  %s13 = sld [smem:[%s12]]
  %s14 = scalar_lea.smem %s0, 7
  %s15 = sld [smem:[%s14]]
  %s16 = scalar_lea.smem %s0, 8
  %s17 = sld [smem:[%s16]]
  %s18 = scalar_lea.smem %s0, 9
  %s19 = sld [smem:[%s18]]
  %s20 = scalar_lea.smem %s0, 10
  %s21 = sld [smem:[%s20]]
  %s22 = scalar_lea.smem %s0, 11
  %s23 = sld [smem:[%s22]]
  %s24 = scalar_lea.smem %s0, 12
  %s25 = sld [smem:[%s24]]
  %s26 = scalar_lea.smem %s0, 13
  %s27 = sld [smem:[%s26]]
  %s28 = scalar_lea.smem %s0, 14
  %s29 = sld [smem:[%s28]]
  %s30 = scalar_lea.smem %s0, 15
  %s31 = sld [smem:[%s30]]
  %s32 = scalar_lea.smem %s0, 16
  %s33 = sld [smem:[%s32]]
  %s34 = scalar_lea.smem %s0, 17
  %s35 = sld [smem:[%s34]]
  %s36 = scalar_lea.smem %s0, 18
  %s37 = sld [smem:[%s36]]
  %s38 = scalar_lea.smem %s0, 19
  %s39 = sld [smem:[%s38]]
  %s40 = scalar_lea.smem %s0, 20
  %s41 = sld [smem:[%s40]]
  %s42 = scalar_lea.smem %s0, 21
  %s43 = sld [smem:[%s42]]
  %s44 = scalar_lea.smem %s0, 22
  %s45 = sld [smem:[%s44]]
  %s46 = scalar_lea.smem %s0, 23
  %s47 = sld [smem:[%s46]]
  %s48 = scalar_lea.smem %s0, 24
  %s49 = sld [smem:[%s48]]
  %s50 = scalar_lea.smem %s0, 25
  %s51 = sld [smem:[%s50]]
  %s52 = scalar_lea.smem %s0, 26
  %s53 = sld [smem:[%s52]]
  %s54 = scalar_lea.smem %s0, 27
  %s55 = sld [smem:[%s54]]
  %s56 = scalar_lea.smem %s0, 28
  %s57 = sld [smem:[%s56]]
  %s58 = scalar_lea.smem %s0, 29
  %s59 = sld [smem:[%s58]]
  %s60 = scalar_lea.smem %s0, 30
  %s61 = sld [smem:[%s60]]
  %s62 = scalar_lea.smem %s0, 31
  %s63 = sld [smem:[%s62]]
  %s64 = scalar_lea.smem %s0, 32
  %s65 = sld [smem:[%s64]]
  %s66 = sld [smem:[#allocation0]]
  $region161: #{text_predictor_forward.1} parent=0
    _
  %s68 = ssub.s32 1, %s66
  %s69 = scalar_select 0, %s68, %s66
  $region1: #{text_predictor_forward.1} parent=0
    #allocation2 [shape = 'u8[1024]{0}', space=vmem, size = 0x400, scoped, tag = 'output window, operand 0']
    #allocation3 [shape = 's32[2]{0}', space=sflag, size = 0x8, scoped, tag = 'scoped memory for text_predictor_forward.1']
    %70 = vsyncpa [#allocation3], 0
    %s71 = scalar_lea.sflag [#allocation3], 1
    %72 = vsyncpa %s71, 0
    loop: start=0, step=1, limit=4
    $region2: #{text_predictor_forward.1} parent=1 // loop_pre_header
      _
    $region3: #{text_predictor_forward.1} parent=1 // loop_header
      %s74 = sphi 0, %s78
      %p75 = scmp.ge.s32.totalorder %s74, 4
      %s84 = sphi 0, %s86
      %s87 = sphi 0, %s84
      %s88 = sphi 0, %s87
      %s104 = sphi 0, %s88
      %s110 = sphi 0, %s112
      %s113 = sphi 0, %s110
      %s114 = sphi 0, %s113
      %s130 = sphi 0, %s114
      %s134 = sphi 0, %s134
      %s136 = sphi 0, %s134
      %s137 = sphi 0, %s136
      %s151 = sphi 0, %s137
      %s155 = sphi 0, %s155
      %s157 = sphi 0, %s155
      %s158 = sphi 0, %s157
      %s172 = sphi 0, %s158
      %s176 = sphi 0, %s176
      %s178 = sphi 0, %s176
      %s179 = sphi 0, %s178
      %s193 = sphi 0, %s179
      %s197 = sphi 0, %s197
      %s199 = sphi 0, %s197
      %s200 = sphi 0, %s199
      %s214 = sphi 0, %s200
      %s218 = sphi 0, %s218
      %s220 = sphi 0, %s218
      %s221 = sphi 0, %s220
      %s235 = sphi 0, %s221
      %s239 = sphi 0, %s239
      %s241 = sphi 0, %s239
      %s242 = sphi 0, %s241
      %s256 = sphi 0, %s242
      %s260 = sphi 0, %s260
      %s262 = sphi 0, %s260
      %s263 = sphi 0, %s262
      %s277 = sphi 0, %s263
      %s281 = sphi 0, %s281
      %s283 = sphi 0, %s281
      %s284 = sphi 0, %s283
      %s298 = sphi 0, %s284
      %s302 = sphi 0, %s302
      %s304 = sphi 0, %s302
      %s305 = sphi 0, %s304
      %s319 = sphi 0, %s305
      %s323 = sphi 0, %s323
      %s325 = sphi 0, %s323
      %s326 = sphi 0, %s325
      %s340 = sphi 0, %s326
      %s344 = sphi 0, %s344
      %s346 = sphi 0, %s344
      %s347 = sphi 0, %s346
      %s361 = sphi 0, %s347
      %s365 = sphi 0, %s365
      %s367 = sphi 0, %s365
      %s368 = sphi 0, %s367
      %s382 = sphi 0, %s368
      %s386 = sphi 0, %s386
      %s388 = sphi 0, %s386
      %s389 = sphi 0, %s388
      %s403 = sphi 0, %s389
      %s407 = sphi 0, %s407
      %s409 = sphi 0, %s407
      %s410 = sphi 0, %s409
      %s424 = sphi 0, %s410
      %s428 = sphi 0, %s428
      %s430 = sphi 0, %s428
      %s431 = sphi 0, %s430
      %s445 = sphi 0, %s431
      %s449 = sphi 0, %s449
      %s451 = sphi 0, %s449
      %s452 = sphi 0, %s451
      %s466 = sphi 0, %s452
      %s470 = sphi 0, %s470
      %s472 = sphi 0, %s470
      %s473 = sphi 0, %s472
      %s487 = sphi 0, %s473
      %s491 = sphi 0, %s491
      %s493 = sphi 0, %s491
      %s494 = sphi 0, %s493
      %s508 = sphi 0, %s494
      %s512 = sphi 0, %s512
      %s514 = sphi 0, %s512
      %s515 = sphi 0, %s514
      %s529 = sphi 0, %s515
      %s533 = sphi 0, %s533
      %s535 = sphi 0, %s533
      %s536 = sphi 0, %s535
      %s550 = sphi 0, %s536
      %s554 = sphi 0, %s554
      %s556 = sphi 0, %s554
      %s557 = sphi 0, %s556
      %s571 = sphi 0, %s557
      %s575 = sphi 0, %s575
      %s577 = sphi 0, %s575
      %s578 = sphi 0, %s577
      %s592 = sphi 0, %s578
      %s596 = sphi 0, %s596
      %s598 = sphi 0, %s596
      %s599 = sphi 0, %s598
      %s613 = sphi 0, %s599
      %s617 = sphi 0, %s617
      %s619 = sphi 0, %s617
      %s620 = sphi 0, %s619
      %s634 = sphi 0, %s620
      %s638 = sphi 0, %s638
      %s640 = sphi 0, %s638
      %s641 = sphi 0, %s640
      %s655 = sphi 0, %s641
      %s659 = sphi 0, %s659
      %s661 = sphi 0, %s659
      %s662 = sphi 0, %s661
      %s676 = sphi 0, %s662
      %s680 = sphi 0, %s680
      %s682 = sphi 0, %s680
      %s683 = sphi 0, %s682
      %s697 = sphi 0, %s683
      %s701 = sphi 0, %s701
      %s703 = sphi 0, %s701
      %s704 = sphi 0, %s703
      %s718 = sphi 0, %s704
      %s722 = sphi 0, %s722
      %s724 = sphi 0, %s722
      %s725 = sphi 0, %s724
      %s739 = sphi 0, %s725
      %s743 = sphi 0, %s743
      %s745 = sphi 0, %s743
      %s746 = sphi 0, %s745
      %s760 = sphi 0, %s746
      %s766 = sphi 0, %s768
      %s769 = sphi 0, %s766
      %s770 = sphi 0, %s769
      %s786 = sphi 0, %s770
    $region4: #{text_predictor_forward.1} parent=1 // loop_header_branch
      %77 = sbr.rel (%p75) target = $region8
    $region5: #{text_predictor_forward.1} parent=1 // loop_body
      %s79 = ssub.s32 %s74, 1
      %s80 = ssub.s32 %s74, 2
      %s81 = sadd.s32 %s74, 1
      %s82 = ssub.s32 %s74, %s81
      %p83 = scmp.eq.s32.totalorder %s82, 0
      %s85 = sadd.s32 %s84, 1
      %s86 = scalar_select %p83, %s84, %s85
      %p89 = pneg %p83
      %p90 = scmp.eq.s32.totalorder %s74, 1
      %p91 = por %p89, %p90
      %p92 = scmp.ne.s32.totalorder %s84, %s87
      %p93 = scmp.eq.s32.totalorder %s74, 0
      %p94 = por %p92, %p93
      %p95 = scmp.ne.s32.totalorder %s84, %s87
      %p96 = scmp.eq.s32.totalorder %s79, 1
      %p97 = por %p95, %p96
      %p98 = scmp.ne.s32.totalorder %s87, %s88
      %p99 = scmp.eq.s32.totalorder %s79, 0
      %p100 = por %p98, %p99
      %p101 = scmp.ne.s32.totalorder %s87, %s88
      %p102 = scmp.eq.s32.totalorder %s80, 1
      %p103 = por %p101, %p102
      %p105 = scmp.ne.s32.totalorder %s88, %s104
      %p106 = scmp.eq.s32.totalorder %s80, 0
      %p107 = por %p105, %p106
      %s108 = ssub.s32 %s74, %s81
      %p109 = scmp.eq.s32.totalorder %s108, 0
      %s111 = sadd.s32 %s110, 1
      %s112 = scalar_select %p109, %s110, %s111
      %p115 = pneg %p109
      %p116 = scmp.eq.s32.totalorder %s74, 1
      %p117 = por %p115, %p116
      %p118 = scmp.ne.s32.totalorder %s110, %s113
      %p119 = scmp.eq.s32.totalorder %s74, 0
      %p120 = por %p118, %p119
      %p121 = scmp.ne.s32.totalorder %s110, %s113
      %p122 = scmp.eq.s32.totalorder %s79, 1
      %p123 = por %p121, %p122
      %p124 = scmp.ne.s32.totalorder %s113, %s114
      %p125 = scmp.eq.s32.totalorder %s79, 0
      %p126 = por %p124, %p125
      %p127 = scmp.ne.s32.totalorder %s113, %s114
      %p128 = scmp.eq.s32.totalorder %s80, 1
      %p129 = por %p127, %p128
      %p131 = scmp.ne.s32.totalorder %s114, %s130
      %p132 = scmp.eq.s32.totalorder %s80, 0
      %p133 = por %p131, %p132
      %s135 = sadd.s32 %s134, 1
      %p138 = scmp.eq.s32.totalorder %s74, 1
      %p139 = scmp.ne.s32.totalorder %s134, %s136
      %p140 = scmp.eq.s32.totalorder %s74, 0
      %p141 = por %p139, %p140
      %p142 = scmp.ne.s32.totalorder %s134, %s136
      %p143 = scmp.eq.s32.totalorder %s79, 1
      %p144 = por %p142, %p143
      %p145 = scmp.ne.s32.totalorder %s136, %s137
      %p146 = scmp.eq.s32.totalorder %s79, 0
      %p147 = por %p145, %p146
      %p148 = scmp.ne.s32.totalorder %s136, %s137
      %p149 = scmp.eq.s32.totalorder %s80, 1
      %p150 = por %p148, %p149
      %p152 = scmp.ne.s32.totalorder %s137, %s151
      %p153 = scmp.eq.s32.totalorder %s80, 0
      %p154 = por %p152, %p153
      %s156 = sadd.s32 %s155, 1
      %p159 = scmp.eq.s32.totalorder %s74, 1
      %p160 = scmp.ne.s32.totalorder %s155, %s157
      %p161 = scmp.eq.s32.totalorder %s74, 0
      %p162 = por %p160, %p161
      %p163 = scmp.ne.s32.totalorder %s155, %s157
      %p164 = scmp.eq.s32.totalorder %s79, 1
      %p165 = por %p163, %p164
      %p166 = scmp.ne.s32.totalorder %s157, %s158
      %p167 = scmp.eq.s32.totalorder %s79, 0
      %p168 = por %p166, %p167
      %p169 = scmp.ne.s32.totalorder %s157, %s158
      %p170 = scmp.eq.s32.totalorder %s80, 1
      %p171 = por %p169, %p170
      %p173 = scmp.ne.s32.totalorder %s158, %s172
      %p174 = scmp.eq.s32.totalorder %s80, 0
      %p175 = por %p173, %p174
      %s177 = sadd.s32 %s176, 1
      %p180 = scmp.eq.s32.totalorder %s74, 1
      %p181 = scmp.ne.s32.totalorder %s176, %s178
      %p182 = scmp.eq.s32.totalorder %s74, 0
      %p183 = por %p181, %p182
      %p184 = scmp.ne.s32.totalorder %s176, %s178
      %p185 = scmp.eq.s32.totalorder %s79, 1
      %p186 = por %p184, %p185
      %p187 = scmp.ne.s32.totalorder %s178, %s179
      %p188 = scmp.eq.s32.totalorder %s79, 0
      %p189 = por %p187, %p188
      %p190 = scmp.ne.s32.totalorder %s178, %s179
      %p191 = scmp.eq.s32.totalorder %s80, 1
      %p192 = por %p190, %p191
      %p194 = scmp.ne.s32.totalorder %s179, %s193
      %p195 = scmp.eq.s32.totalorder %s80, 0
      %p196 = por %p194, %p195
      %s198 = sadd.s32 %s197, 1
      %p201 = scmp.eq.s32.totalorder %s74, 1
      %p202 = scmp.ne.s32.totalorder %s197, %s199
      %p203 = scmp.eq.s32.totalorder %s74, 0
      %p204 = por %p202, %p203
      %p205 = scmp.ne.s32.totalorder %s197, %s199
      %p206 = scmp.eq.s32.totalorder %s79, 1
      %p207 = por %p205, %p206
      %p208 = scmp.ne.s32.totalorder %s199, %s200
      %p209 = scmp.eq.s32.totalorder %s79, 0
      %p210 = por %p208, %p209
      %p211 = scmp.ne.s32.totalorder %s199, %s200
      %p212 = scmp.eq.s32.totalorder %s80, 1
      %p213 = por %p211, %p212
      %p215 = scmp.ne.s32.totalorder %s200, %s214
      %p216 = scmp.eq.s32.totalorder %s80, 0
      %p217 = por %p215, %p216
      %s219 = sadd.s32 %s218, 1
      %p222 = scmp.eq.s32.totalorder %s74, 1
      %p223 = scmp.ne.s32.totalorder %s218, %s220
      %p224 = scmp.eq.s32.totalorder %s74, 0
      %p225 = por %p223, %p224
      %p226 = scmp.ne.s32.totalorder %s218, %s220
      %p227 = scmp.eq.s32.totalorder %s79, 1
      %p228 = por %p226, %p227
      %p229 = scmp.ne.s32.totalorder %s220, %s221
      %p230 = scmp.eq.s32.totalorder %s79, 0
      %p231 = por %p229, %p230
      %p232 = scmp.ne.s32.totalorder %s220, %s221
      %p233 = scmp.eq.s32.totalorder %s80, 1
      %p234 = por %p232, %p233
      %p236 = scmp.ne.s32.totalorder %s221, %s235
      %p237 = scmp.eq.s32.totalorder %s80, 0
      %p238 = por %p236, %p237
      %s240 = sadd.s32 %s239, 1
      %p243 = scmp.eq.s32.totalorder %s74, 1
      %p244 = scmp.ne.s32.totalorder %s239, %s241
      %p245 = scmp.eq.s32.totalorder %s74, 0
      %p246 = por %p244, %p245
      %p247 = scmp.ne.s32.totalorder %s239, %s241
      %p248 = scmp.eq.s32.totalorder %s79, 1
      %p249 = por %p247, %p248
      %p250 = scmp.ne.s32.totalorder %s241, %s242
      %p251 = scmp.eq.s32.totalorder %s79, 0
      %p252 = por %p250, %p251
      %p253 = scmp.ne.s32.totalorder %s241, %s242
      %p254 = scmp.eq.s32.totalorder %s80, 1
      %p255 = por %p253, %p254
      %p257 = scmp.ne.s32.totalorder %s242, %s256
      %p258 = scmp.eq.s32.totalorder %s80, 0
      %p259 = por %p257, %p258
      %s261 = sadd.s32 %s260, 1
      %p264 = scmp.eq.s32.totalorder %s74, 1
      %p265 = scmp.ne.s32.totalorder %s260, %s262
      %p266 = scmp.eq.s32.totalorder %s74, 0
      %p267 = por %p265, %p266
      %p268 = scmp.ne.s32.totalorder %s260, %s262
      %p269 = scmp.eq.s32.totalorder %s79, 1
      %p270 = por %p268, %p269
      %p271 = scmp.ne.s32.totalorder %s262, %s263
      %p272 = scmp.eq.s32.totalorder %s79, 0
      %p273 = por %p271, %p272
      %p274 = scmp.ne.s32.totalorder %s262, %s263
      %p275 = scmp.eq.s32.totalorder %s80, 1
      %p276 = por %p274, %p275
      %p278 = scmp.ne.s32.totalorder %s263, %s277
      %p279 = scmp.eq.s32.totalorder %s80, 0
      %p280 = por %p278, %p279
      %s282 = sadd.s32 %s281, 1
      %p285 = scmp.eq.s32.totalorder %s74, 1
      %p286 = scmp.ne.s32.totalorder %s281, %s283
      %p287 = scmp.eq.s32.totalorder %s74, 0
      %p288 = por %p286, %p287
      %p289 = scmp.ne.s32.totalorder %s281, %s283
      %p290 = scmp.eq.s32.totalorder %s79, 1
      %p291 = por %p289, %p290
      %p292 = scmp.ne.s32.totalorder %s283, %s284
      %p293 = scmp.eq.s32.totalorder %s79, 0
      %p294 = por %p292, %p293
      %p295 = scmp.ne.s32.totalorder %s283, %s284
      %p296 = scmp.eq.s32.totalorder %s80, 1
      %p297 = por %p295, %p296
      %p299 = scmp.ne.s32.totalorder %s284, %s298
      %p300 = scmp.eq.s32.totalorder %s80, 0
      %p301 = por %p299, %p300
      %s303 = sadd.s32 %s302, 1
      %p306 = scmp.eq.s32.totalorder %s74, 1
      %p307 = scmp.ne.s32.totalorder %s302, %s304
      %p308 = scmp.eq.s32.totalorder %s74, 0
      %p309 = por %p307, %p308
      %p310 = scmp.ne.s32.totalorder %s302, %s304
      %p311 = scmp.eq.s32.totalorder %s79, 1
      %p312 = por %p310, %p311
      %p313 = scmp.ne.s32.totalorder %s304, %s305
      %p314 = scmp.eq.s32.totalorder %s79, 0
      %p315 = por %p313, %p314
      %p316 = scmp.ne.s32.totalorder %s304, %s305
      %p317 = scmp.eq.s32.totalorder %s80, 1
      %p318 = por %p316, %p317
      %p320 = scmp.ne.s32.totalorder %s305, %s319
      %p321 = scmp.eq.s32.totalorder %s80, 0
      %p322 = por %p320, %p321
      %s324 = sadd.s32 %s323, 1
      %p327 = scmp.eq.s32.totalorder %s74, 1
      %p328 = scmp.ne.s32.totalorder %s323, %s325
      %p329 = scmp.eq.s32.totalorder %s74, 0
      %p330 = por %p328, %p329
      %p331 = scmp.ne.s32.totalorder %s323, %s325
      %p332 = scmp.eq.s32.totalorder %s79, 1
      %p333 = por %p331, %p332
      %p334 = scmp.ne.s32.totalorder %s325, %s326
      %p335 = scmp.eq.s32.totalorder %s79, 0
      %p336 = por %p334, %p335
      %p337 = scmp.ne.s32.totalorder %s325, %s326
      %p338 = scmp.eq.s32.totalorder %s80, 1
      %p339 = por %p337, %p338
      %p341 = scmp.ne.s32.totalorder %s326, %s340
      %p342 = scmp.eq.s32.totalorder %s80, 0
      %p343 = por %p341, %p342
      %s345 = sadd.s32 %s344, 1
      %p348 = scmp.eq.s32.totalorder %s74, 1
      %p349 = scmp.ne.s32.totalorder %s344, %s346
      %p350 = scmp.eq.s32.totalorder %s74, 0
      %p351 = por %p349, %p350
      %p352 = scmp.ne.s32.totalorder %s344, %s346
      %p353 = scmp.eq.s32.totalorder %s79, 1
      %p354 = por %p352, %p353
      %p355 = scmp.ne.s32.totalorder %s346, %s347
      %p356 = scmp.eq.s32.totalorder %s79, 0
      %p357 = por %p355, %p356
      %p358 = scmp.ne.s32.totalorder %s346, %s347
      %p359 = scmp.eq.s32.totalorder %s80, 1
      %p360 = por %p358, %p359
      %p362 = scmp.ne.s32.totalorder %s347, %s361
      %p363 = scmp.eq.s32.totalorder %s80, 0
      %p364 = por %p362, %p363
      %s366 = sadd.s32 %s365, 1
      %p369 = scmp.eq.s32.totalorder %s74, 1
      %p370 = scmp.ne.s32.totalorder %s365, %s367
      %p371 = scmp.eq.s32.totalorder %s74, 0
      %p372 = por %p370, %p371
      %p373 = scmp.ne.s32.totalorder %s365, %s367
      %p374 = scmp.eq.s32.totalorder %s79, 1
      %p375 = por %p373, %p374
      %p376 = scmp.ne.s32.totalorder %s367, %s368
      %p377 = scmp.eq.s32.totalorder %s79, 0
      %p378 = por %p376, %p377
      %p379 = scmp.ne.s32.totalorder %s367, %s368
      %p380 = scmp.eq.s32.totalorder %s80, 1
      %p381 = por %p379, %p380
      %p383 = scmp.ne.s32.totalorder %s368, %s382
      %p384 = scmp.eq.s32.totalorder %s80, 0
      %p385 = por %p383, %p384
      %s387 = sadd.s32 %s386, 1
      %p390 = scmp.eq.s32.totalorder %s74, 1
      %p391 = scmp.ne.s32.totalorder %s386, %s388
      %p392 = scmp.eq.s32.totalorder %s74, 0
      %p393 = por %p391, %p392
      %p394 = scmp.ne.s32.totalorder %s386, %s388
      %p395 = scmp.eq.s32.totalorder %s79, 1
      %p396 = por %p394, %p395
      %p397 = scmp.ne.s32.totalorder %s388, %s389
      %p398 = scmp.eq.s32.totalorder %s79, 0
      %p399 = por %p397, %p398
      %p400 = scmp.ne.s32.totalorder %s388, %s389
      %p401 = scmp.eq.s32.totalorder %s80, 1
      %p402 = por %p400, %p401
      %p404 = scmp.ne.s32.totalorder %s389, %s403
      %p405 = scmp.eq.s32.totalorder %s80, 0
      %p406 = por %p404, %p405
      %s408 = sadd.s32 %s407, 1
      %p411 = scmp.eq.s32.totalorder %s74, 1
      %p412 = scmp.ne.s32.totalorder %s407, %s409
      %p413 = scmp.eq.s32.totalorder %s74, 0
      %p414 = por %p412, %p413
      %p415 = scmp.ne.s32.totalorder %s407, %s409
      %p416 = scmp.eq.s32.totalorder %s79, 1
      %p417 = por %p415, %p416
      %p418 = scmp.ne.s32.totalorder %s409, %s410
      %p419 = scmp.eq.s32.totalorder %s79, 0
      %p420 = por %p418, %p419
      %p421 = scmp.ne.s32.totalorder %s409, %s410
      %p422 = scmp.eq.s32.totalorder %s80, 1
      %p423 = por %p421, %p422
      %p425 = scmp.ne.s32.totalorder %s410, %s424
      %p426 = scmp.eq.s32.totalorder %s80, 0
      %p427 = por %p425, %p426
      %s429 = sadd.s32 %s428, 1
      %p432 = scmp.eq.s32.totalorder %s74, 1
      %p433 = scmp.ne.s32.totalorder %s428, %s430
      %p434 = scmp.eq.s32.totalorder %s74, 0
      %p435 = por %p433, %p434
      %p436 = scmp.ne.s32.totalorder %s428, %s430
      %p437 = scmp.eq.s32.totalorder %s79, 1
      %p438 = por %p436, %p437
      %p439 = scmp.ne.s32.totalorder %s430, %s431
      %p440 = scmp.eq.s32.totalorder %s79, 0
      %p441 = por %p439, %p440
      %p442 = scmp.ne.s32.totalorder %s430, %s431
      %p443 = scmp.eq.s32.totalorder %s80, 1
      %p444 = por %p442, %p443
      %p446 = scmp.ne.s32.totalorder %s431, %s445
      %p447 = scmp.eq.s32.totalorder %s80, 0
      %p448 = por %p446, %p447
      %s450 = sadd.s32 %s449, 1
      %p453 = scmp.eq.s32.totalorder %s74, 1
      %p454 = scmp.ne.s32.totalorder %s449, %s451
      %p455 = scmp.eq.s32.totalorder %s74, 0
      %p456 = por %p454, %p455
      %p457 = scmp.ne.s32.totalorder %s449, %s451
      %p458 = scmp.eq.s32.totalorder %s79, 1
      %p459 = por %p457, %p458
      %p460 = scmp.ne.s32.totalorder %s451, %s452
      %p461 = scmp.eq.s32.totalorder %s79, 0
      %p462 = por %p460, %p461
      %p463 = scmp.ne.s32.totalorder %s451, %s452
      %p464 = scmp.eq.s32.totalorder %s80, 1
      %p465 = por %p463, %p464
      %p467 = scmp.ne.s32.totalorder %s452, %s466
      %p468 = scmp.eq.s32.totalorder %s80, 0
      %p469 = por %p467, %p468
      %s471 = sadd.s32 %s470, 1
      %p474 = scmp.eq.s32.totalorder %s74, 1
      %p475 = scmp.ne.s32.totalorder %s470, %s472
      %p476 = scmp.eq.s32.totalorder %s74, 0
      %p477 = por %p475, %p476
      %p478 = scmp.ne.s32.totalorder %s470, %s472
      %p479 = scmp.eq.s32.totalorder %s79, 1
      %p480 = por %p478, %p479
      %p481 = scmp.ne.s32.totalorder %s472, %s473
      %p482 = scmp.eq.s32.totalorder %s79, 0
      %p483 = por %p481, %p482
      %p484 = scmp.ne.s32.totalorder %s472, %s473
      %p485 = scmp.eq.s32.totalorder %s80, 1
      %p486 = por %p484, %p485
      %p488 = scmp.ne.s32.totalorder %s473, %s487
      %p489 = scmp.eq.s32.totalorder %s80, 0
      %p490 = por %p488, %p489
      %s492 = sadd.s32 %s491, 1
      %p495 = scmp.eq.s32.totalorder %s74, 1
      %p496 = scmp.ne.s32.totalorder %s491, %s493
      %p497 = scmp.eq.s32.totalorder %s74, 0
      %p498 = por %p496, %p497
      %p499 = scmp.ne.s32.totalorder %s491, %s493
      %p500 = scmp.eq.s32.totalorder %s79, 1
      %p501 = por %p499, %p500
      %p502 = scmp.ne.s32.totalorder %s493, %s494
      %p503 = scmp.eq.s32.totalorder %s79, 0
      %p504 = por %p502, %p503
      %p505 = scmp.ne.s32.totalorder %s493, %s494
      %p506 = scmp.eq.s32.totalorder %s80, 1
      %p507 = por %p505, %p506
      %p509 = scmp.ne.s32.totalorder %s494, %s508
      %p510 = scmp.eq.s32.totalorder %s80, 0
      %p511 = por %p509, %p510
      %s513 = sadd.s32 %s512, 1
      %p516 = scmp.eq.s32.totalorder %s74, 1
      %p517 = scmp.ne.s32.totalorder %s512, %s514
      %p518 = scmp.eq.s32.totalorder %s74, 0
      %p519 = por %p517, %p518
      %p520 = scmp.ne.s32.totalorder %s512, %s514
      %p521 = scmp.eq.s32.totalorder %s79, 1
      %p522 = por %p520, %p521
      %p523 = scmp.ne.s32.totalorder %s514, %s515
      %p524 = scmp.eq.s32.totalorder %s79, 0
      %p525 = por %p523, %p524
      %p526 = scmp.ne.s32.totalorder %s514, %s515
      %p527 = scmp.eq.s32.totalorder %s80, 1
      %p528 = por %p526, %p527
      %p530 = scmp.ne.s32.totalorder %s515, %s529
      %p531 = scmp.eq.s32.totalorder %s80, 0
      %p532 = por %p530, %p531
      %s534 = sadd.s32 %s533, 1
      %p537 = scmp.eq.s32.totalorder %s74, 1
      %p538 = scmp.ne.s32.totalorder %s533, %s535
      %p539 = scmp.eq.s32.totalorder %s74, 0
      %p540 = por %p538, %p539
      %p541 = scmp.ne.s32.totalorder %s533, %s535
      %p542 = scmp.eq.s32.totalorder %s79, 1
      %p543 = por %p541, %p542
      %p544 = scmp.ne.s32.totalorder %s535, %s536
      %p545 = scmp.eq.s32.totalorder %s79, 0
      %p546 = por %p544, %p545
      %p547 = scmp.ne.s32.totalorder %s535, %s536
      %p548 = scmp.eq.s32.totalorder %s80, 1
      %p549 = por %p547, %p548
      %p551 = scmp.ne.s32.totalorder %s536, %s550
      %p552 = scmp.eq.s32.totalorder %s80, 0
      %p553 = por %p551, %p552
      %s555 = sadd.s32 %s554, 1
      %p558 = scmp.eq.s32.totalorder %s74, 1
      %p559 = scmp.ne.s32.totalorder %s554, %s556
      %p560 = scmp.eq.s32.totalorder %s74, 0
      %p561 = por %p559, %p560
      %p562 = scmp.ne.s32.totalorder %s554, %s556
      %p563 = scmp.eq.s32.totalorder %s79, 1
      %p564 = por %p562, %p563
      %p565 = scmp.ne.s32.totalorder %s556, %s557
      %p566 = scmp.eq.s32.totalorder %s79, 0
      %p567 = por %p565, %p566
      %p568 = scmp.ne.s32.totalorder %s556, %s557
      %p569 = scmp.eq.s32.totalorder %s80, 1
      %p570 = por %p568, %p569
      %p572 = scmp.ne.s32.totalorder %s557, %s571
      %p573 = scmp.eq.s32.totalorder %s80, 0
      %p574 = por %p572, %p573
      %s576 = sadd.s32 %s575, 1
      %p579 = scmp.eq.s32.totalorder %s74, 1
      %p580 = scmp.ne.s32.totalorder %s575, %s577
      %p581 = scmp.eq.s32.totalorder %s74, 0
      %p582 = por %p580, %p581
      %p583 = scmp.ne.s32.totalorder %s575, %s577
      %p584 = scmp.eq.s32.totalorder %s79, 1
      %p585 = por %p583, %p584
      %p586 = scmp.ne.s32.totalorder %s577, %s578
      %p587 = scmp.eq.s32.totalorder %s79, 0
      %p588 = por %p586, %p587
      %p589 = scmp.ne.s32.totalorder %s577, %s578
      %p590 = scmp.eq.s32.totalorder %s80, 1
      %p591 = por %p589, %p590
      %p593 = scmp.ne.s32.totalorder %s578, %s592
      %p594 = scmp.eq.s32.totalorder %s80, 0
      %p595 = por %p593, %p594
      %s597 = sadd.s32 %s596, 1
      %p600 = scmp.eq.s32.totalorder %s74, 1
      %p601 = scmp.ne.s32.totalorder %s596, %s598
      %p602 = scmp.eq.s32.totalorder %s74, 0
      %p603 = por %p601, %p602
      %p604 = scmp.ne.s32.totalorder %s596, %s598
      %p605 = scmp.eq.s32.totalorder %s79, 1
      %p606 = por %p604, %p605
      %p607 = scmp.ne.s32.totalorder %s598, %s599
      %p608 = scmp.eq.s32.totalorder %s79, 0
      %p609 = por %p607, %p608
      %p610 = scmp.ne.s32.totalorder %s598, %s599
      %p611 = scmp.eq.s32.totalorder %s80, 1
      %p612 = por %p610, %p611
      %p614 = scmp.ne.s32.totalorder %s599, %s613
      %p615 = scmp.eq.s32.totalorder %s80, 0
      %p616 = por %p614, %p615
      %s618 = sadd.s32 %s617, 1
      %p621 = scmp.eq.s32.totalorder %s74, 1
      %p622 = scmp.ne.s32.totalorder %s617, %s619
      %p623 = scmp.eq.s32.totalorder %s74, 0
      %p624 = por %p622, %p623
      %p625 = scmp.ne.s32.totalorder %s617, %s619
      %p626 = scmp.eq.s32.totalorder %s79, 1
      %p627 = por %p625, %p626
      %p628 = scmp.ne.s32.totalorder %s619, %s620
      %p629 = scmp.eq.s32.totalorder %s79, 0
      %p630 = por %p628, %p629
      %p631 = scmp.ne.s32.totalorder %s619, %s620
      %p632 = scmp.eq.s32.totalorder %s80, 1
      %p633 = por %p631, %p632
      %p635 = scmp.ne.s32.totalorder %s620, %s634
      %p636 = scmp.eq.s32.totalorder %s80, 0
      %p637 = por %p635, %p636
      %s639 = sadd.s32 %s638, 1
      %p642 = scmp.eq.s32.totalorder %s74, 1
      %p643 = scmp.ne.s32.totalorder %s638, %s640
      %p644 = scmp.eq.s32.totalorder %s74, 0
      %p645 = por %p643, %p644
      %p646 = scmp.ne.s32.totalorder %s638, %s640
      %p647 = scmp.eq.s32.totalorder %s79, 1
      %p648 = por %p646, %p647
      %p649 = scmp.ne.s32.totalorder %s640, %s641
      %p650 = scmp.eq.s32.totalorder %s79, 0
      %p651 = por %p649, %p650
      %p652 = scmp.ne.s32.totalorder %s640, %s641
      %p653 = scmp.eq.s32.totalorder %s80, 1
      %p654 = por %p652, %p653
      %p656 = scmp.ne.s32.totalorder %s641, %s655
      %p657 = scmp.eq.s32.totalorder %s80, 0
      %p658 = por %p656, %p657
      %s660 = sadd.s32 %s659, 1
      %p663 = scmp.eq.s32.totalorder %s74, 1
      %p664 = scmp.ne.s32.totalorder %s659, %s661
      %p665 = scmp.eq.s32.totalorder %s74, 0
      %p666 = por %p664, %p665
      %p667 = scmp.ne.s32.totalorder %s659, %s661
      %p668 = scmp.eq.s32.totalorder %s79, 1
      %p669 = por %p667, %p668
      %p670 = scmp.ne.s32.totalorder %s661, %s662
      %p671 = scmp.eq.s32.totalorder %s79, 0
      %p672 = por %p670, %p671
      %p673 = scmp.ne.s32.totalorder %s661, %s662
      %p674 = scmp.eq.s32.totalorder %s80, 1
      %p675 = por %p673, %p674
      %p677 = scmp.ne.s32.totalorder %s662, %s676
      %p678 = scmp.eq.s32.totalorder %s80, 0
      %p679 = por %p677, %p678
      %s681 = sadd.s32 %s680, 1
      %p684 = scmp.eq.s32.totalorder %s74, 1
      %p685 = scmp.ne.s32.totalorder %s680, %s682
      %p686 = scmp.eq.s32.totalorder %s74, 0
      %p687 = por %p685, %p686
      %p688 = scmp.ne.s32.totalorder %s680, %s682
      %p689 = scmp.eq.s32.totalorder %s79, 1
      %p690 = por %p688, %p689
      %p691 = scmp.ne.s32.totalorder %s682, %s683
      %p692 = scmp.eq.s32.totalorder %s79, 0
      %p693 = por %p691, %p692
      %p694 = scmp.ne.s32.totalorder %s682, %s683
      %p695 = scmp.eq.s32.totalorder %s80, 1
      %p696 = por %p694, %p695
      %p698 = scmp.ne.s32.totalorder %s683, %s697
      %p699 = scmp.eq.s32.totalorder %s80, 0
      %p700 = por %p698, %p699
      %s702 = sadd.s32 %s701, 1
      %p705 = scmp.eq.s32.totalorder %s74, 1
      %p706 = scmp.ne.s32.totalorder %s701, %s703
      %p707 = scmp.eq.s32.totalorder %s74, 0
      %p708 = por %p706, %p707
      %p709 = scmp.ne.s32.totalorder %s701, %s703
      %p710 = scmp.eq.s32.totalorder %s79, 1
      %p711 = por %p709, %p710
      %p712 = scmp.ne.s32.totalorder %s703, %s704
      %p713 = scmp.eq.s32.totalorder %s79, 0
      %p714 = por %p712, %p713
      %p715 = scmp.ne.s32.totalorder %s703, %s704
      %p716 = scmp.eq.s32.totalorder %s80, 1
      %p717 = por %p715, %p716
      %p719 = scmp.ne.s32.totalorder %s704, %s718
      %p720 = scmp.eq.s32.totalorder %s80, 0
      %p721 = por %p719, %p720
      %s723 = sadd.s32 %s722, 1
      %p726 = scmp.eq.s32.totalorder %s74, 1
      %p727 = scmp.ne.s32.totalorder %s722, %s724
      %p728 = scmp.eq.s32.totalorder %s74, 0
      %p729 = por %p727, %p728
      %p730 = scmp.ne.s32.totalorder %s722, %s724
      %p731 = scmp.eq.s32.totalorder %s79, 1
      %p732 = por %p730, %p731
      %p733 = scmp.ne.s32.totalorder %s724, %s725
      %p734 = scmp.eq.s32.totalorder %s79, 0
      %p735 = por %p733, %p734
      %p736 = scmp.ne.s32.totalorder %s724, %s725
      %p737 = scmp.eq.s32.totalorder %s80, 1
      %p738 = por %p736, %p737
      %p740 = scmp.ne.s32.totalorder %s725, %s739
      %p741 = scmp.eq.s32.totalorder %s80, 0
      %p742 = por %p740, %p741
      %s744 = sadd.s32 %s743, 1
      %p747 = scmp.eq.s32.totalorder %s74, 1
      %p748 = scmp.ne.s32.totalorder %s743, %s745
      %p749 = scmp.eq.s32.totalorder %s74, 0
      %p750 = por %p748, %p749
      %p751 = scmp.ne.s32.totalorder %s743, %s745
      %p752 = scmp.eq.s32.totalorder %s79, 1
      %p753 = por %p751, %p752
      %p754 = scmp.ne.s32.totalorder %s745, %s746
      %p755 = scmp.eq.s32.totalorder %s79, 0
      %p756 = por %p754, %p755
      %p757 = scmp.ne.s32.totalorder %s745, %s746
      %p758 = scmp.eq.s32.totalorder %s80, 1
      %p759 = por %p757, %p758
      %p761 = scmp.ne.s32.totalorder %s746, %s760
      %p762 = scmp.eq.s32.totalorder %s80, 0
      %p763 = por %p761, %p762
      %s764 = ssub.s32 %s74, %s81
      %p765 = scmp.eq.s32.totalorder %s764, 0
      %s767 = sadd.s32 %s766, 1
      %s768 = scalar_select %p765, %s766, %s767
      %p771 = pneg %p765
      %p772 = scmp.eq.s32.totalorder %s74, 1
      %p773 = por %p771, %p772
      %p774 = scmp.ne.s32.totalorder %s766, %s769
      %p775 = scmp.eq.s32.totalorder %s74, 0
      %p776 = por %p774, %p775
      %p777 = scmp.ne.s32.totalorder %s766, %s769
      %p778 = scmp.eq.s32.totalorder %s79, 1
      %p779 = por %p777, %p778
      %p780 = scmp.ne.s32.totalorder %s769, %s770
      %p781 = scmp.eq.s32.totalorder %s79, 0
      %p782 = por %p780, %p781
      %p783 = scmp.ne.s32.totalorder %s769, %s770
      %p784 = scmp.eq.s32.totalorder %s80, 1
      %p785 = por %p783, %p784
      %p787 = scmp.ne.s32.totalorder %s770, %s786
      %p788 = scmp.eq.s32.totalorder %s80, 0
      %p789 = por %p787, %p788
      %p790 = scmp.le.s32.totalorder 1, %s74
      %p791 = scmp.lt.s32.totalorder %s74, 3
      %p792 = pnand %p790, %p791
      %p793 = pneg %p792
      // Predicated region
      $region9: #{text_predictor_forward.1} parent=5 // pred_check
        _
      $region10: #{text_predictor_forward.1} parent=5 // pred_check_branch
        %795 = sbr.rel (%p792) target = $region12
      $region11: #{text_predictor_forward.1} parent=5 // pred_region
        %s796 = ssub.s32 %s74, 1
        // Predicated region
        $region13: #{text_predictor_forward.1} parent=11 // pred_check
          %p797 = pneg %p147
        $region14: #{text_predictor_forward.1} parent=11 // pred_check_branch
          %799 = sbr.rel (%p797) target = $region16
        $region15: #{text_predictor_forward.1} parent=11 // pred_region
          _
        $region16: #{text_predictor_forward.1} parent=11 // pred_fallthru
          _
        // Predicated region
        $region17: #{text_predictor_forward.1} parent=11 // pred_check
          %p800 = pneg %p168
        $region18: #{text_predictor_forward.1} parent=11 // pred_check_branch
          %802 = sbr.rel (%p800) target = $region20
        $region19: #{text_predictor_forward.1} parent=11 // pred_region
          _
        $region20: #{text_predictor_forward.1} parent=11 // pred_fallthru
          _
        // Predicated region
        $region21: #{text_predictor_forward.1} parent=11 // pred_check
          %p803 = pneg %p189
        $region22: #{text_predictor_forward.1} parent=11 // pred_check_branch
          %805 = sbr.rel (%p803) target = $region24
        $region23: #{text_predictor_forward.1} parent=11 // pred_region
          _
        $region24: #{text_predictor_forward.1} parent=11 // pred_fallthru
          _
        // Predicated region
        $region25: #{text_predictor_forward.1} parent=11 // pred_check
          %p806 = pneg %p210
        $region26: #{text_predictor_forward.1} parent=11 // pred_check_branch
          %808 = sbr.rel (%p806) target = $region28
        $region27: #{text_predictor_forward.1} parent=11 // pred_region
          _
        $region28: #{text_predictor_forward.1} parent=11 // pred_fallthru
          _
        // Predicated region
        $region29: #{text_predictor_forward.1} parent=11 // pred_check
          %p809 = pneg %p231
        $region30: #{text_predictor_forward.1} parent=11 // pred_check_branch
          %811 = sbr.rel (%p809) target = $region32
        $region31: #{text_predictor_forward.1} parent=11 // pred_region
          _
        $region32: #{text_predictor_forward.1} parent=11 // pred_fallthru
          _
        // Predicated region
        $region33: #{text_predictor_forward.1} parent=11 // pred_check
          %p812 = pneg %p252
        $region34: #{text_predictor_forward.1} parent=11 // pred_check_branch
          %814 = sbr.rel (%p812) target = $region36
        $region35: #{text_predictor_forward.1} parent=11 // pred_region
          _
        $region36: #{text_predictor_forward.1} parent=11 // pred_fallthru
          _
        // Predicated region
        $region37: #{text_predictor_forward.1} parent=11 // pred_check
          %p815 = pneg %p273
        $region38: #{text_predictor_forward.1} parent=11 // pred_check_branch
          %817 = sbr.rel (%p815) target = $region40
        $region39: #{text_predictor_forward.1} parent=11 // pred_region
          _
        $region40: #{text_predictor_forward.1} parent=11 // pred_fallthru
          _
        // Predicated region
        $region41: #{text_predictor_forward.1} parent=11 // pred_check
          %p818 = pneg %p294
        $region42: #{text_predictor_forward.1} parent=11 // pred_check_branch
          %820 = sbr.rel (%p818) target = $region44
        $region43: #{text_predictor_forward.1} parent=11 // pred_region
          _
        $region44: #{text_predictor_forward.1} parent=11 // pred_fallthru
          _
        // Predicated region
        $region45: #{text_predictor_forward.1} parent=11 // pred_check
          %p821 = pneg %p315
        $region46: #{text_predictor_forward.1} parent=11 // pred_check_branch
          %823 = sbr.rel (%p821) target = $region48
        $region47: #{text_predictor_forward.1} parent=11 // pred_region
          _
        $region48: #{text_predictor_forward.1} parent=11 // pred_fallthru
          _
        // Predicated region
        $region49: #{text_predictor_forward.1} parent=11 // pred_check
          %p824 = pneg %p336
        $region50: #{text_predictor_forward.1} parent=11 // pred_check_branch
          %826 = sbr.rel (%p824) target = $region52
        $region51: #{text_predictor_forward.1} parent=11 // pred_region
          _
        $region52: #{text_predictor_forward.1} parent=11 // pred_fallthru
          _
        // Predicated region
        $region53: #{text_predictor_forward.1} parent=11 // pred_check
          %p827 = pneg %p357
        $region54: #{text_predictor_forward.1} parent=11 // pred_check_branch
          %829 = sbr.rel (%p827) target = $region56
        $region55: #{text_predictor_forward.1} parent=11 // pred_region
          _
        $region56: #{text_predictor_forward.1} parent=11 // pred_fallthru
          _
        // Predicated region
        $region57: #{text_predictor_forward.1} parent=11 // pred_check
          %p830 = pneg %p378
        $region58: #{text_predictor_forward.1} parent=11 // pred_check_branch
          %832 = sbr.rel (%p830) target = $region60
        $region59: #{text_predictor_forward.1} parent=11 // pred_region
          _
        $region60: #{text_predictor_forward.1} parent=11 // pred_fallthru
          _
        // Predicated region
        $region61: #{text_predictor_forward.1} parent=11 // pred_check
          %p833 = pneg %p399
        $region62: #{text_predictor_forward.1} parent=11 // pred_check_branch
          %835 = sbr.rel (%p833) target = $region64
        $region63: #{text_predictor_forward.1} parent=11 // pred_region
          _
        $region64: #{text_predictor_forward.1} parent=11 // pred_fallthru
          _
        // Predicated region
        $region65: #{text_predictor_forward.1} parent=11 // pred_check
          %p836 = pneg %p420
        $region66: #{text_predictor_forward.1} parent=11 // pred_check_branch
          %838 = sbr.rel (%p836) target = $region68
        $region67: #{text_predictor_forward.1} parent=11 // pred_region
          _
        $region68: #{text_predictor_forward.1} parent=11 // pred_fallthru
          _
        // Predicated region
        $region69: #{text_predictor_forward.1} parent=11 // pred_check
          %p839 = pneg %p441
        $region70: #{text_predictor_forward.1} parent=11 // pred_check_branch
          %841 = sbr.rel (%p839) target = $region72
        $region71: #{text_predictor_forward.1} parent=11 // pred_region
          _
        $region72: #{text_predictor_forward.1} parent=11 // pred_fallthru
          _
        // Predicated region
        $region73: #{text_predictor_forward.1} parent=11 // pred_check
          %p842 = pneg %p462
        $region74: #{text_predictor_forward.1} parent=11 // pred_check_branch
          %844 = sbr.rel (%p842) target = $region76
        $region75: #{text_predictor_forward.1} parent=11 // pred_region
          _
        $region76: #{text_predictor_forward.1} parent=11 // pred_fallthru
          _
        // Predicated region
        $region77: #{text_predictor_forward.1} parent=11 // pred_check
          %p845 = pneg %p483
        $region78: #{text_predictor_forward.1} parent=11 // pred_check_branch
          %847 = sbr.rel (%p845) target = $region80
        $region79: #{text_predictor_forward.1} parent=11 // pred_region
          _
        $region80: #{text_predictor_forward.1} parent=11 // pred_fallthru
          _
        // Predicated region
        $region81: #{text_predictor_forward.1} parent=11 // pred_check
          %p848 = pneg %p504
        $region82: #{text_predictor_forward.1} parent=11 // pred_check_branch
          %850 = sbr.rel (%p848) target = $region84
        $region83: #{text_predictor_forward.1} parent=11 // pred_region
          _
        $region84: #{text_predictor_forward.1} parent=11 // pred_fallthru
          _
        // Predicated region
        $region85: #{text_predictor_forward.1} parent=11 // pred_check
          %p851 = pneg %p525
        $region86: #{text_predictor_forward.1} parent=11 // pred_check_branch
          %853 = sbr.rel (%p851) target = $region88
        $region87: #{text_predictor_forward.1} parent=11 // pred_region
          _
        $region88: #{text_predictor_forward.1} parent=11 // pred_fallthru
          _
        // Predicated region
        $region89: #{text_predictor_forward.1} parent=11 // pred_check
          %p854 = pneg %p546
        $region90: #{text_predictor_forward.1} parent=11 // pred_check_branch
          %856 = sbr.rel (%p854) target = $region92
        $region91: #{text_predictor_forward.1} parent=11 // pred_region
          _
        $region92: #{text_predictor_forward.1} parent=11 // pred_fallthru
          _
        // Predicated region
        $region93: #{text_predictor_forward.1} parent=11 // pred_check
          %p857 = pneg %p567
        $region94: #{text_predictor_forward.1} parent=11 // pred_check_branch
          %859 = sbr.rel (%p857) target = $region96
        $region95: #{text_predictor_forward.1} parent=11 // pred_region
          _
        $region96: #{text_predictor_forward.1} parent=11 // pred_fallthru
          _
        // Predicated region
        $region97: #{text_predictor_forward.1} parent=11 // pred_check
          %p860 = pneg %p588
        $region98: #{text_predictor_forward.1} parent=11 // pred_check_branch
          %862 = sbr.rel (%p860) target = $region100
        $region99: #{text_predictor_forward.1} parent=11 // pred_region
          _
        $region100: #{text_predictor_forward.1} parent=11 // pred_fallthru
          _
        // Predicated region
        $region101: #{text_predictor_forward.1} parent=11 // pred_check
          %p863 = pneg %p609
        $region102: #{text_predictor_forward.1} parent=11 // pred_check_branch
          %865 = sbr.rel (%p863) target = $region104
        $region103: #{text_predictor_forward.1} parent=11 // pred_region
          _
        $region104: #{text_predictor_forward.1} parent=11 // pred_fallthru
          _
        // Predicated region
        $region105: #{text_predictor_forward.1} parent=11 // pred_check
          %p866 = pneg %p630
        $region106: #{text_predictor_forward.1} parent=11 // pred_check_branch
          %868 = sbr.rel (%p866) target = $region108
        $region107: #{text_predictor_forward.1} parent=11 // pred_region
          _
        $region108: #{text_predictor_forward.1} parent=11 // pred_fallthru
          _
        // Predicated region
        $region109: #{text_predictor_forward.1} parent=11 // pred_check
          %p869 = pneg %p651
        $region110: #{text_predictor_forward.1} parent=11 // pred_check_branch
          %871 = sbr.rel (%p869) target = $region112
        $region111: #{text_predictor_forward.1} parent=11 // pred_region
          _
        $region112: #{text_predictor_forward.1} parent=11 // pred_fallthru
          _
        // Predicated region
        $region113: #{text_predictor_forward.1} parent=11 // pred_check
          %p872 = pneg %p672
        $region114: #{text_predictor_forward.1} parent=11 // pred_check_branch
          %874 = sbr.rel (%p872) target = $region116
        $region115: #{text_predictor_forward.1} parent=11 // pred_region
          _
        $region116: #{text_predictor_forward.1} parent=11 // pred_fallthru
          _
        // Predicated region
        $region117: #{text_predictor_forward.1} parent=11 // pred_check
          %p875 = pneg %p693
        $region118: #{text_predictor_forward.1} parent=11 // pred_check_branch
          %877 = sbr.rel (%p875) target = $region120
        $region119: #{text_predictor_forward.1} parent=11 // pred_region
          _
        $region120: #{text_predictor_forward.1} parent=11 // pred_fallthru
          _
        // Predicated region
        $region121: #{text_predictor_forward.1} parent=11 // pred_check
          %p878 = pneg %p714
        $region122: #{text_predictor_forward.1} parent=11 // pred_check_branch
          %880 = sbr.rel (%p878) target = $region124
        $region123: #{text_predictor_forward.1} parent=11 // pred_region
          _
        $region124: #{text_predictor_forward.1} parent=11 // pred_fallthru
          _
        // Predicated region
        $region125: #{text_predictor_forward.1} parent=11 // pred_check
          %p881 = pneg %p735
        $region126: #{text_predictor_forward.1} parent=11 // pred_check_branch
          %883 = sbr.rel (%p881) target = $region128
        $region127: #{text_predictor_forward.1} parent=11 // pred_region
          _
        $region128: #{text_predictor_forward.1} parent=11 // pred_fallthru
          _
        // Predicated region
        $region129: #{text_predictor_forward.1} parent=11 // pred_check
          %p884 = pneg %p756
        $region130: #{text_predictor_forward.1} parent=11 // pred_check_branch
          %886 = sbr.rel (%p884) target = $region132
        $region131: #{text_predictor_forward.1} parent=11 // pred_region
          _
        $region132: #{text_predictor_forward.1} parent=11 // pred_fallthru
          _
      $region12: #{text_predictor_forward.1} parent=5 // pred_fallthru
        _
      %p887 = scmp.lt.s32.totalorder %s74, 2
      // Predicated region
      $region133: #{text_predictor_forward.1} parent=5 // pred_check
        %p888 = pneg %p887
      $region134: #{text_predictor_forward.1} parent=5 // pred_check_branch
        %890 = sbr.rel (%p888) target = $region136
      $region135: #{text_predictor_forward.1} parent=5 // pred_region
        // Predicated region
        $region137: #{text_predictor_forward.1} parent=135 // pred_check
          %p891 = pneg %p94
        $region138: #{text_predictor_forward.1} parent=135 // pred_check_branch
          %893 = sbr.rel (%p891) target = $region140
        $region139: #{text_predictor_forward.1} parent=135 // pred_region
          %p894 = scmp.lt.s32.totalorder %s74, 1
          %s895 = scalar_select %p894, %s74, 1
          %s896 = smul.addr %s895, 8
          %s897 = scalar_lea.vmem %s1, %s896
        $region140: #{text_predictor_forward.1} parent=135 // pred_fallthru
          _
        // Predicated region
        $region141: #{text_predictor_forward.1} parent=135 // pred_check
          %p898 = pneg %p120
        $region142: #{text_predictor_forward.1} parent=135 // pred_check_branch
          %900 = sbr.rel (%p898) target = $region144
        $region143: #{text_predictor_forward.1} parent=135 // pred_region
          %p901 = scmp.lt.s32.totalorder %s74, 1
          %s902 = scalar_select %p901, %s74, 1
          %s903 = scalar_lea.vmem %s3, %s902
        $region144: #{text_predictor_forward.1} parent=135 // pred_fallthru
          _
      $region136: #{text_predictor_forward.1} parent=5 // pred_fallthru
        _
      %p904 = scmp.le.s32.totalorder 1, %s74
      %p905 = scmp.lt.s32.totalorder %s74, 3
      %p906 = pnand %p904, %p905
      %p907 = pneg %p906
      // Predicated region
      $region145: #{text_predictor_forward.1} parent=5 // pred_check
        _
      $region146: #{text_predictor_forward.1} parent=5 // pred_check_branch
        %909 = sbr.rel (%p906) target = $region148
      $region147: #{text_predictor_forward.1} parent=5 // pred_region
        %s910 = ssub.s32 %s74, 1
        %p911 = scmp.lt.s32.totalorder %s79, 1
        %s912 = scalar_select %p911, %s79, 1
        %s913 = smul.addr %s912, 8
        %s914 = scalar_lea.vmem %s1, %s913
        %p915 = pneg %p100
        %p916 = pneg %p97
        %p917 = scmp.lt.s32.totalorder %s79, 1
        %s918 = scalar_select %p917, %s79, 1
        %s919 = scalar_lea.vmem %s3, %s918
        %p920 = pneg %p126
        %p921 = pneg %p123
        %p922 = pneg %p147
        %p923 = pneg %p144
        %p924 = pneg %p168
        %p925 = pneg %p165
        %p926 = pneg %p189
        %p927 = pneg %p186
        %p928 = pneg %p210
        %p929 = pneg %p207
        %p930 = pneg %p231
        %p931 = pneg %p228
        %p932 = pneg %p252
        %p933 = pneg %p249
        %p934 = pneg %p273
        %p935 = pneg %p270
        %p936 = pneg %p294
        %p937 = pneg %p291
        %p938 = pneg %p315
        %p939 = pneg %p312
        %p940 = pneg %p336
        %p941 = pneg %p333
        %p942 = pneg %p357
        %p943 = pneg %p354
        %p944 = pneg %p378
        %p945 = pneg %p375
        %p946 = pneg %p399
        %p947 = pneg %p396
        %p948 = pneg %p420
        %p949 = pneg %p417
        %p950 = pneg %p441
        %p951 = pneg %p438
        %p952 = pneg %p462
        %p953 = pneg %p459
        %p954 = pneg %p483
        %p955 = pneg %p480
        %p956 = pneg %p504
        %p957 = pneg %p501
        %p958 = pneg %p525
        %p959 = pneg %p522
        %p960 = pneg %p546
        %p961 = pneg %p543
        %p962 = pneg %p567
        %p963 = pneg %p564
        %p964 = pneg %p588
        %p965 = pneg %p585
        %p966 = pneg %p609
        %p967 = pneg %p606
        %p968 = pneg %p630
        %p969 = pneg %p627
        %p970 = pneg %p651
        %p971 = pneg %p648
        %p972 = pneg %p672
        %p973 = pneg %p669
        %p974 = pneg %p693
        %p975 = pneg %p690
        %p976 = pneg %p714
        %p977 = pneg %p711
        %p978 = pneg %p735
        %p979 = pneg %p732
        %p980 = pneg %p756
        %p981 = pneg %p753
        %p982 = pneg %p782
        %p983 = pneg %p779
        %s984 = sand.u32 %s769, 1
        %s985 = scalar_lea.sflag [#allocation3], %s984
        %s986 = sand.u32 %s769, 1
        %s987 = scalar_lea.vmem [#allocation2], %s986
        %p988 = scmp.lt.s32.totalorder %s79, 1
        %s989 = scalar_select %p988, %s79, 1
        %s990 = smul.addr %s989, 8
        %s991 = scalar_lea.vmem %s1, %s990
        %p992 = scmp.lt.s32.totalorder %s79, 1
        %s993 = scalar_select %p992, %s79, 1
        %s994 = scalar_lea.vmem %s3, %s993
        %v996 = vld [vmem:[%s994] sm:$0x1]
        %v997 = vld [vmem:[%s991] sm:$0xff]
        %vm998 = vcmask 261120
        %v999 = vsel %vm998, %v997, 0.0
        %1000 = vadd.xlane.f32.xlu0 %v999
        %v1001 = vpop.xlane.xlu0 %1000
        %v1002 = vrcp.pop 32.0
        %v1003 = vmul.f32 %v1001, %v1002
        %v1004 = vsub.f32 %v997, %v1003
        %v1005 = vmul.f32 %v1004, %v1004
        %v1006 = vsel %vm998, %v1005, 0.0
        %1007 = vadd.xlane.f32.xlu0 %v1006
        %v1008 = vpop.xlane.xlu0 %1007
        %v1009 = vmul.f32 %v1008, %v1002
        %v1010 = vadd.f32 %v1009, 1e-12
        %v1011 = vrsqrt.pop %v1010
        %v1012 = vmul.f32 %v1004, %v1011
        %v1013 = vld [vmem:[%s5] sm:$0x1]
        %v1015 = vlaneseq
        %v1016 = vshrl.u32 %v1015, 7
        %v1017 = vsub.s32 0, %v1016
        %v1018 = vrot.slane %v1013, %v1017
        %v1020 = vmul.f32 %v1012, %v1018
        %v1021 = vld [vmem:[%s7] sm:$0x1]
        %v1023 = vlaneseq
        %v1024 = vshrl.u32 %v1023, 7
        %v1025 = vsub.s32 0, %v1024
        %v1026 = vrot.slane %v1021, %v1025
        %v1028 = vadd.f32 %v1020, %v1026
        %v1029 = vpack.c.bf16 %v1028, %v1028
        %v1030 = vld [vmem:[%s9] sm:$0xf]
        %v1031 = vld [vmem:[%s9 + $0x4] sm:$0xf]
        %v1032 = vld [vmem:[%s9 + $0x8] sm:$0xf]
        %v1033 = vld [vmem:[%s9 + $0xc] sm:$0xf]
        %v1034 = vld [vmem:[%s11] sm:$0x1]
        %v1036 = vlaneseq
        %v1037 = vshrl.u32 %v1036, 7
        %v1038 = vsub.s32 0, %v1037
        %v1039 = vrot.slane %v1034, %v1038
        %v1045 = vunpack.c.l.b16 %v1030
        %v1046 = vunpack.c.l.b16 %v1031
        %v1047 = vunpack.c.l.b16 %v1032
        %v1048 = vunpack.c.l.b16 %v1033
        %v1049 = vpack.c.b16 %v1046, %v1045
        %v1050 = vpack.c.b16 %v1048, %v1047
        %v1054 = vsel %vm998, %v1029, 0
        %1056 = vmatprep.subr.bf16.mxu0 0
        %1057 = vmatpush1.bf16.msra.mxu0 %v1049
        %1058 = vmatprep.subr.bf16.mxu0 0
        %1059 = vmatpush1.bf16.msra.mxu0 %v1050
        %1060 = vmatprep.subr.bf16.mxu0 0
        %1061 = vmatpush1.bf16.msra.mxu0 0
        %1062 = vmatprep.subr.bf16.mxu0 0
        %1063 = vmatpush1.bf16.msra.mxu0 0
        %1064 = vmatprep.subr.bf16.mxu0 0
        %1065 = vmatpush1.bf16.msra.mxu0 0
        %1066 = vmatprep.subr.bf16.mxu0 0
        %1067 = vmatpush1.bf16.msra.mxu0 0
        %1068 = vmatprep.subr.bf16.mxu0 0
        %1069 = vmatpush1.bf16.msra.mxu0 0
        %1070 = vmatprep.subr.bf16.mxu0 0
        %1071 = vmatpush1.bf16.msra.mxu0 0
        %1072 = vmatprep.subr.bf16.mxu0 0
        %1073 = vmatpush1.bf16.msra.mxu0 0
        %1074 = vmatprep.subr.bf16.mxu0 0
        %1075 = vmatpush1.bf16.msra.mxu0 0
        %1076 = vmatprep.subr.bf16.mxu0 0
        %1077 = vmatpush1.bf16.msra.mxu0 0
        %1078 = vmatprep.subr.bf16.mxu0 0
        %1079 = vmatpush1.bf16.msra.mxu0 0
        %1080 = vmatprep.subr.bf16.mxu0 0
        %1081 = vmatpush1.bf16.msra.mxu0 0
        %1082 = vmatprep.subr.bf16.mxu0 0
        %1083 = vmatpush1.bf16.msra.mxu0 0
        %1084 = vmatprep.subr.bf16.mxu0 0
        %1085 = vmatpush1.bf16.msra.mxu0 0
        %1086 = vmatprep.subr.bf16.mxu0 0
        %1087 = vmatpush1.bf16.msra.mxu0 0
        %1088 = vmatprep.mubr.bf16.mxu0 0
        %1089 = vmatmul.mubr.bf16.gmra.mrb[0].mxu0 %v1054
        %v1090 = vpop.f32.mrb[0].mxu0
        %v1091 = vadd.f32 %v1039, %v1090
        %v1092 = vpop.f32.mrb[0].mxu0
        %v1093 = vpop.f32.mrb[0].mxu0
        %v1094 = vpop.f32.mrb[0].mxu0
        %1095 = vdwg.mxu0
        %v1096 = vmul.f32 %v1091, 0.25
        %v1097 = vld [vmem:[%s13] sm:$0xf]
        %v1098 = vld [vmem:[%s13 + $0x4] sm:$0xf]
        %v1099 = vld [vmem:[%s13 + $0x8] sm:$0xf]
        %v1100 = vld [vmem:[%s13 + $0xc] sm:$0xf]
        %v1101 = vpack.c.bf16 %v1096, %v1096
        %v1102 = vpack.c.bf16 %v1091, %v1091
        %v1104 = vlaneseq
        %v1105 = vshrl.u32 %v1104, 7
        %v1106 = vsub.s32 0, %v1105
        %v1107 = vrot.slane %v996, %v1106
        %1110 = vrot.lane.b32.xlu0 %v1102, 96
        %v1111 = vpop.permute.xlu0 %1110
        %vm1112 = vcmask 130048
        %v1114 = vsel %vm1112, %v1101, 0
        %v1117 = vsel %vm1112, %v1111, 0
        %1119 = vmatprep.subr.bf16.mxu0 0
        %1120 = vmatpush1.bf16.xpose.msra.mxu0 %v1117
        %1121 = vmatprep.subr.bf16.mxu0 0
        %1122 = vmatpush1.bf16.xpose.msra.mxu0 0
        %1123 = vmatprep.subr.bf16.mxu0 0
        %1124 = vmatpush1.bf16.xpose.msra.mxu0 0
        %1125 = vmatprep.subr.bf16.mxu0 0
        %1126 = vmatpush1.bf16.xpose.msra.mxu0 0
        %1127 = vmatprep.subr.bf16.mxu0 0
        %1128 = vmatpush1.bf16.xpose.msra.mxu0 0
        %1129 = vmatprep.subr.bf16.mxu0 0
        %1130 = vmatpush1.bf16.xpose.msra.mxu0 0
        %1131 = vmatprep.subr.bf16.mxu0 0
        %1132 = vmatpush1.bf16.xpose.msra.mxu0 0
        %1133 = vmatprep.subr.bf16.mxu0 0
        %1134 = vmatpush1.bf16.xpose.msra.mxu0 0
        %1135 = vmatprep.subr.bf16.mxu0 0
        %1136 = vmatpush1.bf16.xpose.msra.mxu0 0
        %1137 = vmatprep.subr.bf16.mxu0 0
        %1138 = vmatpush1.bf16.xpose.msra.mxu0 0
        %1139 = vmatprep.subr.bf16.mxu0 0
        %1140 = vmatpush1.bf16.xpose.msra.mxu0 0
        %1141 = vmatprep.subr.bf16.mxu0 0
        %1142 = vmatpush1.bf16.xpose.msra.mxu0 0
        %1143 = vmatprep.subr.bf16.mxu0 0
        %1144 = vmatpush1.bf16.xpose.msra.mxu0 0
        %1145 = vmatprep.subr.bf16.mxu0 0
        %1146 = vmatpush1.bf16.xpose.msra.mxu0 0
        %1147 = vmatprep.subr.bf16.mxu0 0
        %1148 = vmatpush1.bf16.xpose.msra.mxu0 0
        %1149 = vmatprep.subr.bf16.mxu0 0
        %1150 = vmatpush1.bf16.xpose.msra.mxu0 0
        %1151 = vmatprep.mubr.bf16.mxu0 0
        %1152 = vmatmul.mubr.bf16.gmra.mrb[0].mxu0 %v1114
        %v1153 = vpop.f32.mrb[0].mxu0
        %v1154 = vadd.f32 %v1107, %v1153
        %v1155 = vpop.f32.mrb[0].mxu0
        %v1156 = vpop.f32.mrb[0].mxu0
        %v1157 = vpop.f32.mrb[0].mxu0
        %1158 = vdwg.mxu0
        %vm1159 = vcmask 64512
        %v1160 = vsel %vm1159, %v1154, -inf
        %1161 = vmax.xlane.f32.xlu0 %v1160
        %v1162 = vpop.xlane.xlu0 %1161
        %v1163 = vsub.f32 %v1154, %v1162
        %v1164 = vmul.f32 %v1163, 1.442695
        %v1165 = vpow.pop %v1164
        %v1166 = vsel %vm1159, %v1165, 0.0
        %1167 = vadd.xlane.f32.xlu0 %v1166
        %v1168 = vpop.xlane.xlu0 %1167
        %v1169 = vrcp.pop %v1168
        %v1170 = vmul.f32 %v1165, %v1169
        %v1171 = vpack.c.bf16 %v1170, %v1170
        %1172 = vrot.lane.b32.xlu0 %v1102, 64
        %v1173 = vpop.permute.xlu0 %1172
        %v1175 = vsel %vm1159, %v1171, 0
        %vm1177 = vcmask 1043456
        %v1179 = vsel %vm1177, %v1173, 0
        %1181 = vmatprep.subr.bf16.mxu0 0
        %1182 = vmatpush1.bf16.msra.mxu0 %v1179
        %1183 = vmatprep.subr.bf16.mxu0 0
        %1184 = vmatpush1.bf16.msra.mxu0 0
        %1185 = vmatprep.subr.bf16.mxu0 0
        %1186 = vmatpush1.bf16.msra.mxu0 0
        %1187 = vmatprep.subr.bf16.mxu0 0
        %1188 = vmatpush1.bf16.msra.mxu0 0
        %1189 = vmatprep.subr.bf16.mxu0 0
        %1190 = vmatpush1.bf16.msra.mxu0 0
        %1191 = vmatprep.subr.bf16.mxu0 0
        %1192 = vmatpush1.bf16.msra.mxu0 0
        %1193 = vmatprep.subr.bf16.mxu0 0
        %1194 = vmatpush1.bf16.msra.mxu0 0
        %1195 = vmatprep.subr.bf16.mxu0 0
        %1196 = vmatpush1.bf16.msra.mxu0 0
        %1197 = vmatprep.subr.bf16.mxu0 0
        %1198 = vmatpush1.bf16.msra.mxu0 0
        %1199 = vmatprep.subr.bf16.mxu0 0
        %1200 = vmatpush1.bf16.msra.mxu0 0
        %1201 = vmatprep.subr.bf16.mxu0 0
        %1202 = vmatpush1.bf16.msra.mxu0 0
        %1203 = vmatprep.subr.bf16.mxu0 0
        %1204 = vmatpush1.bf16.msra.mxu0 0
        %1205 = vmatprep.subr.bf16.mxu0 0
        %1206 = vmatpush1.bf16.msra.mxu0 0
        %1207 = vmatprep.subr.bf16.mxu0 0
        %1208 = vmatpush1.bf16.msra.mxu0 0
        %1209 = vmatprep.subr.bf16.mxu0 0
        %1210 = vmatpush1.bf16.msra.mxu0 0
        %1211 = vmatprep.subr.bf16.mxu0 0
        %1212 = vmatpush1.bf16.msra.mxu0 0
        %1213 = vmatprep.mubr.bf16.mxu0 0
        %1214 = vmatmul.mubr.bf16.gmra.mrb[0].mxu0 %v1175
        %v1215 = vpop.f32.mrb[0].mxu0
        %v1216 = vadd.f32 0.0, %v1215
        %v1217 = vpop.f32.mrb[0].mxu0
        %v1218 = vpop.f32.mrb[0].mxu0
        %v1219 = vpop.f32.mrb[0].mxu0
        %1220 = vdwg.mxu0
        %v1221 = vpack.c.bf16 %v1216, %v1216
        %1223 = vrot.lane.b32.xlu0 %v1101, 112
        %v1224 = vpop.permute.xlu0 %1223
        %1225 = vrot.lane.b32.xlu0 %v1102, 80
        %v1226 = vpop.permute.xlu0 %1225
        %v1228 = vsel %vm1112, %v1224, 0
        %v1231 = vsel %vm1112, %v1226, 0
        %1233 = vmatprep.subr.bf16.mxu0 0
        %1234 = vmatpush1.bf16.xpose.msra.mxu0 %v1231
        %1235 = vmatprep.subr.bf16.mxu0 0
        %1236 = vmatpush1.bf16.xpose.msra.mxu0 0
        %1237 = vmatprep.subr.bf16.mxu0 0
        %1238 = vmatpush1.bf16.xpose.msra.mxu0 0
        %1239 = vmatprep.subr.bf16.mxu0 0
        %1240 = vmatpush1.bf16.xpose.msra.mxu0 0
        %1241 = vmatprep.subr.bf16.mxu0 0
        %1242 = vmatpush1.bf16.xpose.msra.mxu0 0
        %1243 = vmatprep.subr.bf16.mxu0 0
        %1244 = vmatpush1.bf16.xpose.msra.mxu0 0
        %1245 = vmatprep.subr.bf16.mxu0 0
        %1246 = vmatpush1.bf16.xpose.msra.mxu0 0
        %1247 = vmatprep.subr.bf16.mxu0 0
        %1248 = vmatpush1.bf16.xpose.msra.mxu0 0
        %1249 = vmatprep.subr.bf16.mxu0 0
        %1250 = vmatpush1.bf16.xpose.msra.mxu0 0
        %1251 = vmatprep.subr.bf16.mxu0 0
        %1252 = vmatpush1.bf16.xpose.msra.mxu0 0
        %1253 = vmatprep.subr.bf16.mxu0 0
        %1254 = vmatpush1.bf16.xpose.msra.mxu0 0
        %1255 = vmatprep.subr.bf16.mxu0 0
        %1256 = vmatpush1.bf16.xpose.msra.mxu0 0
        %1257 = vmatprep.subr.bf16.mxu0 0
        %1258 = vmatpush1.bf16.xpose.msra.mxu0 0
        %1259 = vmatprep.subr.bf16.mxu0 0
        %1260 = vmatpush1.bf16.xpose.msra.mxu0 0
        %1261 = vmatprep.subr.bf16.mxu0 0
        %1262 = vmatpush1.bf16.xpose.msra.mxu0 0
        %1263 = vmatprep.subr.bf16.mxu0 0
        %1264 = vmatpush1.bf16.xpose.msra.mxu0 0
        %1265 = vmatprep.mubr.bf16.mxu0 0
        %1266 = vmatmul.mubr.bf16.gmra.mrb[0].mxu0 %v1228
        %v1267 = vpop.f32.mrb[0].mxu0
        %v1268 = vadd.f32 %v1107, %v1267
        %v1269 = vpop.f32.mrb[0].mxu0
        %v1270 = vpop.f32.mrb[0].mxu0
        %v1271 = vpop.f32.mrb[0].mxu0
        %1272 = vdwg.mxu0
        %v1273 = vsel %vm1159, %v1268, -inf
        %1274 = vmax.xlane.f32.xlu0 %v1273
        %v1275 = vpop.xlane.xlu0 %1274
        %v1276 = vsub.f32 %v1268, %v1275
        %v1277 = vmul.f32 %v1276, 1.442695
        %v1278 = vpow.pop %v1277
        %v1279 = vsel %vm1159, %v1278, 0.0
        %1280 = vadd.xlane.f32.xlu0 %v1279
        %v1281 = vpop.xlane.xlu0 %1280
        %v1282 = vrcp.pop %v1281
        %v1283 = vmul.f32 %v1278, %v1282
        %v1284 = vpack.c.bf16 %v1283, %v1283
        %1285 = vrot.lane.b32.xlu0 %v1102, 48
        %v1286 = vpop.permute.xlu0 %1285
        %v1288 = vsel %vm1159, %v1284, 0
        %v1291 = vsel %vm1177, %v1286, 0
        %1293 = vmatprep.subr.bf16.mxu0 0
        %1294 = vmatpush1.bf16.msra.mxu0 %v1291
        %1295 = vmatprep.subr.bf16.mxu0 0
        %1296 = vmatpush1.bf16.msra.mxu0 0
        %1297 = vmatprep.subr.bf16.mxu0 0
        %1298 = vmatpush1.bf16.msra.mxu0 0
        %1299 = vmatprep.subr.bf16.mxu0 0
        %1300 = vmatpush1.bf16.msra.mxu0 0
        %1301 = vmatprep.subr.bf16.mxu0 0
        %1302 = vmatpush1.bf16.msra.mxu0 0
        %1303 = vmatprep.subr.bf16.mxu0 0
        %1304 = vmatpush1.bf16.msra.mxu0 0
        %1305 = vmatprep.subr.bf16.mxu0 0
        %1306 = vmatpush1.bf16.msra.mxu0 0
        %1307 = vmatprep.subr.bf16.mxu0 0
        %1308 = vmatpush1.bf16.msra.mxu0 0
        %1309 = vmatprep.subr.bf16.mxu0 0
        %1310 = vmatpush1.bf16.msra.mxu0 0
        %1311 = vmatprep.subr.bf16.mxu0 0
        %1312 = vmatpush1.bf16.msra.mxu0 0
        %1313 = vmatprep.subr.bf16.mxu0 0
        %1314 = vmatpush1.bf16.msra.mxu0 0
        %1315 = vmatprep.subr.bf16.mxu0 0
        %1316 = vmatpush1.bf16.msra.mxu0 0
        %1317 = vmatprep.subr.bf16.mxu0 0
        %1318 = vmatpush1.bf16.msra.mxu0 0
        %1319 = vmatprep.subr.bf16.mxu0 0
        %1320 = vmatpush1.bf16.msra.mxu0 0
        %1321 = vmatprep.subr.bf16.mxu0 0
        %1322 = vmatpush1.bf16.msra.mxu0 0
        %1323 = vmatprep.subr.bf16.mxu0 0
        %1324 = vmatpush1.bf16.msra.mxu0 0
        %1325 = vmatprep.mubr.bf16.mxu0 0
        %1326 = vmatmul.mubr.bf16.gmra.mrb[0].mxu0 %v1288
        %v1327 = vpop.f32.mrb[0].mxu0
        %v1328 = vadd.f32 0.0, %v1327
        %v1329 = vpop.f32.mrb[0].mxu0
        %v1330 = vpop.f32.mrb[0].mxu0
        %v1331 = vpop.f32.mrb[0].mxu0
        %1332 = vdwg.mxu0
        %v1333 = vpack.c.bf16 %v1328, %v1328
        %v1336 = vunpack.c.l.b16 %v1099
        %v1337 = vunpack.c.l.b16 %v1100
        %v1338 = vpack.c.b16 %v1337, %v1336
        %v1341 = vsel %vm1112, %v1333, 0
        %1343 = vmatprep.subr.bf16.mxu0 0
        %1344 = vmatpush1.bf16.msra.mxu0 %v1338
        %1345 = vmatprep.subr.bf16.mxu0 0
        %1346 = vmatpush1.bf16.msra.mxu0 0
        %1347 = vmatprep.subr.bf16.mxu0 0
        %1348 = vmatpush1.bf16.msra.mxu0 0
        %1349 = vmatprep.subr.bf16.mxu0 0
        %1350 = vmatpush1.bf16.msra.mxu0 0
        %1351 = vmatprep.subr.bf16.mxu0 0
        %1352 = vmatpush1.bf16.msra.mxu0 0
        %1353 = vmatprep.subr.bf16.mxu0 0
        %1354 = vmatpush1.bf16.msra.mxu0 0
        %1355 = vmatprep.subr.bf16.mxu0 0
        %1356 = vmatpush1.bf16.msra.mxu0 0
        %1357 = vmatprep.subr.bf16.mxu0 0
        %1358 = vmatpush1.bf16.msra.mxu0 0
        %1359 = vmatprep.subr.bf16.mxu0 0
        %1360 = vmatpush1.bf16.msra.mxu0 0
        %1361 = vmatprep.subr.bf16.mxu0 0
        %1362 = vmatpush1.bf16.msra.mxu0 0
        %1363 = vmatprep.subr.bf16.mxu0 0
        %1364 = vmatpush1.bf16.msra.mxu0 0
        %1365 = vmatprep.subr.bf16.mxu0 0
        %1366 = vmatpush1.bf16.msra.mxu0 0
        %1367 = vmatprep.subr.bf16.mxu0 0
        %1368 = vmatpush1.bf16.msra.mxu0 0
        %1369 = vmatprep.subr.bf16.mxu0 0
        %1370 = vmatpush1.bf16.msra.mxu0 0
        %1371 = vmatprep.subr.bf16.mxu0 0
        %1372 = vmatpush1.bf16.msra.mxu0 0
        %1373 = vmatprep.subr.bf16.mxu0 0
        %1374 = vmatpush1.bf16.msra.mxu0 0
        %1375 = vmatprep.mubr.bf16.mxu0 0
        %1376 = vmatmul.mubr.bf16.gmra.mrb[0].mxu0 %v1341
        %v1377 = vpop.f32.mrb[0].mxu0
        %v1378 = vadd.f32 0.0, %v1377
        %v1379 = vpop.f32.mrb[0].mxu0
        %v1380 = vpop.f32.mrb[0].mxu0
        %v1381 = vpop.f32.mrb[0].mxu0
        %1382 = vdwg.mxu0
        %v1385 = vunpack.c.l.b16 %v1097
        %v1386 = vunpack.c.l.b16 %v1098
        %v1387 = vpack.c.b16 %v1386, %v1385
        %v1390 = vsel %vm1112, %v1221, 0
        %1392 = vmatprep.subr.bf16.mxu0 0
        %1393 = vmatpush1.bf16.msra.mxu0 %v1387
        %1394 = vmatprep.subr.bf16.mxu0 0
        %1395 = vmatpush1.bf16.msra.mxu0 0
        %1396 = vmatprep.subr.bf16.mxu0 0
        %1397 = vmatpush1.bf16.msra.mxu0 0
        %1398 = vmatprep.subr.bf16.mxu0 0
        %1399 = vmatpush1.bf16.msra.mxu0 0
        %1400 = vmatprep.subr.bf16.mxu0 0
        %1401 = vmatpush1.bf16.msra.mxu0 0
        %1402 = vmatprep.subr.bf16.mxu0 0
        %1403 = vmatpush1.bf16.msra.mxu0 0
        %1404 = vmatprep.subr.bf16.mxu0 0
        %1405 = vmatpush1.bf16.msra.mxu0 0
        %1406 = vmatprep.subr.bf16.mxu0 0
        %1407 = vmatpush1.bf16.msra.mxu0 0
        %1408 = vmatprep.subr.bf16.mxu0 0
        %1409 = vmatpush1.bf16.msra.mxu0 0
        %1410 = vmatprep.subr.bf16.mxu0 0
        %1411 = vmatpush1.bf16.msra.mxu0 0
        %1412 = vmatprep.subr.bf16.mxu0 0
        %1413 = vmatpush1.bf16.msra.mxu0 0
        %1414 = vmatprep.subr.bf16.mxu0 0
        %1415 = vmatpush1.bf16.msra.mxu0 0
        %1416 = vmatprep.subr.bf16.mxu0 0
        %1417 = vmatpush1.bf16.msra.mxu0 0
        %1418 = vmatprep.subr.bf16.mxu0 0
        %1419 = vmatpush1.bf16.msra.mxu0 0
        %1420 = vmatprep.subr.bf16.mxu0 0
        %1421 = vmatpush1.bf16.msra.mxu0 0
        %1422 = vmatprep.subr.bf16.mxu0 0
        %1423 = vmatpush1.bf16.msra.mxu0 0
        %1424 = vmatprep.mubr.bf16.mxu0 0
        %1425 = vmatmul.mubr.bf16.gmra.mrb[0].mxu0 %v1390
        %v1426 = vpop.f32.mrb[0].mxu0
        %v1427 = vadd.f32 %v1378, %v1426
        %v1428 = vpop.f32.mrb[0].mxu0
        %v1429 = vpop.f32.mrb[0].mxu0
        %v1430 = vpop.f32.mrb[0].mxu0
        %1431 = vdwg.mxu0
        %v1432 = vld [vmem:[%s15] sm:$0x1]
        %v1434 = vlaneseq
        %v1435 = vshrl.u32 %v1434, 7
        %v1436 = vsub.s32 0, %v1435
        %v1437 = vrot.slane %v1432, %v1436
        %v1439 = vadd.f32 %v1427, %v1437
        %v1440 = vadd.f32 %v1439, %v1028
        %v1441 = vsel %vm998, %v1440, 0.0
        %1442 = vadd.xlane.f32.xlu0 %v1441
        %v1443 = vpop.xlane.xlu0 %1442
        %v1444 = vmul.f32 %v1443, %v1002
        %v1445 = vsub.f32 %v1440, %v1444
        %v1446 = vmul.f32 %v1445, %v1445
        %v1447 = vsel %vm998, %v1446, 0.0
        %1448 = vadd.xlane.f32.xlu0 %v1447
        %v1449 = vpop.xlane.xlu0 %1448
        %v1450 = vmul.f32 %v1449, %v1002
        %v1451 = vadd.f32 %v1450, 1e-12
        %v1452 = vrsqrt.pop %v1451
        %v1453 = vmul.f32 %v1445, %v1452
        %v1454 = vld [vmem:[%s17] sm:$0x1]
        %v1456 = vlaneseq
        %v1457 = vshrl.u32 %v1456, 7
        %v1458 = vsub.s32 0, %v1457
        %v1459 = vrot.slane %v1454, %v1458
        %v1461 = vmul.f32 %v1453, %v1459
        %v1462 = vld [vmem:[%s19] sm:$0x1]
        %v1464 = vlaneseq
        %v1465 = vshrl.u32 %v1464, 7
        %v1466 = vsub.s32 0, %v1465
        %v1467 = vrot.slane %v1462, %v1466
        %v1469 = vadd.f32 %v1461, %v1467
        %v1470 = vpack.c.bf16 %v1469, %v1469
        %v1471 = vld [vmem:[%s21] sm:$0xf]
        %v1472 = vld [vmem:[%s21 + $0x4] sm:$0xf]
        %v1473 = vld [vmem:[%s21 + $0x8] sm:$0xf]
        %v1474 = vld [vmem:[%s21 + $0xc] sm:$0xf]
        %v1475 = vld [vmem:[%s23] sm:$0x1]
        %v1477 = vlaneseq
        %v1478 = vshrl.u32 %v1477, 7
        %v1479 = vsub.s32 0, %v1478
        %v1480 = vrot.slane %v1475, %v1479
        %v1486 = vunpack.c.l.b16 %v1471
        %v1487 = vunpack.c.l.b16 %v1472
        %v1488 = vunpack.c.l.b16 %v1473
        %v1489 = vunpack.c.l.b16 %v1474
        %v1490 = vpack.c.b16 %v1487, %v1486
        %v1491 = vpack.c.b16 %v1489, %v1488
        %v1495 = vsel %vm998, %v1470, 0
        %1497 = vmatprep.subr.bf16.mxu0 0
        %1498 = vmatpush1.bf16.msra.mxu0 %v1490
        %1499 = vmatprep.subr.bf16.mxu0 0
        %1500 = vmatpush1.bf16.msra.mxu0 %v1491
        %1501 = vmatprep.subr.bf16.mxu0 0
        %1502 = vmatpush1.bf16.msra.mxu0 0
        %1503 = vmatprep.subr.bf16.mxu0 0
        %1504 = vmatpush1.bf16.msra.mxu0 0
        %1505 = vmatprep.subr.bf16.mxu0 0
        %1506 = vmatpush1.bf16.msra.mxu0 0
        %1507 = vmatprep.subr.bf16.mxu0 0
        %1508 = vmatpush1.bf16.msra.mxu0 0
        %1509 = vmatprep.subr.bf16.mxu0 0
        %1510 = vmatpush1.bf16.msra.mxu0 0
        %1511 = vmatprep.subr.bf16.mxu0 0
        %1512 = vmatpush1.bf16.msra.mxu0 0
        %1513 = vmatprep.subr.bf16.mxu0 0
        %1514 = vmatpush1.bf16.msra.mxu0 0
        %1515 = vmatprep.subr.bf16.mxu0 0
        %1516 = vmatpush1.bf16.msra.mxu0 0
        %1517 = vmatprep.subr.bf16.mxu0 0
        %1518 = vmatpush1.bf16.msra.mxu0 0
        %1519 = vmatprep.subr.bf16.mxu0 0
        %1520 = vmatpush1.bf16.msra.mxu0 0
        %1521 = vmatprep.subr.bf16.mxu0 0
        %1522 = vmatpush1.bf16.msra.mxu0 0
        %1523 = vmatprep.subr.bf16.mxu0 0
        %1524 = vmatpush1.bf16.msra.mxu0 0
        %1525 = vmatprep.subr.bf16.mxu0 0
        %1526 = vmatpush1.bf16.msra.mxu0 0
        %1527 = vmatprep.subr.bf16.mxu0 0
        %1528 = vmatpush1.bf16.msra.mxu0 0
        %1529 = vmatprep.mubr.bf16.mxu0 0
        %1530 = vmatmul.mubr.bf16.gmra.mrb[0].mxu0 %v1495
        %v1531 = vpop.f32.mrb[0].mxu0
        %v1532 = vadd.f32 %v1480, %v1531
        %v1533 = vpop.f32.mrb[0].mxu0
        %v1534 = vpop.f32.mrb[0].mxu0
        %v1535 = vpop.f32.mrb[0].mxu0
        %1536 = vdwg.mxu0
        %v1537 = vmul.f32 %v1532, 0.5
        %v1538 = vmul.f32 %v1532, 0.044715
        %v1539 = vmul.f32 %v1538, %v1532
        %v1540 = vmul.f32 %v1539, %v1532
        %v1541 = vadd.f32 %v1532, %v1540
        %v1542 = vmul.f32 %v1541, 0.7978846
        %v1543 = vtanh.pop %v1542
        %v1544 = vadd.f32 %v1543, 1.0
        %v1545 = vmul.f32 %v1537, %v1544
        %v1546 = vpack.c.bf16 %v1545, %v1545
        %v1547 = vld [vmem:[%s25] sm:$0xf]
        %v1548 = vld [vmem:[%s25 + $0x4] sm:$0xf]
        %v1549 = vld [vmem:[%s25 + $0x8] sm:$0xf]
        %v1550 = vld [vmem:[%s25 + $0xc] sm:$0xf]
        %v1551 = vld [vmem:[%s25 + $0x10] sm:$0xf]
        %v1552 = vld [vmem:[%s25 + $0x14] sm:$0xf]
        %v1553 = vld [vmem:[%s25 + $0x18] sm:$0xf]
        %v1554 = vld [vmem:[%s25 + $0x1c] sm:$0xf]
        %v1555 = vld [vmem:[%s27] sm:$0x1]
        %v1557 = vlaneseq
        %v1558 = vshrl.u32 %v1557, 7
        %v1559 = vsub.s32 0, %v1558
        %v1560 = vrot.slane %v1555, %v1559
        %v1570 = vunpack.c.l.b16 %v1547
        %v1571 = vunpack.c.l.b16 %v1548
        %v1572 = vunpack.c.l.b16 %v1549
        %v1573 = vunpack.c.l.b16 %v1550
        %v1574 = vunpack.c.l.b16 %v1551
        %v1575 = vunpack.c.l.b16 %v1552
        %v1576 = vunpack.c.l.b16 %v1553
        %v1577 = vunpack.c.l.b16 %v1554
        %v1578 = vpack.c.b16 %v1571, %v1570
        %v1579 = vpack.c.b16 %v1573, %v1572
        %v1580 = vpack.c.b16 %v1575, %v1574
        %v1581 = vpack.c.b16 %v1577, %v1576
        %vm1586 = vcmask 523264
        %v1588 = vsel %vm1586, %v1546, 0
        %1590 = vmatprep.subr.bf16.mxu0 0
        %1591 = vmatpush1.bf16.msra.mxu0 %v1578
        %1592 = vmatprep.subr.bf16.mxu0 0
        %1593 = vmatpush1.bf16.msra.mxu0 %v1579
        %1594 = vmatprep.subr.bf16.mxu0 0
        %1595 = vmatpush1.bf16.msra.mxu0 %v1580
        %1596 = vmatprep.subr.bf16.mxu0 0
        %1597 = vmatpush1.bf16.msra.mxu0 %v1581
        %1598 = vmatprep.subr.bf16.mxu0 0
        %1599 = vmatpush1.bf16.msra.mxu0 0
        %1600 = vmatprep.subr.bf16.mxu0 0
        %1601 = vmatpush1.bf16.msra.mxu0 0
        %1602 = vmatprep.subr.bf16.mxu0 0
        %1603 = vmatpush1.bf16.msra.mxu0 0
        %1604 = vmatprep.subr.bf16.mxu0 0
        %1605 = vmatpush1.bf16.msra.mxu0 0
        %1606 = vmatprep.subr.bf16.mxu0 0
        %1607 = vmatpush1.bf16.msra.mxu0 0
        %1608 = vmatprep.subr.bf16.mxu0 0
        %1609 = vmatpush1.bf16.msra.mxu0 0
        %1610 = vmatprep.subr.bf16.mxu0 0
        %1611 = vmatpush1.bf16.msra.mxu0 0
        %1612 = vmatprep.subr.bf16.mxu0 0
        %1613 = vmatpush1.bf16.msra.mxu0 0
        %1614 = vmatprep.subr.bf16.mxu0 0
        %1615 = vmatpush1.bf16.msra.mxu0 0
        %1616 = vmatprep.subr.bf16.mxu0 0
        %1617 = vmatpush1.bf16.msra.mxu0 0
        %1618 = vmatprep.subr.bf16.mxu0 0
        %1619 = vmatpush1.bf16.msra.mxu0 0
        %1620 = vmatprep.subr.bf16.mxu0 0
        %1621 = vmatpush1.bf16.msra.mxu0 0
        %1622 = vmatprep.mubr.bf16.mxu0 0
        %1623 = vmatmul.mubr.bf16.gmra.mrb[0].mxu0 %v1588
        %v1624 = vpop.f32.mrb[0].mxu0
        %v1625 = vadd.f32 %v1560, %v1624
        %v1626 = vpop.f32.mrb[0].mxu0
        %v1627 = vpop.f32.mrb[0].mxu0
        %v1628 = vpop.f32.mrb[0].mxu0
        %1629 = vdwg.mxu0
        %v1630 = vadd.f32 %v1625, %v1469
        %v1631 = vsel %vm998, %v1630, 0.0
        %1632 = vadd.xlane.f32.xlu0 %v1631
        %v1633 = vpop.xlane.xlu0 %1632
        %v1634 = vmul.f32 %v1633, %v1002
        %v1635 = vsub.f32 %v1630, %v1634
        %v1636 = vmul.f32 %v1635, %v1635
        %v1637 = vsel %vm998, %v1636, 0.0
        %1638 = vadd.xlane.f32.xlu0 %v1637
        %v1639 = vpop.xlane.xlu0 %1638
        %v1640 = vmul.f32 %v1639, %v1002
        %v1641 = vadd.f32 %v1640, 1e-12
        %v1642 = vrsqrt.pop %v1641
        %v1643 = vmul.f32 %v1635, %v1642
        %v1644 = vld [vmem:[%s29] sm:$0x1]
        %v1646 = vlaneseq
        %v1647 = vshrl.u32 %v1646, 7
        %v1648 = vsub.s32 0, %v1647
        %v1649 = vrot.slane %v1644, %v1648
        %v1651 = vmul.f32 %v1643, %v1649
        %v1652 = vld [vmem:[%s31] sm:$0x1]
        %v1654 = vlaneseq
        %v1655 = vshrl.u32 %v1654, 7
        %v1656 = vsub.s32 0, %v1655
        %v1657 = vrot.slane %v1652, %v1656
        %v1659 = vadd.f32 %v1651, %v1657
        %v1660 = vpack.c.bf16 %v1659, %v1659
        %v1661 = vld [vmem:[%s33] sm:$0xf]
        %v1662 = vld [vmem:[%s33 + $0x4] sm:$0xf]
        %v1663 = vld [vmem:[%s33 + $0x8] sm:$0xf]
        %v1664 = vld [vmem:[%s33 + $0xc] sm:$0xf]
        %v1665 = vld [vmem:[%s35] sm:$0x1]
        %v1667 = vlaneseq
        %v1668 = vshrl.u32 %v1667, 7
        %v1669 = vsub.s32 0, %v1668
        %v1670 = vrot.slane %v1665, %v1669
        %v1676 = vunpack.c.l.b16 %v1661
        %v1677 = vunpack.c.l.b16 %v1662
        %v1678 = vunpack.c.l.b16 %v1663
        %v1679 = vunpack.c.l.b16 %v1664
        %v1680 = vpack.c.b16 %v1677, %v1676
        %v1681 = vpack.c.b16 %v1679, %v1678
        %v1685 = vsel %vm998, %v1660, 0
        %1687 = vmatprep.subr.bf16.mxu0 0
        %1688 = vmatpush1.bf16.msra.mxu0 %v1680
        %1689 = vmatprep.subr.bf16.mxu0 0
        %1690 = vmatpush1.bf16.msra.mxu0 %v1681
        %1691 = vmatprep.subr.bf16.mxu0 0
        %1692 = vmatpush1.bf16.msra.mxu0 0
        %1693 = vmatprep.subr.bf16.mxu0 0
        %1694 = vmatpush1.bf16.msra.mxu0 0
        %1695 = vmatprep.subr.bf16.mxu0 0
        %1696 = vmatpush1.bf16.msra.mxu0 0
        %1697 = vmatprep.subr.bf16.mxu0 0
        %1698 = vmatpush1.bf16.msra.mxu0 0
        %1699 = vmatprep.subr.bf16.mxu0 0
        %1700 = vmatpush1.bf16.msra.mxu0 0
        %1701 = vmatprep.subr.bf16.mxu0 0
        %1702 = vmatpush1.bf16.msra.mxu0 0
        %1703 = vmatprep.subr.bf16.mxu0 0
        %1704 = vmatpush1.bf16.msra.mxu0 0
        %1705 = vmatprep.subr.bf16.mxu0 0
        %1706 = vmatpush1.bf16.msra.mxu0 0
        %1707 = vmatprep.subr.bf16.mxu0 0
        %1708 = vmatpush1.bf16.msra.mxu0 0
        %1709 = vmatprep.subr.bf16.mxu0 0
        %1710 = vmatpush1.bf16.msra.mxu0 0
        %1711 = vmatprep.subr.bf16.mxu0 0
        %1712 = vmatpush1.bf16.msra.mxu0 0
        %1713 = vmatprep.subr.bf16.mxu0 0
        %1714 = vmatpush1.bf16.msra.mxu0 0
        %1715 = vmatprep.subr.bf16.mxu0 0
        %1716 = vmatpush1.bf16.msra.mxu0 0
        %1717 = vmatprep.subr.bf16.mxu0 0
        %1718 = vmatpush1.bf16.msra.mxu0 0
        %1719 = vmatprep.mubr.bf16.mxu0 0
        %1720 = vmatmul.mubr.bf16.gmra.mrb[0].mxu0 %v1685
        %v1721 = vpop.f32.mrb[0].mxu0
        %v1722 = vadd.f32 %v1670, %v1721
        %v1723 = vpop.f32.mrb[0].mxu0
        %v1724 = vpop.f32.mrb[0].mxu0
        %v1725 = vpop.f32.mrb[0].mxu0
        %1726 = vdwg.mxu0
        %v1727 = vmul.f32 %v1722, 0.25
        %v1728 = vld [vmem:[%s37] sm:$0xf]
        %v1729 = vld [vmem:[%s37 + $0x4] sm:$0xf]
        %v1730 = vld [vmem:[%s37 + $0x8] sm:$0xf]
        %v1731 = vld [vmem:[%s37 + $0xc] sm:$0xf]
        %v1732 = vpack.c.bf16 %v1727, %v1727
        %v1733 = vpack.c.bf16 %v1722, %v1722
        %1735 = vrot.lane.b32.xlu0 %v1733, 96
        %v1736 = vpop.permute.xlu0 %1735
        %v1738 = vsel %vm1112, %v1732, 0
        %v1741 = vsel %vm1112, %v1736, 0
        %1743 = vmatprep.subr.bf16.mxu0 0
        %1744 = vmatpush1.bf16.xpose.msra.mxu0 %v1741
        %1745 = vmatprep.subr.bf16.mxu0 0
        %1746 = vmatpush1.bf16.xpose.msra.mxu0 0
        %1747 = vmatprep.subr.bf16.mxu0 0
        %1748 = vmatpush1.bf16.xpose.msra.mxu0 0
        %1749 = vmatprep.subr.bf16.mxu0 0
        %1750 = vmatpush1.bf16.xpose.msra.mxu0 0
        %1751 = vmatprep.subr.bf16.mxu0 0
        %1752 = vmatpush1.bf16.xpose.msra.mxu0 0
        %1753 = vmatprep.subr.bf16.mxu0 0
        %1754 = vmatpush1.bf16.xpose.msra.mxu0 0
        %1755 = vmatprep.subr.bf16.mxu0 0
        %1756 = vmatpush1.bf16.xpose.msra.mxu0 0
        %1757 = vmatprep.subr.bf16.mxu0 0
        %1758 = vmatpush1.bf16.xpose.msra.mxu0 0
        %1759 = vmatprep.subr.bf16.mxu0 0
        %1760 = vmatpush1.bf16.xpose.msra.mxu0 0
        %1761 = vmatprep.subr.bf16.mxu0 0
        %1762 = vmatpush1.bf16.xpose.msra.mxu0 0
        %1763 = vmatprep.subr.bf16.mxu0 0
        %1764 = vmatpush1.bf16.xpose.msra.mxu0 0
        %1765 = vmatprep.subr.bf16.mxu0 0
        %1766 = vmatpush1.bf16.xpose.msra.mxu0 0
        %1767 = vmatprep.subr.bf16.mxu0 0
        %1768 = vmatpush1.bf16.xpose.msra.mxu0 0
        %1769 = vmatprep.subr.bf16.mxu0 0
        %1770 = vmatpush1.bf16.xpose.msra.mxu0 0
        %1771 = vmatprep.subr.bf16.mxu0 0
        %1772 = vmatpush1.bf16.xpose.msra.mxu0 0
        %1773 = vmatprep.subr.bf16.mxu0 0
        %1774 = vmatpush1.bf16.xpose.msra.mxu0 0
        %1775 = vmatprep.mubr.bf16.mxu0 0
        %1776 = vmatmul.mubr.bf16.gmra.mrb[0].mxu0 %v1738
        %v1777 = vpop.f32.mrb[0].mxu0
        %v1778 = vadd.f32 %v1107, %v1777
        %v1779 = vpop.f32.mrb[0].mxu0
        %v1780 = vpop.f32.mrb[0].mxu0
        %v1781 = vpop.f32.mrb[0].mxu0
        %1782 = vdwg.mxu0
        %v1783 = vsel %vm1159, %v1778, -inf
        %1784 = vmax.xlane.f32.xlu0 %v1783
        %v1785 = vpop.xlane.xlu0 %1784
        %v1786 = vsub.f32 %v1778, %v1785
        %v1787 = vmul.f32 %v1786, 1.442695
        %v1788 = vpow.pop %v1787
        %v1789 = vsel %vm1159, %v1788, 0.0
        %1790 = vadd.xlane.f32.xlu0 %v1789
        %v1791 = vpop.xlane.xlu0 %1790
        %v1792 = vrcp.pop %v1791
        %v1793 = vmul.f32 %v1788, %v1792
        %v1794 = vpack.c.bf16 %v1793, %v1793
        %1795 = vrot.lane.b32.xlu0 %v1733, 64
        %v1796 = vpop.permute.xlu0 %1795
        %v1798 = vsel %vm1159, %v1794, 0
        %v1801 = vsel %vm1177, %v1796, 0
        %1803 = vmatprep.subr.bf16.mxu0 0
        %1804 = vmatpush1.bf16.msra.mxu0 %v1801
        %1805 = vmatprep.subr.bf16.mxu0 0
        %1806 = vmatpush1.bf16.msra.mxu0 0
        %1807 = vmatprep.subr.bf16.mxu0 0
        %1808 = vmatpush1.bf16.msra.mxu0 0
        %1809 = vmatprep.subr.bf16.mxu0 0
        %1810 = vmatpush1.bf16.msra.mxu0 0
        %1811 = vmatprep.subr.bf16.mxu0 0
        %1812 = vmatpush1.bf16.msra.mxu0 0
        %1813 = vmatprep.subr.bf16.mxu0 0
        %1814 = vmatpush1.bf16.msra.mxu0 0
        %1815 = vmatprep.subr.bf16.mxu0 0
        %1816 = vmatpush1.bf16.msra.mxu0 0
        %1817 = vmatprep.subr.bf16.mxu0 0
        %1818 = vmatpush1.bf16.msra.mxu0 0
        %1819 = vmatprep.subr.bf16.mxu0 0
        %1820 = vmatpush1.bf16.msra.mxu0 0
        %1821 = vmatprep.subr.bf16.mxu0 0
        %1822 = vmatpush1.bf16.msra.mxu0 0
        %1823 = vmatprep.subr.bf16.mxu0 0
        %1824 = vmatpush1.bf16.msra.mxu0 0
        %1825 = vmatprep.subr.bf16.mxu0 0
        %1826 = vmatpush1.bf16.msra.mxu0 0
        %1827 = vmatprep.subr.bf16.mxu0 0
        %1828 = vmatpush1.bf16.msra.mxu0 0
        %1829 = vmatprep.subr.bf16.mxu0 0
        %1830 = vmatpush1.bf16.msra.mxu0 0
        %1831 = vmatprep.subr.bf16.mxu0 0
        %1832 = vmatpush1.bf16.msra.mxu0 0
        %1833 = vmatprep.subr.bf16.mxu0 0
        %1834 = vmatpush1.bf16.msra.mxu0 0
        %1835 = vmatprep.mubr.bf16.mxu0 0
        %1836 = vmatmul.mubr.bf16.gmra.mrb[0].mxu0 %v1798
        %v1837 = vpop.f32.mrb[0].mxu0
        %v1838 = vadd.f32 0.0, %v1837
        %v1839 = vpop.f32.mrb[0].mxu0
        %v1840 = vpop.f32.mrb[0].mxu0
        %v1841 = vpop.f32.mrb[0].mxu0
        %1842 = vdwg.mxu0
        %v1843 = vpack.c.bf16 %v1838, %v1838
        %1845 = vrot.lane.b32.xlu0 %v1732, 112
        %v1846 = vpop.permute.xlu0 %1845
        %1847 = vrot.lane.b32.xlu0 %v1733, 80
        %v1848 = vpop.permute.xlu0 %1847
        %v1850 = vsel %vm1112, %v1846, 0
        %v1853 = vsel %vm1112, %v1848, 0
        %1855 = vmatprep.subr.bf16.mxu0 0
        %1856 = vmatpush1.bf16.xpose.msra.mxu0 %v1853
        %1857 = vmatprep.subr.bf16.mxu0 0
        %1858 = vmatpush1.bf16.xpose.msra.mxu0 0
        %1859 = vmatprep.subr.bf16.mxu0 0
        %1860 = vmatpush1.bf16.xpose.msra.mxu0 0
        %1861 = vmatprep.subr.bf16.mxu0 0
        %1862 = vmatpush1.bf16.xpose.msra.mxu0 0
        %1863 = vmatprep.subr.bf16.mxu0 0
        %1864 = vmatpush1.bf16.xpose.msra.mxu0 0
        %1865 = vmatprep.subr.bf16.mxu0 0
        %1866 = vmatpush1.bf16.xpose.msra.mxu0 0
        %1867 = vmatprep.subr.bf16.mxu0 0
        %1868 = vmatpush1.bf16.xpose.msra.mxu0 0
        %1869 = vmatprep.subr.bf16.mxu0 0
        %1870 = vmatpush1.bf16.xpose.msra.mxu0 0
        %1871 = vmatprep.subr.bf16.mxu0 0
        %1872 = vmatpush1.bf16.xpose.msra.mxu0 0
        %1873 = vmatprep.subr.bf16.mxu0 0
        %1874 = vmatpush1.bf16.xpose.msra.mxu0 0
        %1875 = vmatprep.subr.bf16.mxu0 0
        %1876 = vmatpush1.bf16.xpose.msra.mxu0 0
        %1877 = vmatprep.subr.bf16.mxu0 0
        %1878 = vmatpush1.bf16.xpose.msra.mxu0 0
        %1879 = vmatprep.subr.bf16.mxu0 0
        %1880 = vmatpush1.bf16.xpose.msra.mxu0 0
        %1881 = vmatprep.subr.bf16.mxu0 0
        %1882 = vmatpush1.bf16.xpose.msra.mxu0 0
        %1883 = vmatprep.subr.bf16.mxu0 0
        %1884 = vmatpush1.bf16.xpose.msra.mxu0 0
        %1885 = vmatprep.subr.bf16.mxu0 0
        %1886 = vmatpush1.bf16.xpose.msra.mxu0 0
        %1887 = vmatprep.mubr.bf16.mxu0 0
        %1888 = vmatmul.mubr.bf16.gmra.mrb[0].mxu0 %v1850
        %v1889 = vpop.f32.mrb[0].mxu0
        %v1890 = vadd.f32 %v1107, %v1889
        %v1891 = vpop.f32.mrb[0].mxu0
        %v1892 = vpop.f32.mrb[0].mxu0
        %v1893 = vpop.f32.mrb[0].mxu0
        %1894 = vdwg.mxu0
        %v1895 = vsel %vm1159, %v1890, -inf
        %1896 = vmax.xlane.f32.xlu0 %v1895
        %v1897 = vpop.xlane.xlu0 %1896
        %v1898 = vsub.f32 %v1890, %v1897
        %v1899 = vmul.f32 %v1898, 1.442695
        %v1900 = vpow.pop %v1899
        %v1901 = vsel %vm1159, %v1900, 0.0
        %1902 = vadd.xlane.f32.xlu0 %v1901
        %v1903 = vpop.xlane.xlu0 %1902
        %v1904 = vrcp.pop %v1903
        %v1905 = vmul.f32 %v1900, %v1904
        %v1906 = vpack.c.bf16 %v1905, %v1905
        %1907 = vrot.lane.b32.xlu0 %v1733, 48
        %v1908 = vpop.permute.xlu0 %1907
        %v1910 = vsel %vm1159, %v1906, 0
        %v1913 = vsel %vm1177, %v1908, 0
        %1915 = vmatprep.subr.bf16.mxu0 0
        %1916 = vmatpush1.bf16.msra.mxu0 %v1913
        %1917 = vmatprep.subr.bf16.mxu0 0
        %1918 = vmatpush1.bf16.msra.mxu0 0
        %1919 = vmatprep.subr.bf16.mxu0 0
        %1920 = vmatpush1.bf16.msra.mxu0 0
        %1921 = vmatprep.subr.bf16.mxu0 0
        %1922 = vmatpush1.bf16.msra.mxu0 0
        %1923 = vmatprep.subr.bf16.mxu0 0
        %1924 = vmatpush1.bf16.msra.mxu0 0
        %1925 = vmatprep.subr.bf16.mxu0 0
        %1926 = vmatpush1.bf16.msra.mxu0 0
        %1927 = vmatprep.subr.bf16.mxu0 0
        %1928 = vmatpush1.bf16.msra.mxu0 0
        %1929 = vmatprep.subr.bf16.mxu0 0
        %1930 = vmatpush1.bf16.msra.mxu0 0
        %1931 = vmatprep.subr.bf16.mxu0 0
        %1932 = vmatpush1.bf16.msra.mxu0 0
        %1933 = vmatprep.subr.bf16.mxu0 0
        %1934 = vmatpush1.bf16.msra.mxu0 0
        %1935 = vmatprep.subr.bf16.mxu0 0
        %1936 = vmatpush1.bf16.msra.mxu0 0
        %1937 = vmatprep.subr.bf16.mxu0 0
        %1938 = vmatpush1.bf16.msra.mxu0 0
        %1939 = vmatprep.subr.bf16.mxu0 0
        %1940 = vmatpush1.bf16.msra.mxu0 0
        %1941 = vmatprep.subr.bf16.mxu0 0
        %1942 = vmatpush1.bf16.msra.mxu0 0
        %1943 = vmatprep.subr.bf16.mxu0 0
        %1944 = vmatpush1.bf16.msra.mxu0 0
        %1945 = vmatprep.subr.bf16.mxu0 0
        %1946 = vmatpush1.bf16.msra.mxu0 0
        %1947 = vmatprep.mubr.bf16.mxu0 0
        %1948 = vmatmul.mubr.bf16.gmra.mrb[0].mxu0 %v1910
        %v1949 = vpop.f32.mrb[0].mxu0
        %v1950 = vadd.f32 0.0, %v1949
        %v1951 = vpop.f32.mrb[0].mxu0
        %v1952 = vpop.f32.mrb[0].mxu0
        %v1953 = vpop.f32.mrb[0].mxu0
        %1954 = vdwg.mxu0
        %v1955 = vpack.c.bf16 %v1950, %v1950
        %v1958 = vunpack.c.l.b16 %v1730
        %v1959 = vunpack.c.l.b16 %v1731
        %v1960 = vpack.c.b16 %v1959, %v1958
        %v1963 = vsel %vm1112, %v1955, 0
        %1965 = vmatprep.subr.bf16.mxu0 0
        %1966 = vmatpush1.bf16.msra.mxu0 %v1960
        %1967 = vmatprep.subr.bf16.mxu0 0
        %1968 = vmatpush1.bf16.msra.mxu0 0
        %1969 = vmatprep.subr.bf16.mxu0 0
        %1970 = vmatpush1.bf16.msra.mxu0 0
        %1971 = vmatprep.subr.bf16.mxu0 0
        %1972 = vmatpush1.bf16.msra.mxu0 0
        %1973 = vmatprep.subr.bf16.mxu0 0
        %1974 = vmatpush1.bf16.msra.mxu0 0
        %1975 = vmatprep.subr.bf16.mxu0 0
        %1976 = vmatpush1.bf16.msra.mxu0 0
        %1977 = vmatprep.subr.bf16.mxu0 0
        %1978 = vmatpush1.bf16.msra.mxu0 0
        %1979 = vmatprep.subr.bf16.mxu0 0
        %1980 = vmatpush1.bf16.msra.mxu0 0
        %1981 = vmatprep.subr.bf16.mxu0 0
        %1982 = vmatpush1.bf16.msra.mxu0 0
        %1983 = vmatprep.subr.bf16.mxu0 0
        %1984 = vmatpush1.bf16.msra.mxu0 0
        %1985 = vmatprep.subr.bf16.mxu0 0
        %1986 = vmatpush1.bf16.msra.mxu0 0
        %1987 = vmatprep.subr.bf16.mxu0 0
        %1988 = vmatpush1.bf16.msra.mxu0 0
        %1989 = vmatprep.subr.bf16.mxu0 0
        %1990 = vmatpush1.bf16.msra.mxu0 0
        %1991 = vmatprep.subr.bf16.mxu0 0
        %1992 = vmatpush1.bf16.msra.mxu0 0
        %1993 = vmatprep.subr.bf16.mxu0 0
        %1994 = vmatpush1.bf16.msra.mxu0 0
        %1995 = vmatprep.subr.bf16.mxu0 0
        %1996 = vmatpush1.bf16.msra.mxu0 0
        %1997 = vmatprep.mubr.bf16.mxu0 0
        %1998 = vmatmul.mubr.bf16.gmra.mrb[0].mxu0 %v1963
        %v1999 = vpop.f32.mrb[0].mxu0
        %v2000 = vadd.f32 0.0, %v1999
        %v2001 = vpop.f32.mrb[0].mxu0
        %v2002 = vpop.f32.mrb[0].mxu0
        %v2003 = vpop.f32.mrb[0].mxu0
        %2004 = vdwg.mxu0
        %v2007 = vunpack.c.l.b16 %v1728
        %v2008 = vunpack.c.l.b16 %v1729
        %v2009 = vpack.c.b16 %v2008, %v2007
        %v2012 = vsel %vm1112, %v1843, 0
        %2014 = vmatprep.subr.bf16.mxu0 0
        %2015 = vmatpush1.bf16.msra.mxu0 %v2009
        %2016 = vmatprep.subr.bf16.mxu0 0
        %2017 = vmatpush1.bf16.msra.mxu0 0
        %2018 = vmatprep.subr.bf16.mxu0 0
        %2019 = vmatpush1.bf16.msra.mxu0 0
        %2020 = vmatprep.subr.bf16.mxu0 0
        %2021 = vmatpush1.bf16.msra.mxu0 0
        %2022 = vmatprep.subr.bf16.mxu0 0
        %2023 = vmatpush1.bf16.msra.mxu0 0
        %2024 = vmatprep.subr.bf16.mxu0 0
        %2025 = vmatpush1.bf16.msra.mxu0 0
        %2026 = vmatprep.subr.bf16.mxu0 0
        %2027 = vmatpush1.bf16.msra.mxu0 0
        %2028 = vmatprep.subr.bf16.mxu0 0
        %2029 = vmatpush1.bf16.msra.mxu0 0
        %2030 = vmatprep.subr.bf16.mxu0 0
        %2031 = vmatpush1.bf16.msra.mxu0 0
        %2032 = vmatprep.subr.bf16.mxu0 0
        %2033 = vmatpush1.bf16.msra.mxu0 0
        %2034 = vmatprep.subr.bf16.mxu0 0
        %2035 = vmatpush1.bf16.msra.mxu0 0
        %2036 = vmatprep.subr.bf16.mxu0 0
        %2037 = vmatpush1.bf16.msra.mxu0 0
        %2038 = vmatprep.subr.bf16.mxu0 0
        %2039 = vmatpush1.bf16.msra.mxu0 0
        %2040 = vmatprep.subr.bf16.mxu0 0
        %2041 = vmatpush1.bf16.msra.mxu0 0
        %2042 = vmatprep.subr.bf16.mxu0 0
        %2043 = vmatpush1.bf16.msra.mxu0 0
        %2044 = vmatprep.subr.bf16.mxu0 0
        %2045 = vmatpush1.bf16.msra.mxu0 0
        %2046 = vmatprep.mubr.bf16.mxu0 0
        %2047 = vmatmul.mubr.bf16.gmra.mrb[0].mxu0 %v2012
        %v2048 = vpop.f32.mrb[0].mxu0
        %v2049 = vadd.f32 %v2000, %v2048
        %v2050 = vpop.f32.mrb[0].mxu0
        %v2051 = vpop.f32.mrb[0].mxu0
        %v2052 = vpop.f32.mrb[0].mxu0
        %2053 = vdwg.mxu0
        %v2054 = vld [vmem:[%s39] sm:$0x1]
        %v2056 = vlaneseq
        %v2057 = vshrl.u32 %v2056, 7
        %v2058 = vsub.s32 0, %v2057
        %v2059 = vrot.slane %v2054, %v2058
        %v2061 = vadd.f32 %v2049, %v2059
        %v2062 = vadd.f32 %v2061, %v1659
        %v2063 = vsel %vm998, %v2062, 0.0
        %2064 = vadd.xlane.f32.xlu0 %v2063
        %v2065 = vpop.xlane.xlu0 %2064
        %v2066 = vmul.f32 %v2065, %v1002
        %v2067 = vsub.f32 %v2062, %v2066
        %v2068 = vmul.f32 %v2067, %v2067
        %v2069 = vsel %vm998, %v2068, 0.0
        %2070 = vadd.xlane.f32.xlu0 %v2069
        %v2071 = vpop.xlane.xlu0 %2070
        %v2072 = vmul.f32 %v2071, %v1002
        %v2073 = vadd.f32 %v2072, 1e-12
        %v2074 = vrsqrt.pop %v2073
        %v2075 = vmul.f32 %v2067, %v2074
        %v2076 = vld [vmem:[%s41] sm:$0x1]
        %v2078 = vlaneseq
        %v2079 = vshrl.u32 %v2078, 7
        %v2080 = vsub.s32 0, %v2079
        %v2081 = vrot.slane %v2076, %v2080
        %v2083 = vmul.f32 %v2075, %v2081
        %v2084 = vld [vmem:[%s43] sm:$0x1]
        %v2086 = vlaneseq
        %v2087 = vshrl.u32 %v2086, 7
        %v2088 = vsub.s32 0, %v2087
        %v2089 = vrot.slane %v2084, %v2088
        %v2091 = vadd.f32 %v2083, %v2089
        %v2092 = vpack.c.bf16 %v2091, %v2091
        %v2093 = vld [vmem:[%s45] sm:$0xf]
        %v2094 = vld [vmem:[%s45 + $0x4] sm:$0xf]
        %v2095 = vld [vmem:[%s45 + $0x8] sm:$0xf]
        %v2096 = vld [vmem:[%s45 + $0xc] sm:$0xf]
        %v2097 = vld [vmem:[%s47] sm:$0x1]
        %v2099 = vlaneseq
        %v2100 = vshrl.u32 %v2099, 7
        %v2101 = vsub.s32 0, %v2100
        %v2102 = vrot.slane %v2097, %v2101
        %v2108 = vunpack.c.l.b16 %v2093
        %v2109 = vunpack.c.l.b16 %v2094
        %v2110 = vunpack.c.l.b16 %v2095
        %v2111 = vunpack.c.l.b16 %v2096
        %v2112 = vpack.c.b16 %v2109, %v2108
        %v2113 = vpack.c.b16 %v2111, %v2110
        %v2117 = vsel %vm998, %v2092, 0
        %2119 = vmatprep.subr.bf16.mxu0 0
        %2120 = vmatpush1.bf16.msra.mxu0 %v2112
        %2121 = vmatprep.subr.bf16.mxu0 0
        %2122 = vmatpush1.bf16.msra.mxu0 %v2113
        %2123 = vmatprep.subr.bf16.mxu0 0
        %2124 = vmatpush1.bf16.msra.mxu0 0
        %2125 = vmatprep.subr.bf16.mxu0 0
        %2126 = vmatpush1.bf16.msra.mxu0 0
        %2127 = vmatprep.subr.bf16.mxu0 0
        %2128 = vmatpush1.bf16.msra.mxu0 0
        %2129 = vmatprep.subr.bf16.mxu0 0
        %2130 = vmatpush1.bf16.msra.mxu0 0
        %2131 = vmatprep.subr.bf16.mxu0 0
        %2132 = vmatpush1.bf16.msra.mxu0 0
        %2133 = vmatprep.subr.bf16.mxu0 0
        %2134 = vmatpush1.bf16.msra.mxu0 0
        %2135 = vmatprep.subr.bf16.mxu0 0
        %2136 = vmatpush1.bf16.msra.mxu0 0
        %2137 = vmatprep.subr.bf16.mxu0 0
        %2138 = vmatpush1.bf16.msra.mxu0 0
        %2139 = vmatprep.subr.bf16.mxu0 0
        %2140 = vmatpush1.bf16.msra.mxu0 0
        %2141 = vmatprep.subr.bf16.mxu0 0
        %2142 = vmatpush1.bf16.msra.mxu0 0
        %2143 = vmatprep.subr.bf16.mxu0 0
        %2144 = vmatpush1.bf16.msra.mxu0 0
        %2145 = vmatprep.subr.bf16.mxu0 0
        %2146 = vmatpush1.bf16.msra.mxu0 0
        %2147 = vmatprep.subr.bf16.mxu0 0
        %2148 = vmatpush1.bf16.msra.mxu0 0
        %2149 = vmatprep.subr.bf16.mxu0 0
        %2150 = vmatpush1.bf16.msra.mxu0 0
        %2151 = vmatprep.mubr.bf16.mxu0 0
        %2152 = vmatmul.mubr.bf16.gmra.mrb[0].mxu0 %v2117
        %v2153 = vpop.f32.mrb[0].mxu0
        %v2154 = vadd.f32 %v2102, %v2153
        %v2155 = vpop.f32.mrb[0].mxu0
        %v2156 = vpop.f32.mrb[0].mxu0
        %v2157 = vpop.f32.mrb[0].mxu0
        %2158 = vdwg.mxu0
        %v2159 = vmul.f32 %v2154, 0.5
        %v2160 = vmul.f32 %v2154, 0.044715
        %v2161 = vmul.f32 %v2160, %v2154
        %v2162 = vmul.f32 %v2161, %v2154
        %v2163 = vadd.f32 %v2154, %v2162
        %v2164 = vmul.f32 %v2163, 0.7978846
        %v2165 = vtanh.pop %v2164
        %v2166 = vadd.f32 %v2165, 1.0
        %v2167 = vmul.f32 %v2159, %v2166
        %v2168 = vpack.c.bf16 %v2167, %v2167
        %v2169 = vld [vmem:[%s49] sm:$0xf]
        %v2170 = vld [vmem:[%s49 + $0x4] sm:$0xf]
        %v2171 = vld [vmem:[%s49 + $0x8] sm:$0xf]
        %v2172 = vld [vmem:[%s49 + $0xc] sm:$0xf]
        %v2173 = vld [vmem:[%s49 + $0x10] sm:$0xf]
        %v2174 = vld [vmem:[%s49 + $0x14] sm:$0xf]
        %v2175 = vld [vmem:[%s49 + $0x18] sm:$0xf]
        %v2176 = vld [vmem:[%s49 + $0x1c] sm:$0xf]
        %v2177 = vld [vmem:[%s51] sm:$0x1]
        %v2179 = vlaneseq
        %v2180 = vshrl.u32 %v2179, 7
        %v2181 = vsub.s32 0, %v2180
        %v2182 = vrot.slane %v2177, %v2181
        %v2192 = vunpack.c.l.b16 %v2169
        %v2193 = vunpack.c.l.b16 %v2170
        %v2194 = vunpack.c.l.b16 %v2171
        %v2195 = vunpack.c.l.b16 %v2172
        %v2196 = vunpack.c.l.b16 %v2173
        %v2197 = vunpack.c.l.b16 %v2174
        %v2198 = vunpack.c.l.b16 %v2175
        %v2199 = vunpack.c.l.b16 %v2176
        %v2200 = vpack.c.b16 %v2193, %v2192
        %v2201 = vpack.c.b16 %v2195, %v2194
        %v2202 = vpack.c.b16 %v2197, %v2196
        %v2203 = vpack.c.b16 %v2199, %v2198
        %v2209 = vsel %vm1586, %v2168, 0
        %2211 = vmatprep.subr.bf16.mxu0 0
        %2212 = vmatpush1.bf16.msra.mxu0 %v2200
        %2213 = vmatprep.subr.bf16.mxu0 0
        %2214 = vmatpush1.bf16.msra.mxu0 %v2201
        %2215 = vmatprep.subr.bf16.mxu0 0
        %2216 = vmatpush1.bf16.msra.mxu0 %v2202
        %2217 = vmatprep.subr.bf16.mxu0 0
        %2218 = vmatpush1.bf16.msra.mxu0 %v2203
        %2219 = vmatprep.subr.bf16.mxu0 0
        %2220 = vmatpush1.bf16.msra.mxu0 0
        %2221 = vmatprep.subr.bf16.mxu0 0
        %2222 = vmatpush1.bf16.msra.mxu0 0
        %2223 = vmatprep.subr.bf16.mxu0 0
        %2224 = vmatpush1.bf16.msra.mxu0 0
        %2225 = vmatprep.subr.bf16.mxu0 0
        %2226 = vmatpush1.bf16.msra.mxu0 0
        %2227 = vmatprep.subr.bf16.mxu0 0
        %2228 = vmatpush1.bf16.msra.mxu0 0
        %2229 = vmatprep.subr.bf16.mxu0 0
        %2230 = vmatpush1.bf16.msra.mxu0 0
        %2231 = vmatprep.subr.bf16.mxu0 0
        %2232 = vmatpush1.bf16.msra.mxu0 0
        %2233 = vmatprep.subr.bf16.mxu0 0
        %2234 = vmatpush1.bf16.msra.mxu0 0
        %2235 = vmatprep.subr.bf16.mxu0 0
        %2236 = vmatpush1.bf16.msra.mxu0 0
        %2237 = vmatprep.subr.bf16.mxu0 0
        %2238 = vmatpush1.bf16.msra.mxu0 0
        %2239 = vmatprep.subr.bf16.mxu0 0
        %2240 = vmatpush1.bf16.msra.mxu0 0
        %2241 = vmatprep.subr.bf16.mxu0 0
        %2242 = vmatpush1.bf16.msra.mxu0 0
        %2243 = vmatprep.mubr.bf16.mxu0 0
        %2244 = vmatmul.mubr.bf16.gmra.mrb[0].mxu0 %v2209
        %v2245 = vpop.f32.mrb[0].mxu0
        %v2246 = vadd.f32 %v2182, %v2245
        %v2247 = vpop.f32.mrb[0].mxu0
        %v2248 = vpop.f32.mrb[0].mxu0
        %v2249 = vpop.f32.mrb[0].mxu0
        %2250 = vdwg.mxu0
        %v2251 = vadd.f32 %v2246, %v2091
        %v2252 = vsel %vm998, %v2251, 0.0
        %2253 = vadd.xlane.f32.xlu0 %v2252
        %v2254 = vpop.xlane.xlu0 %2253
        %v2255 = vmul.f32 %v2254, %v1002
        %v2256 = vsub.f32 %v2251, %v2255
        %v2257 = vmul.f32 %v2256, %v2256
        %v2258 = vsel %vm998, %v2257, 0.0
        %2259 = vadd.xlane.f32.xlu0 %v2258
        %v2260 = vpop.xlane.xlu0 %2259
        %v2261 = vmul.f32 %v2260, %v1002
        %v2262 = vadd.f32 %v2261, 1e-12
        %v2263 = vrsqrt.pop %v2262
        %v2264 = vmul.f32 %v2256, %v2263
        %v2265 = vld [vmem:[%s53] sm:$0x1]
        %v2267 = vlaneseq
        %v2268 = vshrl.u32 %v2267, 7
        %v2269 = vsub.s32 0, %v2268
        %v2270 = vrot.slane %v2265, %v2269
        %v2272 = vmul.f32 %v2264, %v2270
        %v2273 = vld [vmem:[%s55] sm:$0x1]
        %v2275 = vlaneseq
        %v2276 = vshrl.u32 %v2275, 7
        %v2277 = vsub.s32 0, %v2276
        %v2278 = vrot.slane %v2273, %v2277
        %v2280 = vadd.f32 %v2272, %v2278
        %v2281 = vpack.c.bf16 %v2280, %v2280
        %v2282 = vld [vmem:[%s57] sm:$0xf]
        %v2283 = vld [vmem:[%s57 + $0x4] sm:$0xf]
        %v2284 = vld [vmem:[%s57 + $0x8] sm:$0xf]
        %v2285 = vld [vmem:[%s57 + $0xc] sm:$0xf]
        %v2286 = vld [vmem:[%s59] sm:$0x1]
        %v2291 = vunpack.c.l.b16 %v2282
        %v2292 = vunpack.c.l.b16 %v2283
        %v2293 = vunpack.c.l.b16 %v2284
        %v2294 = vunpack.c.l.b16 %v2285
        %v2295 = vpack.c.b16 %v2292, %v2291
        %v2296 = vpack.c.b16 %v2294, %v2293
        %v2300 = vsel %vm998, %v2281, 0
        %2302 = vmatprep.subr.bf16.mxu0 0
        %2303 = vmatpush1.bf16.msra.mxu0 %v2295
        %2304 = vmatprep.subr.bf16.mxu0 0
        %2305 = vmatpush1.bf16.msra.mxu0 %v2296
        %2306 = vmatprep.subr.bf16.mxu0 0
        %2307 = vmatpush1.bf16.msra.mxu0 0
        %2308 = vmatprep.subr.bf16.mxu0 0
        %2309 = vmatpush1.bf16.msra.mxu0 0
        %2310 = vmatprep.subr.bf16.mxu0 0
        %2311 = vmatpush1.bf16.msra.mxu0 0
        %2312 = vmatprep.subr.bf16.mxu0 0
        %2313 = vmatpush1.bf16.msra.mxu0 0
        %2314 = vmatprep.subr.bf16.mxu0 0
        %2315 = vmatpush1.bf16.msra.mxu0 0
        %2316 = vmatprep.subr.bf16.mxu0 0
        %2317 = vmatpush1.bf16.msra.mxu0 0
        %2318 = vmatprep.subr.bf16.mxu0 0
        %2319 = vmatpush1.bf16.msra.mxu0 0
        %2320 = vmatprep.subr.bf16.mxu0 0
        %2321 = vmatpush1.bf16.msra.mxu0 0
        %2322 = vmatprep.subr.bf16.mxu0 0
        %2323 = vmatpush1.bf16.msra.mxu0 0
        %2324 = vmatprep.subr.bf16.mxu0 0
        %2325 = vmatpush1.bf16.msra.mxu0 0
        %2326 = vmatprep.subr.bf16.mxu0 0
        %2327 = vmatpush1.bf16.msra.mxu0 0
        %2328 = vmatprep.subr.bf16.mxu0 0
        %2329 = vmatpush1.bf16.msra.mxu0 0
        %2330 = vmatprep.subr.bf16.mxu0 0
        %2331 = vmatpush1.bf16.msra.mxu0 0
        %2332 = vmatprep.subr.bf16.mxu0 0
        %2333 = vmatpush1.bf16.msra.mxu0 0
        %2334 = vmatprep.mubr.bf16.mxu0 0
        %2335 = vmatmul.mubr.bf16.gmra.mrb[0].mxu0 %v2300
        %v2336 = vpop.f32.mrb[0].mxu0
        %v2337 = vadd.f32 %v2286, %v2336
        %v2338 = vpop.f32.mrb[0].mxu0
        %v2339 = vpop.f32.mrb[0].mxu0
        %v2340 = vpop.f32.mrb[0].mxu0
        %2341 = vdwg.mxu0
        %v2342 = vmax.f32 %v2337, 0.0
        %v2343 = vpack.c.bf16 %v2342, %v2342
        %v2344 = vld [vmem:[%s61] sm:$0xf]
        %v2345 = vld [vmem:[%s61 + $0x4] sm:$0xf]
        %v2346 = vld [vmem:[%s61 + $0x8] sm:$0xf]
        %v2347 = vld [vmem:[%s61 + $0xc] sm:$0xf]
        %v2348 = vld [vmem:[%s63] sm:$0x1]
        %v2353 = vunpack.c.l.b16 %v2344
        %v2354 = vunpack.c.l.b16 %v2345
        %v2355 = vunpack.c.l.b16 %v2346
        %v2356 = vunpack.c.l.b16 %v2347
        %v2357 = vpack.c.b16 %v2354, %v2353
        %v2358 = vpack.c.b16 %v2356, %v2355
        %v2362 = vsel %vm998, %v2343, 0
        %2364 = vmatprep.subr.bf16.mxu0 0
        %2365 = vmatpush1.bf16.msra.mxu0 %v2357
        %2366 = vmatprep.subr.bf16.mxu0 0
        %2367 = vmatpush1.bf16.msra.mxu0 %v2358
        %2368 = vmatprep.subr.bf16.mxu0 0
        %2369 = vmatpush1.bf16.msra.mxu0 0
        %2370 = vmatprep.subr.bf16.mxu0 0
        %2371 = vmatpush1.bf16.msra.mxu0 0
        %2372 = vmatprep.subr.bf16.mxu0 0
        %2373 = vmatpush1.bf16.msra.mxu0 0
        %2374 = vmatprep.subr.bf16.mxu0 0
        %2375 = vmatpush1.bf16.msra.mxu0 0
        %2376 = vmatprep.subr.bf16.mxu0 0
        %2377 = vmatpush1.bf16.msra.mxu0 0
        %2378 = vmatprep.subr.bf16.mxu0 0
        %2379 = vmatpush1.bf16.msra.mxu0 0
        %2380 = vmatprep.subr.bf16.mxu0 0
        %2381 = vmatpush1.bf16.msra.mxu0 0
        %2382 = vmatprep.subr.bf16.mxu0 0
        %2383 = vmatpush1.bf16.msra.mxu0 0
        %2384 = vmatprep.subr.bf16.mxu0 0
        %2385 = vmatpush1.bf16.msra.mxu0 0
        %2386 = vmatprep.subr.bf16.mxu0 0
        %2387 = vmatpush1.bf16.msra.mxu0 0
        %2388 = vmatprep.subr.bf16.mxu0 0
        %2389 = vmatpush1.bf16.msra.mxu0 0
        %2390 = vmatprep.subr.bf16.mxu0 0
        %2391 = vmatpush1.bf16.msra.mxu0 0
        %2392 = vmatprep.subr.bf16.mxu0 0
        %2393 = vmatpush1.bf16.msra.mxu0 0
        %2394 = vmatprep.subr.bf16.mxu0 0
        %2395 = vmatpush1.bf16.msra.mxu0 0
        %2396 = vmatprep.mubr.bf16.mxu0 0
        %2397 = vmatmul.mubr.bf16.gmra.mrb[0].mxu0 %v2362
        %v2398 = vpop.f32.mrb[0].mxu0
        %v2399 = vadd.f32 %v2348, %v2398
        %v2400 = vpop.f32.mrb[0].mxu0
        %v2401 = vpop.f32.mrb[0].mxu0
        %v2402 = vpop.f32.mrb[0].mxu0
        %2403 = vdwg.mxu0
        %2404 = vst [vmem:[%s987] sm:$0x1] %v2399
        %s2405 = sand.u32 %s769, 1
        %s2406 = scalar_lea.sflag [#allocation3], %s2405
        %s2407 = sand.u32 %s769, 1
        %s2408 = scalar_lea.vmem [#allocation2], %s2407
        // Predicated region
        $region149: #{text_predictor_forward.1} parent=147 // pred_check
          %p2409 = pneg %p779
        $region150: #{text_predictor_forward.1} parent=147 // pred_check_branch
          %2411 = sbr.rel (%p2409) target = $region152
        $region151: #{text_predictor_forward.1} parent=147 // pred_region
          %s2413 = ssub.s32 16, 16
          %2414 = vsyncadd %s2406, %s2413
          %s2415 = smul.addr %s79, 16
          %s2416 = scalar_lea.hbm %s65, %s2415
          %s2418 = sshll.u32 %s2408, 4
          %s2419 = int_to_ptr.vmem [resolvable:$true] %s2418
          %2421 = dma.vmem_to_hbm [thread:$0]  %s2419, 16, %s2416, %s2406
        $region152: #{text_predictor_forward.1} parent=147 // pred_fallthru
          _
      $region148: #{text_predictor_forward.1} parent=5 // pred_fallthru
        _
      %p2422 = scmp.le.s32.totalorder 2, %s74
      // Predicated region
      $region153: #{text_predictor_forward.1} parent=5 // pred_check
        %p2423 = pneg %p2422
      $region154: #{text_predictor_forward.1} parent=5 // pred_check_branch
        %2425 = sbr.rel (%p2423) target = $region156
      $region155: #{text_predictor_forward.1} parent=5 // pred_region
        %s2426 = ssub.s32 %s74, 2
        // Predicated region
        $region157: #{text_predictor_forward.1} parent=155 // pred_check
          %p2427 = pneg %p785
        $region158: #{text_predictor_forward.1} parent=155 // pred_check_branch
          %2429 = sbr.rel (%p2427) target = $region160
        $region159: #{text_predictor_forward.1} parent=155 // pred_region
          %s2430 = sand.u32 %s770, 1
          %s2431 = scalar_lea.sflag [#allocation3], %s2430
          %s2432 = sand.u32 %s770, 1
          %s2433 = scalar_lea.vmem [#allocation2], %s2432
          %2434 = dma.done %s2431, 16
        $region160: #{text_predictor_forward.1} parent=155 // pred_fallthru
          _
      $region156: #{text_predictor_forward.1} parent=5 // pred_fallthru
        _
    $region6: #{text_predictor_forward.1} parent=1 // loop_footer
      %s78 = sadd.s32 1, %s74
    $region7: #{text_predictor_forward.1} parent=1 // loop_footer_branch
      %73 = sbr.rel target = $region3
    $region8: #{text_predictor_forward.1} parent=1 // loop_exit
      _
    %2435 = vsyncpa [#allocation3], 1
    %s2436 = scalar_lea.sflag [#allocation3], 1
    %2437 = vsyncpa %s2436, 1

</llo_original>
